<compile_context>
chip_gen: v5e
topology: v5e:2x2
jax: 0.10.0
libtpu: 0.0.40
codegen_flags: <defaults>
</compile_context>

<pallas_src>
import numpy as np
import jax
import jax.numpy as jnp
from jax import lax
from jax.experimental import pallas as pl
from jax.experimental.pallas import tpu as pltpu

_MM_DTYPE = jnp.bfloat16  # MXU operand dtype (accumulation is always f32)


# --------------------------------------------------------------------------
# Host-side constant builders (tiny one-hot / mask operators, built once)
# --------------------------------------------------------------------------
def _block_diag(m, nb):
    a, b = m.shape
    out = np.zeros((nb * a, nb * b), m.dtype)
    for i in range(nb):
        out[i * a:(i + 1) * a, i * b:(i + 1) * b] = m
    return out


def _tap_masks(H, W, k, nb):
    """{0,1} boundary masks, one per tap, for the roll-based im2col.
    Shape [k*k, nb*H*W] (periodic per image along the batch-folded lane axis)."""
    p = (k - 1) // 2
    m = np.zeros((k * k, H * W), np.float32)
    for kh in range(k):
        for kw in range(k):
            dy, dx = kh - p, kw - p
            t = kh * k + kw
            for y in range(H):
                if not (0 <= y + dy < H):
                    continue
                for x in range(W):
                    if 0 <= x + dx < W:
                        m[t, y * W + x] = 1.0
    return jnp.asarray(np.tile(m, (1, nb)), _MM_DTYPE)


def _downsample_mat(H, W, stride, nb):
    """One-hot [nb*H*W, nb*Ho*Wo] selecting positions (yo*stride, xo*stride):
    a stride-s conv equals the full-resolution (stride-1) conv sampled there."""
    Ho = (H - 1) // stride + 1
    Wo = (W - 1) // stride + 1
    d = np.zeros((H * W, Ho * Wo), np.float32)
    for yo in range(Ho):
        for xo in range(Wo):
            d[(yo * stride) * W + xo * stride, yo * Wo + xo] = 1.0
    return jnp.asarray(_block_diag(d, nb), _MM_DTYPE), Ho, Wo


def _conv_gather_mats(H, W, k, stride, pad, nb):
    """One-hot tap gather G[t] of shape [k*k, nb*H*W, nb*Ho*Wo] with
    (x @ G[t])[c, q] == xpad[c, yo*stride + kh, xo*stride + kw].
    Only used for the tiny low-resolution layers (lane extent < 128)."""
    Ho = (H + 2 * pad - k) // stride + 1
    Wo = (W + 2 * pad - k) // stride + 1
    g = np.zeros((k * k, H * W, Ho * Wo), np.float32)
    for kh in range(k):
        for kw in range(k):
            t = kh * k + kw
            for yo in range(Ho):
                yi = yo * stride + kh - pad
                if not (0 <= yi < H):
                    continue
                for xo in range(Wo):
                    xi = xo * stride + kw - pad
                    if 0 <= xi < W:
                        g[t, yi * W + xi, yo * Wo + xo] = 1.0
    gb = np.stack([_block_diag(g[t], nb) for t in range(k * k)], axis=0)
    return jnp.asarray(gb, _MM_DTYPE), Ho, Wo


def _interp_nearest_mat(Hin, Win, Hout, Wout, nb):
    """One-hot [nb*Hin*Win, nb*Hout*Wout] with x @ P == F.interpolate(x,
    (Hout, Wout), mode='nearest').  PyTorch size=(width, height) -> Hout=width,
    Wout=height (self-consistent with the reference; width==height here)."""
    p = np.zeros((Hin * Win, Hout * Wout), np.float32)
    for yo in range(Hout):
        yi = (yo * Hin) // Hout
        for xo in range(Wout):
            xi = (xo * Win) // Wout
            p[yi * Win + xi, yo * Wout + xo] = 1.0
    return jnp.asarray(_block_diag(p, nb), _MM_DTYPE)


# --------------------------------------------------------------------------
# Deterministic synthetic parameter init (BN folded to scale/bias, eval mode).
# Mirrors the pycls ResBasicBlock stack the PyTorch module instantiates.
# --------------------------------------------------------------------------
def _make_conv_bn(key, k, cin, cout):
    w = 0.1 * jax.random.normal(key, (k, k, cin, cout), jnp.float32)  # HWIO
    gamma = jnp.ones((cout,), jnp.float32)
    beta = jnp.zeros((cout,), jnp.float32)
    mean = jnp.zeros((cout,), jnp.float32)
    var = jnp.ones((cout,), jnp.float32)
    scale = gamma / jnp.sqrt(var + 1e-5)
    bias = beta - mean * scale
    return {"w": w, "scale": scale, "bias": bias}


def init_params(key, in_ch=3, stem_w=8, ws=(8, 8, 16, 16), strides=(1, 2, 2, 2)):
    keys = jax.random.split(key, 1 + 3 * len(ws))
    params = {"stem": _make_conv_bn(keys[0], 3, in_ch, stem_w), "stages": []}
    cin = stem_w
    ki = 1
    for cout, s in zip(ws, strides):
        bp = {"a": _make_conv_bn(keys[ki], 3, cin, cout),
              "b": _make_conv_bn(keys[ki + 1], 3, cout, cout)}
        if s != 1 or cin != cout:
            bp["proj"] = _make_conv_bn(keys[ki + 2], 1, cin, cout)
        ki += 3
        params["stages"].append(bp)
        cin = cout
    return params, strides


# --------------------------------------------------------------------------
# Lowering: fold BN into weights, build the static plan + constant tensors
# --------------------------------------------------------------------------
def _fold_conv(p):
    """Fold BN scale into the conv weight.
    Returns (W2 [Cout, k*k*Cin] bf16 with columns ordered (kh, kw, cin),
             bias [Cout, 1] f32)."""
    w = p["w"] * p["scale"][None, None, None, :]
    k, _, cin, cout = w.shape
    w2 = jnp.transpose(w, (3, 0, 1, 2)).reshape(cout, k * k * cin).astype(_MM_DTYPE)
    b = p["bias"].reshape(cout, 1).astype(jnp.float32)
    return w2, b


def build_backbone(params, strides, H, W, batch_block, width=8, height=8):
    """Flat list of kernel constants + static execution plan (per grid step,
    a step processes `batch_block` images folded into the lane axis)."""
    nb = batch_block
    consts = []
    flops = [0]

    def add(x):
        consts.append(x)
        return len(consts) - 1

    cache = {}

    def masks_idx(h, w, k):
        key = ("m", h, w, k)
        if key not in cache:
            cache[key] = add(_tap_masks(h, w, k, nb))
        return cache[key]

    def down_idx(h, w, s):
        key = ("d", h, w, s)
        if key not in cache:
            d, ho, wo = _downsample_mat(h, w, s, nb)
            cache[key] = (add(d), ho, wo)
        return cache[key]

    def gmat_idx(h, w, k, s):
        key = ("g", h, w, k, s)
        if key not in cache:
            g, ho, wo = _conv_gather_mats(h, w, k, s, (k - 1) // 2, nb)
            cache[key] = (add(g), ho, wo)
        return cache[key]

    def conv_entry(p, hin, win, s):
        k = p["w"].shape[0]
        cin = p["w"].shape[2]
        cout = p["w"].shape[3]
        w2, b = _fold_conv(p)
        l_in = nb * hin * win
        e = {"w": add(w2), "b": add(b), "k": k, "cout": cout,
             "mask": None, "down": None, "g": None, "offs": None}
        if k == 1:                                   # 1x1 (projection) conv
            e["mode"] = "one"
            ho, wo = hin, win
            if s != 1:
                e["down"], ho, wo = down_idx(hin, win, s)
                flops[0] += 2 * cin * l_in * nb * ho * wo
        elif l_in % 128 == 0:                        # roll-based im2col taps
            e["mode"] = "roll"
            e["offs"] = [(kh - k // 2) * win + (kw - k // 2)
                         for kh in range(k) for kw in range(k)]
            e["mask"] = masks_idx(hin, win, k)
            ho, wo = hin, win
            if s != 1:
                e["down"], ho, wo = down_idx(hin, win, s)
                flops[0] += 2 * k * k * cin * l_in * nb * ho * wo
        else:                                        # tiny low-res layers
            e["mode"] = "gather"
            e["g"], ho, wo = gmat_idx(hin, win, k, s)
            flops[0] += 2 * k * k * cin * l_in * nb * ho * wo
        flops[0] += 2 * cout * (k * k * cin) * nb * ho * wo
        return e, ho, wo

    plan = {"batch_block": nb, "out_hw": (width, height)}
    plan["stem"], h, w = conv_entry(params["stem"], H, W, 1)
    plan["stages"] = []
    feat_dims = []
    for bp, s in zip(params["stages"], strides):
        st = {}
        st["a"], ho, wo = conv_entry(bp["a"], h, w, s)
        st["b"], _, _ = conv_entry(bp["b"], ho, wo, 1)
        st["proj"] = None
        if "proj" in bp:
            st["proj"], _, _ = conv_entry(bp["proj"], h, w, s)
        plan["stages"].append(st)
        h, w = ho, wo
        feat_dims.append((st["b"]["cout"], h, w))

    # Multi-scale heads: nearest-resize of stage 2/3/4 features to
    # (width, height), returned reversed ([x4, x3, x2]) like the PyTorch module.
    outs = []
    for cout, fh, fw in feat_dims[1:]:
        outs.append({"p": add(_interp_nearest_mat(fh, fw, width, height, nb)),
                     "cout": cout})
        flops[0] += 2 * cout * (nb * fh * fw) * (nb * width * height)
    outs.reverse()
    plan["outs"] = outs
    plan["flops_per_step"] = flops[0]
    return consts, plan


# --------------------------------------------------------------------------
# The fused Pallas kernel: whole backbone for Nb batch elements per grid step
# --------------------------------------------------------------------------
def _make_backbone_kernel(plan, n_consts):
    def kernel(*refs):
        x_ref = refs[0]
        out_refs = refs[1 + n_consts:]

        def cref(i):
            return refs[1 + i]

        def downsample(col, e):
            if e["down"] is None:
                return col
            # one-hot selection -> exact, cast back to bf16 is exact too
            return jnp.dot(col, cref(e["down"])[...],
                           preferred_element_type=jnp.float32).astype(_MM_DTYPE)

        def conv(a, e, relu=True, res=None):
            """a: [Cin, L] activations. Conv+foldedBN (+res)(+relu) -> f32 [Cout, L_out]."""
            a = a.astype(_MM_DTYPE)                  # the single rounding per conv
            k2 = e["k"] * e["k"]
            if e["mode"] == "one":                   # 1x1 conv: im2col == input
                col = downsample(a, e)
            elif e["mode"] == "roll":
                # im2col via static lane shifts + {0,1} boundary masks
                # (batch is folded into the lane axis; masks kill any value
                #  that crosses an image/row boundary, reproducing zero-pad).
                taps = []
                for t, off in enumerate(e["offs"]):
                    if off == 0:
                        taps.append(a)
                    else:
                        mask = cref(e["mask"])[t:t + 1, :]        # [1, L]
                        taps.append(jnp.roll(a, -off, axis=1) * mask)
                col = downsample(jnp.concatenate(taps, axis=0), e)
            else:                                    # "gather": tiny layers
                g_ref = cref(e["g"])                 # [k2, L_in, L_out] one-hot
                taps = [jnp.dot(a, g_ref[t],
                                preferred_element_type=jnp.float32
                                ).astype(_MM_DTYPE) for t in range(k2)]
                col = jnp.concatenate(taps, axis=0)  # [k2*Cin, L_out]
            # One channel-mixing matmul with K = k2*Cin (BN scale pre-folded).
            y = jnp.dot(cref(e["w"])[...], col,
                        preferred_element_type=jnp.float32)       # [Cout, L_out]
            y = y + cref(e["b"])[...]                # bias [Cout, 1] broadcast
            if res is not None:
                y = y + res                          # residual before ReLU
            if relu:
                y = jnp.maximum(y, 0.0)
            return y

        x = x_ref[0]                                 # [Cin, Nb*H*W], bf16
        x = conv(x, plan["stem"])                    # stem
        feats = []
        for st in plan["stages"]:                    # s1..s4 (ResBasicBlock)
            skip = x if st["proj"] is None else conv(x, st["proj"], relu=False)
            h1 = conv(x, st["a"])
            x = conv(h1, st["b"], res=skip)
            feats.append(x)

        # Heads (already reversed: x4, x3, x2): nearest interp as one-hot matmul.
        # Output lane extent is Nb*width*height = 128 -> lane-dense stores.
        for o_ref, head, feat in zip(out_refs, plan["outs"], reversed(feats[1:])):
            o_ref[0] = jnp.dot(feat.astype(_MM_DTYPE), cref(head["p"])[...],
                               preferred_element_type=jnp.float32)

    return kernel


def backbone_nds_forward(consts, plan, x_nchw):
    """x_nchw: [N, Cin, H, W] -> list of NCHW features [x4, x3, x2]."""
    N, Cin, H, W = x_nchw.shape
    nb = plan["batch_block"]
    assert N % nb == 0, "batch must be divisible by the per-step batch block"
    G = N // nb
    S = H * W
    width, height = plan["out_hw"]
    owh = width * height

    kernel = _make_backbone_kernel(plan, len(consts))

    # Constants are VMEM-resident across the grid (constant index_maps; total
    # ~0.25 MiB, so default double-buffering is negligible -- at production
    # resolutions mark them pipeline_mode=pl.Buffered(1)).
    def _const_spec(arr):
        nd = arr.ndim
        return pl.BlockSpec(arr.shape, lambda g, _nd=nd: (0,) * _nd)

    in_specs = [pl.BlockSpec((1, Cin, nb * S), lambda g: (g, 0, 0))]
    in_specs += [_const_spec(c) for c in consts]
    out_specs = [pl.BlockSpec((1, o["cout"], nb * owh), lambda g: (g, 0, 0))
                 for o in plan["outs"]]
    out_shape = [jax.ShapeDtypeStruct((G, o["cout"], nb * owh), jnp.float32)
                 for o in plan["outs"]]

    # NCHW -> [G, Cin, nb*S]: each grid step sees nb images folded into the
    # lane axis (lane index = b_local*S + y*W + x).  Pre-cast to bf16 once.
    xg = x_nchw.reshape(G, nb, Cin, S).transpose(0, 2, 1, 3).reshape(G, Cin, nb * S)
    xg = xg.astype(_MM_DTYPE)

    const_bytes = sum(int(np.prod(c.shape)) * c.dtype.itemsize for c in consts)
    io_bytes = (int(np.prod(xg.shape)) * 2
                + sum(int(np.prod(s.shape)) * 4 for s in out_shape))
    cost = pl.CostEstimate(flops=int(plan["flops_per_step"]) * G,
                           transcendentals=0,
                           bytes_accessed=int(io_bytes + const_bytes))

    outs = pl.pallas_call(
        kernel,
        grid=(G,),                                   # batch-blocks: parallel axis
        in_specs=in_specs,
        out_specs=out_specs,
        out_shape=out_shape,
        compiler_params=pltpu.CompilerParams(dimension_semantics=("parallel",)),
        cost_estimate=cost,
    )(xg, *consts)

    # [G, Cout, nb*owh] -> [N, Cout, width, height]
    result = []
    for o in outs:
        cout = o.shape[1]
        r = o.reshape(G, cout, nb, owh).transpose(0, 2, 1, 3)
        result.append(r.reshape(N, cout, width, height))
    return result


# --------------------------------------------------------------------------
# Pure-JAX reference (same semantics, f32) for correctness validation
# --------------------------------------------------------------------------
def reference_forward(params, strides, x_nchw, width=8, height=8):
    def conv_bn(x, p, stride, relu=True, res=None):
        k = p["w"].shape[0]
        pad = (k - 1) // 2
        y = lax.conv_general_dilated(
            x, p["w"], (stride, stride), [(pad, pad), (pad, pad)],
            dimension_numbers=("NCHW", "HWIO", "NCHW"))
        y = y * p["scale"][None, :, None, None] + p["bias"][None, :, None, None]
        if res is not None:
            y = y + res
        if relu:
            y = jnp.maximum(y, 0.0)
        return y

    def interp(x, oh, ow):
        _, _, H, W = x.shape
        hi = (jnp.arange(oh) * H) // oh
        wi = (jnp.arange(ow) * W) // ow
        return x[:, :, hi][:, :, :, wi]

    x = conv_bn(x_nchw, params["stem"], 1)
    feats = []
    for bp, s in zip(params["stages"], strides):
        skip = x if "proj" not in bp else conv_bn(x, bp["proj"], s, relu=False)
        a = conv_bn(x, bp["a"], s)
        x = conv_bn(a, bp["b"], 1, res=skip)
        feats.append(x)
    xs = [interp(f, width, height) for f in feats[1:]]
    xs.reverse()
    return xs


if __name__ == "__main__":
    key = jax.random.PRNGKey(0)
    k_param, k_x = jax.random.split(key)
    params, strides = init_params(k_param)

    N, Cin, H, W = 2, 3, 16, 16
    x = jax.random.normal(k_x, (N, Cin, H, W), jnp.float32)   # PyTorch-style NCHW

    # Fold the whole (tiny) batch into one fat grid step: stem lanes = 512,
    # head-output lanes = 128 (lane-dense).  For large N choose batch_block so
    # the grid length is a multiple of the TensorCore count (2 on v7x).
    consts, plan = build_backbone(params, strides, H, W, batch_block=2,
                                  width=8, height=8)

    fwd = jax.jit(lambda xx, cc: backbone_nds_forward(cc, plan, xx))
    outs = fwd(x, consts)
    outs = [jax.block_until_ready(o) for o in outs]

    expected = [(N, 16, 8, 8), (N, 16, 8, 8), (N, 8, 8, 8)]
    assert [tuple(o.shape) for o in outs] == expected, \
        f"unexpected shapes: {[o.shape for o in outs]}"
    assert all(bool(jnp.all(jnp.isfinite(o))) for o in outs)

    # Validate against a pure-JAX f32 reference (kernel uses bf16 MXU operands).
    refs = reference_forward(params, strides, x, 8, 8)
    for o, r in zip(outs, refs):
        np.testing.assert_allclose(np.asarray(o), np.asarray(r),
                                   rtol=0.1, atol=0.05)

    print("KERNEL_OK")
</pallas_src>

<mosaic_0001>
module attributes {stable_mosaic.version = 11 : i64} {
  func.func @kernel(%arg0: i32, %arg1: memref<1x3x512xbf16, #tpu.memory_space<vmem>>, %arg2: memref<8x27xbf16, #tpu.memory_space<vmem>>, %arg3: memref<8x1xf32, #tpu.memory_space<vmem>>, %arg4: memref<9x512xbf16, #tpu.memory_space<vmem>>, %arg5: memref<8x72xbf16, #tpu.memory_space<vmem>>, %arg6: memref<8x1xf32, #tpu.memory_space<vmem>>, %arg7: memref<8x72xbf16, #tpu.memory_space<vmem>>, %arg8: memref<8x1xf32, #tpu.memory_space<vmem>>, %arg9: memref<8x72xbf16, #tpu.memory_space<vmem>>, %arg10: memref<8x1xf32, #tpu.memory_space<vmem>>, %arg11: memref<512x128xbf16, #tpu.memory_space<vmem>>, %arg12: memref<8x72xbf16, #tpu.memory_space<vmem>>, %arg13: memref<8x1xf32, #tpu.memory_space<vmem>>, %arg14: memref<9x128xbf16, #tpu.memory_space<vmem>>, %arg15: memref<8x8xbf16, #tpu.memory_space<vmem>>, %arg16: memref<8x1xf32, #tpu.memory_space<vmem>>, %arg17: memref<16x72xbf16, #tpu.memory_space<vmem>>, %arg18: memref<16x1xf32, #tpu.memory_space<vmem>>, %arg19: memref<128x32xbf16, #tpu.memory_space<vmem>>, %arg20: memref<16x144xbf16, #tpu.memory_space<vmem>>, %arg21: memref<16x1xf32, #tpu.memory_space<vmem>>, %arg22: memref<9x32x32xbf16, #tpu.memory_space<vmem>>, %arg23: memref<16x8xbf16, #tpu.memory_space<vmem>>, %arg24: memref<16x1xf32, #tpu.memory_space<vmem>>, %arg25: memref<16x144xbf16, #tpu.memory_space<vmem>>, %arg26: memref<16x1xf32, #tpu.memory_space<vmem>>, %arg27: memref<9x32x8xbf16, #tpu.memory_space<vmem>>, %arg28: memref<16x144xbf16, #tpu.memory_space<vmem>>, %arg29: memref<16x1xf32, #tpu.memory_space<vmem>>, %arg30: memref<9x8x8xbf16, #tpu.memory_space<vmem>>, %arg31: memref<16x16xbf16, #tpu.memory_space<vmem>>, %arg32: memref<16x1xf32, #tpu.memory_space<vmem>>, %arg33: memref<32x8xbf16, #tpu.memory_space<vmem>>, %arg34: memref<128x128xbf16, #tpu.memory_space<vmem>>, %arg35: memref<32x128xbf16, #tpu.memory_space<vmem>>, %arg36: memref<8x128xbf16, #tpu.memory_space<vmem>>, %arg37: memref<1x16x128xf32, #tpu.memory_space<vmem>>, %arg38: memref<1x16x128xf32, #tpu.memory_space<vmem>>, %arg39: memref<1x8x128xf32, #tpu.memory_space<vmem>>) attributes {dimension_semantics = [#tpu.dimension_semantics<parallel>], iteration_bounds = array<i64: 1>, scalar_prefetch = 0 : i64, scratch_operands = 0 : i64, tpu.core_type = #tpu.core_type<tc>, window_params = [{transform_indices = @transform_0, window_bounds = array<i64: 1, 3, 512>}, {pipeline_mode = #tpu.pipeline_mode<synchronous>, transform_indices = @transform_1, window_bounds = array<i64: 8, 27>}, {pipeline_mode = #tpu.pipeline_mode<synchronous>, transform_indices = @transform_2, window_bounds = array<i64: 8, 1>}, {pipeline_mode = #tpu.pipeline_mode<synchronous>, transform_indices = @transform_3, window_bounds = array<i64: 9, 512>}, {pipeline_mode = #tpu.pipeline_mode<synchronous>, transform_indices = @transform_4, window_bounds = array<i64: 8, 72>}, {pipeline_mode = #tpu.pipeline_mode<synchronous>, transform_indices = @transform_5, window_bounds = array<i64: 8, 1>}, {pipeline_mode = #tpu.pipeline_mode<synchronous>, transform_indices = @transform_6, window_bounds = array<i64: 8, 72>}, {pipeline_mode = #tpu.pipeline_mode<synchronous>, transform_indices = @transform_7, window_bounds = array<i64: 8, 1>}, {pipeline_mode = #tpu.pipeline_mode<synchronous>, transform_indices = @transform_8, window_bounds = array<i64: 8, 72>}, {pipeline_mode = #tpu.pipeline_mode<synchronous>, transform_indices = @transform_9, window_bounds = array<i64: 8, 1>}, {pipeline_mode = #tpu.pipeline_mode<synchronous>, transform_indices = @transform_10, window_bounds = array<i64: 512, 128>}, {pipeline_mode = #tpu.pipeline_mode<synchronous>, transform_indices = @transform_11, window_bounds = array<i64: 8, 72>}, {pipeline_mode = #tpu.pipeline_mode<synchronous>, transform_indices = @transform_12, window_bounds = array<i64: 8, 1>}, {pipeline_mode = #tpu.pipeline_mode<synchronous>, transform_indices = @transform_13, window_bounds = array<i64: 9, 128>}, {pipeline_mode = #tpu.pipeline_mode<synchronous>, transform_indices = @transform_14, window_bounds = array<i64: 8, 8>}, {pipeline_mode = #tpu.pipeline_mode<synchronous>, transform_indices = @transform_15, window_bounds = array<i64: 8, 1>}, {pipeline_mode = #tpu.pipeline_mode<synchronous>, transform_indices = @transform_16, window_bounds = array<i64: 16, 72>}, {pipeline_mode = #tpu.pipeline_mode<synchronous>, transform_indices = @transform_17, window_bounds = array<i64: 16, 1>}, {pipeline_mode = #tpu.pipeline_mode<synchronous>, transform_indices = @transform_18, window_bounds = array<i64: 128, 32>}, {pipeline_mode = #tpu.pipeline_mode<synchronous>, transform_indices = @transform_19, window_bounds = array<i64: 16, 144>}, {pipeline_mode = #tpu.pipeline_mode<synchronous>, transform_indices = @transform_20, window_bounds = array<i64: 16, 1>}, {pipeline_mode = #tpu.pipeline_mode<synchronous>, transform_indices = @transform_21, window_bounds = array<i64: 9, 32, 32>}, {pipeline_mode = #tpu.pipeline_mode<synchronous>, transform_indices = @transform_22, window_bounds = array<i64: 16, 8>}, {pipeline_mode = #tpu.pipeline_mode<synchronous>, transform_indices = @transform_23, window_bounds = array<i64: 16, 1>}, {pipeline_mode = #tpu.pipeline_mode<synchronous>, transform_indices = @transform_24, window_bounds = array<i64: 16, 144>}, {pipeline_mode = #tpu.pipeline_mode<synchronous>, transform_indices = @transform_25, window_bounds = array<i64: 16, 1>}, {pipeline_mode = #tpu.pipeline_mode<synchronous>, transform_indices = @transform_26, window_bounds = array<i64: 9, 32, 8>}, {pipeline_mode = #tpu.pipeline_mode<synchronous>, transform_indices = @transform_27, window_bounds = array<i64: 16, 144>}, {pipeline_mode = #tpu.pipeline_mode<synchronous>, transform_indices = @transform_28, window_bounds = array<i64: 16, 1>}, {pipeline_mode = #tpu.pipeline_mode<synchronous>, transform_indices = @transform_29, window_bounds = array<i64: 9, 8, 8>}, {pipeline_mode = #tpu.pipeline_mode<synchronous>, transform_indices = @transform_30, window_bounds = array<i64: 16, 16>}, {pipeline_mode = #tpu.pipeline_mode<synchronous>, transform_indices = @transform_31, window_bounds = array<i64: 16, 1>}, {pipeline_mode = #tpu.pipeline_mode<synchronous>, transform_indices = @transform_32, window_bounds = array<i64: 32, 8>}, {pipeline_mode = #tpu.pipeline_mode<synchronous>, transform_indices = @transform_33, window_bounds = array<i64: 128, 128>}, {pipeline_mode = #tpu.pipeline_mode<synchronous>, transform_indices = @transform_34, window_bounds = array<i64: 32, 128>}, {pipeline_mode = #tpu.pipeline_mode<synchronous>, transform_indices = @transform_35, window_bounds = array<i64: 8, 128>}, {transform_indices = @transform_36, window_bounds = array<i64: 1, 16, 128>}, {transform_indices = @transform_37, window_bounds = array<i64: 1, 16, 128>}, {transform_indices = @transform_38, window_bounds = array<i64: 1, 8, 128>}]} {
    %c0 = arith.constant 0 : index
    %c0_0 = arith.constant 0 : index
    %c0_1 = arith.constant 0 : index
    %0 = vector.load %arg1[%c0, %c0_0, %c0_1] : memref<1x3x512xbf16, #tpu.memory_space<vmem>>, vector<1x3x512xbf16>
    %1 = vector.shape_cast %0 : vector<1x3x512xbf16> to vector<3x512xbf16>
    %c0_2 = arith.constant 0 : index
    %c0_3 = arith.constant 0 : index
    %2 = vector.load %arg4[%c0_2, %c0_3] : memref<9x512xbf16, #tpu.memory_space<vmem>>, vector<1x512xbf16>
    %3 = vector.extract_strided_slice %1 {offsets = [0, 495], sizes = [3, 17], strides = [1, 1]} : vector<3x512xbf16> to vector<3x17xbf16>
    %4 = vector.extract_strided_slice %1 {offsets = [0, 0], sizes = [3, 495], strides = [1, 1]} : vector<3x512xbf16> to vector<3x495xbf16>
    %5 = tpu.concatenate %3, %4 in 1 : vector<3x17xbf16>, vector<3x495xbf16> -> vector<3x512xbf16>
    %6 = vector.broadcast %2 : vector<1x512xbf16> to vector<3x512xbf16>
    %7 = arith.mulf %5, %6 : vector<3x512xbf16>
    %c1 = arith.constant 1 : index
    %c0_4 = arith.constant 0 : index
    %8 = vector.load %arg4[%c1, %c0_4] : memref<9x512xbf16, #tpu.memory_space<vmem>>, vector<1x512xbf16>
    %9 = vector.extract_strided_slice %1 {offsets = [0, 496], sizes = [3, 16], strides = [1, 1]} : vector<3x512xbf16> to vector<3x16xbf16>
    %10 = vector.extract_strided_slice %1 {offsets = [0, 0], sizes = [3, 496], strides = [1, 1]} : vector<3x512xbf16> to vector<3x496xbf16>
    %11 = tpu.concatenate %9, %10 in 1 : vector<3x16xbf16>, vector<3x496xbf16> -> vector<3x512xbf16>
    %12 = vector.broadcast %8 : vector<1x512xbf16> to vector<3x512xbf16>
    %13 = arith.mulf %11, %12 : vector<3x512xbf16>
    %c2 = arith.constant 2 : index
    %c0_5 = arith.constant 0 : index
    %14 = vector.load %arg4[%c2, %c0_5] : memref<9x512xbf16, #tpu.memory_space<vmem>>, vector<1x512xbf16>
    %15 = vector.extract_strided_slice %1 {offsets = [0, 497], sizes = [3, 15], strides = [1, 1]} : vector<3x512xbf16> to vector<3x15xbf16>
    %16 = vector.extract_strided_slice %1 {offsets = [0, 0], sizes = [3, 497], strides = [1, 1]} : vector<3x512xbf16> to vector<3x497xbf16>
    %17 = tpu.concatenate %15, %16 in 1 : vector<3x15xbf16>, vector<3x497xbf16> -> vector<3x512xbf16>
    %18 = vector.broadcast %14 : vector<1x512xbf16> to vector<3x512xbf16>
    %19 = arith.mulf %17, %18 : vector<3x512xbf16>
    %c3 = arith.constant 3 : index
    %c0_6 = arith.constant 0 : index
    %20 = vector.load %arg4[%c3, %c0_6] : memref<9x512xbf16, #tpu.memory_space<vmem>>, vector<1x512xbf16>
    %21 = vector.extract_strided_slice %1 {offsets = [0, 511], sizes = [3, 1], strides = [1, 1]} : vector<3x512xbf16> to vector<3x1xbf16>
    %22 = vector.extract_strided_slice %1 {offsets = [0, 0], sizes = [3, 511], strides = [1, 1]} : vector<3x512xbf16> to vector<3x511xbf16>
    %23 = tpu.concatenate %21, %22 in 1 : vector<3x1xbf16>, vector<3x511xbf16> -> vector<3x512xbf16>
    %24 = vector.broadcast %20 : vector<1x512xbf16> to vector<3x512xbf16>
    %25 = arith.mulf %23, %24 : vector<3x512xbf16>
    %c5 = arith.constant 5 : index
    %c0_7 = arith.constant 0 : index
    %26 = vector.load %arg4[%c5, %c0_7] : memref<9x512xbf16, #tpu.memory_space<vmem>>, vector<1x512xbf16>
    %27 = vector.extract_strided_slice %1 {offsets = [0, 1], sizes = [3, 511], strides = [1, 1]} : vector<3x512xbf16> to vector<3x511xbf16>
    %28 = vector.extract_strided_slice %1 {offsets = [0, 0], sizes = [3, 1], strides = [1, 1]} : vector<3x512xbf16> to vector<3x1xbf16>
    %29 = tpu.concatenate %27, %28 in 1 : vector<3x511xbf16>, vector<3x1xbf16> -> vector<3x512xbf16>
    %30 = vector.broadcast %26 : vector<1x512xbf16> to vector<3x512xbf16>
    %31 = arith.mulf %29, %30 : vector<3x512xbf16>
    %c6 = arith.constant 6 : index
    %c0_8 = arith.constant 0 : index
    %32 = vector.load %arg4[%c6, %c0_8] : memref<9x512xbf16, #tpu.memory_space<vmem>>, vector<1x512xbf16>
    %33 = vector.extract_strided_slice %1 {offsets = [0, 15], sizes = [3, 497], strides = [1, 1]} : vector<3x512xbf16> to vector<3x497xbf16>
    %34 = vector.extract_strided_slice %1 {offsets = [0, 0], sizes = [3, 15], strides = [1, 1]} : vector<3x512xbf16> to vector<3x15xbf16>
    %35 = tpu.concatenate %33, %34 in 1 : vector<3x497xbf16>, vector<3x15xbf16> -> vector<3x512xbf16>
    %36 = vector.broadcast %32 : vector<1x512xbf16> to vector<3x512xbf16>
    %37 = arith.mulf %35, %36 : vector<3x512xbf16>
    %c7 = arith.constant 7 : index
    %c0_9 = arith.constant 0 : index
    %38 = vector.load %arg4[%c7, %c0_9] : memref<9x512xbf16, #tpu.memory_space<vmem>>, vector<1x512xbf16>
    %39 = vector.extract_strided_slice %1 {offsets = [0, 16], sizes = [3, 496], strides = [1, 1]} : vector<3x512xbf16> to vector<3x496xbf16>
    %40 = vector.extract_strided_slice %1 {offsets = [0, 0], sizes = [3, 16], strides = [1, 1]} : vector<3x512xbf16> to vector<3x16xbf16>
    %41 = tpu.concatenate %39, %40 in 1 : vector<3x496xbf16>, vector<3x16xbf16> -> vector<3x512xbf16>
    %42 = vector.broadcast %38 : vector<1x512xbf16> to vector<3x512xbf16>
    %43 = arith.mulf %41, %42 : vector<3x512xbf16>
    %c8 = arith.constant 8 : index
    %c0_10 = arith.constant 0 : index
    %44 = vector.load %arg4[%c8, %c0_10] : memref<9x512xbf16, #tpu.memory_space<vmem>>, vector<1x512xbf16>
    %45 = vector.extract_strided_slice %1 {offsets = [0, 17], sizes = [3, 495], strides = [1, 1]} : vector<3x512xbf16> to vector<3x495xbf16>
    %46 = vector.extract_strided_slice %1 {offsets = [0, 0], sizes = [3, 17], strides = [1, 1]} : vector<3x512xbf16> to vector<3x17xbf16>
    %47 = tpu.concatenate %45, %46 in 1 : vector<3x495xbf16>, vector<3x17xbf16> -> vector<3x512xbf16>
    %48 = vector.broadcast %44 : vector<1x512xbf16> to vector<3x512xbf16>
    %49 = arith.mulf %47, %48 : vector<3x512xbf16>
    %50 = tpu.concatenate %7, %13, %19, %25, %1, %31, %37, %43, %49 in 0 : vector<3x512xbf16>, vector<3x512xbf16>, vector<3x512xbf16>, vector<3x512xbf16>, vector<3x512xbf16>, vector<3x512xbf16>, vector<3x512xbf16>, vector<3x512xbf16>, vector<3x512xbf16> -> vector<27x512xbf16>
    %c0_11 = arith.constant 0 : index
    %c0_12 = arith.constant 0 : index
    %51 = vector.load %arg2[%c0_11, %c0_12] : memref<8x27xbf16, #tpu.memory_space<vmem>>, vector<8x27xbf16>
    %cst = arith.constant dense<0.000000e+00> : vector<8x512xf32>
    %52 = tpu.matmul %51, %50, %cst {dimension_numbers = #tpu.dot_dimension_numbers<[1], [0], [0], [1], [0, 0, 1, 1], [], []>} : vector<8x27xbf16>, vector<27x512xbf16>, vector<8x512xf32> -> vector<8x512xf32>
    %c0_13 = arith.constant 0 : index
    %c0_14 = arith.constant 0 : index
    %53 = vector.load %arg3[%c0_13, %c0_14] : memref<8x1xf32, #tpu.memory_space<vmem>>, vector<8x1xf32>
    %54 = vector.broadcast %53 : vector<8x1xf32> to vector<8x512xf32>
    %55 = arith.addf %52, %54 : vector<8x512xf32>
    %cst_15 = arith.constant 0.000000e+00 : f32
    %56 = vector.broadcast %cst_15 : f32 to vector<8x512xf32>
    %57 = arith.maximumf %55, %56 : vector<8x512xf32>
    %58 = arith.truncf %57 : vector<8x512xf32> to vector<8x512xbf16>
    %c0_16 = arith.constant 0 : index
    %c0_17 = arith.constant 0 : index
    %59 = vector.load %arg4[%c0_16, %c0_17] : memref<9x512xbf16, #tpu.memory_space<vmem>>, vector<1x512xbf16>
    %60 = vector.extract_strided_slice %58 {offsets = [0, 495], sizes = [8, 17], strides = [1, 1]} : vector<8x512xbf16> to vector<8x17xbf16>
    %61 = vector.extract_strided_slice %58 {offsets = [0, 0], sizes = [8, 495], strides = [1, 1]} : vector<8x512xbf16> to vector<8x495xbf16>
    %62 = tpu.concatenate %60, %61 in 1 : vector<8x17xbf16>, vector<8x495xbf16> -> vector<8x512xbf16>
    %63 = vector.broadcast %59 : vector<1x512xbf16> to vector<8x512xbf16>
    %64 = arith.mulf %62, %63 : vector<8x512xbf16>
    %c1_18 = arith.constant 1 : index
    %c0_19 = arith.constant 0 : index
    %65 = vector.load %arg4[%c1_18, %c0_19] : memref<9x512xbf16, #tpu.memory_space<vmem>>, vector<1x512xbf16>
    %66 = vector.extract_strided_slice %58 {offsets = [0, 496], sizes = [8, 16], strides = [1, 1]} : vector<8x512xbf16> to vector<8x16xbf16>
    %67 = vector.extract_strided_slice %58 {offsets = [0, 0], sizes = [8, 496], strides = [1, 1]} : vector<8x512xbf16> to vector<8x496xbf16>
    %68 = tpu.concatenate %66, %67 in 1 : vector<8x16xbf16>, vector<8x496xbf16> -> vector<8x512xbf16>
    %69 = vector.broadcast %65 : vector<1x512xbf16> to vector<8x512xbf16>
    %70 = arith.mulf %68, %69 : vector<8x512xbf16>
    %c2_20 = arith.constant 2 : index
    %c0_21 = arith.constant 0 : index
    %71 = vector.load %arg4[%c2_20, %c0_21] : memref<9x512xbf16, #tpu.memory_space<vmem>>, vector<1x512xbf16>
    %72 = vector.extract_strided_slice %58 {offsets = [0, 497], sizes = [8, 15], strides = [1, 1]} : vector<8x512xbf16> to vector<8x15xbf16>
    %73 = vector.extract_strided_slice %58 {offsets = [0, 0], sizes = [8, 497], strides = [1, 1]} : vector<8x512xbf16> to vector<8x497xbf16>
    %74 = tpu.concatenate %72, %73 in 1 : vector<8x15xbf16>, vector<8x497xbf16> -> vector<8x512xbf16>
    %75 = vector.broadcast %71 : vector<1x512xbf16> to vector<8x512xbf16>
    %76 = arith.mulf %74, %75 : vector<8x512xbf16>
    %c3_22 = arith.constant 3 : index
    %c0_23 = arith.constant 0 : index
    %77 = vector.load %arg4[%c3_22, %c0_23] : memref<9x512xbf16, #tpu.memory_space<vmem>>, vector<1x512xbf16>
    %78 = vector.extract_strided_slice %58 {offsets = [0, 511], sizes = [8, 1], strides = [1, 1]} : vector<8x512xbf16> to vector<8x1xbf16>
    %79 = vector.extract_strided_slice %58 {offsets = [0, 0], sizes = [8, 511], strides = [1, 1]} : vector<8x512xbf16> to vector<8x511xbf16>
    %80 = tpu.concatenate %78, %79 in 1 : vector<8x1xbf16>, vector<8x511xbf16> -> vector<8x512xbf16>
    %81 = vector.broadcast %77 : vector<1x512xbf16> to vector<8x512xbf16>
    %82 = arith.mulf %80, %81 : vector<8x512xbf16>
    %c5_24 = arith.constant 5 : index
    %c0_25 = arith.constant 0 : index
    %83 = vector.load %arg4[%c5_24, %c0_25] : memref<9x512xbf16, #tpu.memory_space<vmem>>, vector<1x512xbf16>
    %84 = vector.extract_strided_slice %58 {offsets = [0, 1], sizes = [8, 511], strides = [1, 1]} : vector<8x512xbf16> to vector<8x511xbf16>
    %85 = vector.extract_strided_slice %58 {offsets = [0, 0], sizes = [8, 1], strides = [1, 1]} : vector<8x512xbf16> to vector<8x1xbf16>
    %86 = tpu.concatenate %84, %85 in 1 : vector<8x511xbf16>, vector<8x1xbf16> -> vector<8x512xbf16>
    %87 = vector.broadcast %83 : vector<1x512xbf16> to vector<8x512xbf16>
    %88 = arith.mulf %86, %87 : vector<8x512xbf16>
    %c6_26 = arith.constant 6 : index
    %c0_27 = arith.constant 0 : index
    %89 = vector.load %arg4[%c6_26, %c0_27] : memref<9x512xbf16, #tpu.memory_space<vmem>>, vector<1x512xbf16>
    %90 = vector.extract_strided_slice %58 {offsets = [0, 15], sizes = [8, 497], strides = [1, 1]} : vector<8x512xbf16> to vector<8x497xbf16>
    %91 = vector.extract_strided_slice %58 {offsets = [0, 0], sizes = [8, 15], strides = [1, 1]} : vector<8x512xbf16> to vector<8x15xbf16>
    %92 = tpu.concatenate %90, %91 in 1 : vector<8x497xbf16>, vector<8x15xbf16> -> vector<8x512xbf16>
    %93 = vector.broadcast %89 : vector<1x512xbf16> to vector<8x512xbf16>
    %94 = arith.mulf %92, %93 : vector<8x512xbf16>
    %c7_28 = arith.constant 7 : index
    %c0_29 = arith.constant 0 : index
    %95 = vector.load %arg4[%c7_28, %c0_29] : memref<9x512xbf16, #tpu.memory_space<vmem>>, vector<1x512xbf16>
    %96 = vector.extract_strided_slice %58 {offsets = [0, 16], sizes = [8, 496], strides = [1, 1]} : vector<8x512xbf16> to vector<8x496xbf16>
    %97 = vector.extract_strided_slice %58 {offsets = [0, 0], sizes = [8, 16], strides = [1, 1]} : vector<8x512xbf16> to vector<8x16xbf16>
    %98 = tpu.concatenate %96, %97 in 1 : vector<8x496xbf16>, vector<8x16xbf16> -> vector<8x512xbf16>
    %99 = vector.broadcast %95 : vector<1x512xbf16> to vector<8x512xbf16>
    %100 = arith.mulf %98, %99 : vector<8x512xbf16>
    %c8_30 = arith.constant 8 : index
    %c0_31 = arith.constant 0 : index
    %101 = vector.load %arg4[%c8_30, %c0_31] : memref<9x512xbf16, #tpu.memory_space<vmem>>, vector<1x512xbf16>
    %102 = vector.extract_strided_slice %58 {offsets = [0, 17], sizes = [8, 495], strides = [1, 1]} : vector<8x512xbf16> to vector<8x495xbf16>
    %103 = vector.extract_strided_slice %58 {offsets = [0, 0], sizes = [8, 17], strides = [1, 1]} : vector<8x512xbf16> to vector<8x17xbf16>
    %104 = tpu.concatenate %102, %103 in 1 : vector<8x495xbf16>, vector<8x17xbf16> -> vector<8x512xbf16>
    %105 = vector.broadcast %101 : vector<1x512xbf16> to vector<8x512xbf16>
    %106 = arith.mulf %104, %105 : vector<8x512xbf16>
    %107 = tpu.concatenate %64, %70, %76, %82, %58, %88, %94, %100, %106 in 0 : vector<8x512xbf16>, vector<8x512xbf16>, vector<8x512xbf16>, vector<8x512xbf16>, vector<8x512xbf16>, vector<8x512xbf16>, vector<8x512xbf16>, vector<8x512xbf16>, vector<8x512xbf16> -> vector<72x512xbf16>
    %c0_32 = arith.constant 0 : index
    %c0_33 = arith.constant 0 : index
    %108 = vector.load %arg5[%c0_32, %c0_33] : memref<8x72xbf16, #tpu.memory_space<vmem>>, vector<8x72xbf16>
    %cst_34 = arith.constant dense<0.000000e+00> : vector<8x512xf32>
    %109 = tpu.matmul %108, %107, %cst_34 {dimension_numbers = #tpu.dot_dimension_numbers<[1], [0], [0], [1], [0, 0, 1, 1], [], []>} : vector<8x72xbf16>, vector<72x512xbf16>, vector<8x512xf32> -> vector<8x512xf32>
    %c0_35 = arith.constant 0 : index
    %c0_36 = arith.constant 0 : index
    %110 = vector.load %arg6[%c0_35, %c0_36] : memref<8x1xf32, #tpu.memory_space<vmem>>, vector<8x1xf32>
    %111 = vector.broadcast %110 : vector<8x1xf32> to vector<8x512xf32>
    %112 = arith.addf %109, %111 : vector<8x512xf32>
    %cst_37 = arith.constant 0.000000e+00 : f32
    %113 = vector.broadcast %cst_37 : f32 to vector<8x512xf32>
    %114 = arith.maximumf %112, %113 : vector<8x512xf32>
    %115 = arith.truncf %114 : vector<8x512xf32> to vector<8x512xbf16>
    %c0_38 = arith.constant 0 : index
    %c0_39 = arith.constant 0 : index
    %116 = vector.load %arg4[%c0_38, %c0_39] : memref<9x512xbf16, #tpu.memory_space<vmem>>, vector<1x512xbf16>
    %117 = vector.extract_strided_slice %115 {offsets = [0, 495], sizes = [8, 17], strides = [1, 1]} : vector<8x512xbf16> to vector<8x17xbf16>
    %118 = vector.extract_strided_slice %115 {offsets = [0, 0], sizes = [8, 495], strides = [1, 1]} : vector<8x512xbf16> to vector<8x495xbf16>
    %119 = tpu.concatenate %117, %118 in 1 : vector<8x17xbf16>, vector<8x495xbf16> -> vector<8x512xbf16>
    %120 = vector.broadcast %116 : vector<1x512xbf16> to vector<8x512xbf16>
    %121 = arith.mulf %119, %120 : vector<8x512xbf16>
    %c1_40 = arith.constant 1 : index
    %c0_41 = arith.constant 0 : index
    %122 = vector.load %arg4[%c1_40, %c0_41] : memref<9x512xbf16, #tpu.memory_space<vmem>>, vector<1x512xbf16>
    %123 = vector.extract_strided_slice %115 {offsets = [0, 496], sizes = [8, 16], strides = [1, 1]} : vector<8x512xbf16> to vector<8x16xbf16>
    %124 = vector.extract_strided_slice %115 {offsets = [0, 0], sizes = [8, 496], strides = [1, 1]} : vector<8x512xbf16> to vector<8x496xbf16>
    %125 = tpu.concatenate %123, %124 in 1 : vector<8x16xbf16>, vector<8x496xbf16> -> vector<8x512xbf16>
    %126 = vector.broadcast %122 : vector<1x512xbf16> to vector<8x512xbf16>
    %127 = arith.mulf %125, %126 : vector<8x512xbf16>
    %c2_42 = arith.constant 2 : index
    %c0_43 = arith.constant 0 : index
    %128 = vector.load %arg4[%c2_42, %c0_43] : memref<9x512xbf16, #tpu.memory_space<vmem>>, vector<1x512xbf16>
    %129 = vector.extract_strided_slice %115 {offsets = [0, 497], sizes = [8, 15], strides = [1, 1]} : vector<8x512xbf16> to vector<8x15xbf16>
    %130 = vector.extract_strided_slice %115 {offsets = [0, 0], sizes = [8, 497], strides = [1, 1]} : vector<8x512xbf16> to vector<8x497xbf16>
    %131 = tpu.concatenate %129, %130 in 1 : vector<8x15xbf16>, vector<8x497xbf16> -> vector<8x512xbf16>
    %132 = vector.broadcast %128 : vector<1x512xbf16> to vector<8x512xbf16>
    %133 = arith.mulf %131, %132 : vector<8x512xbf16>
    %c3_44 = arith.constant 3 : index
    %c0_45 = arith.constant 0 : index
    %134 = vector.load %arg4[%c3_44, %c0_45] : memref<9x512xbf16, #tpu.memory_space<vmem>>, vector<1x512xbf16>
    %135 = vector.extract_strided_slice %115 {offsets = [0, 511], sizes = [8, 1], strides = [1, 1]} : vector<8x512xbf16> to vector<8x1xbf16>
    %136 = vector.extract_strided_slice %115 {offsets = [0, 0], sizes = [8, 511], strides = [1, 1]} : vector<8x512xbf16> to vector<8x511xbf16>
    %137 = tpu.concatenate %135, %136 in 1 : vector<8x1xbf16>, vector<8x511xbf16> -> vector<8x512xbf16>
    %138 = vector.broadcast %134 : vector<1x512xbf16> to vector<8x512xbf16>
    %139 = arith.mulf %137, %138 : vector<8x512xbf16>
    %c5_46 = arith.constant 5 : index
    %c0_47 = arith.constant 0 : index
    %140 = vector.load %arg4[%c5_46, %c0_47] : memref<9x512xbf16, #tpu.memory_space<vmem>>, vector<1x512xbf16>
    %141 = vector.extract_strided_slice %115 {offsets = [0, 1], sizes = [8, 511], strides = [1, 1]} : vector<8x512xbf16> to vector<8x511xbf16>
    %142 = vector.extract_strided_slice %115 {offsets = [0, 0], sizes = [8, 1], strides = [1, 1]} : vector<8x512xbf16> to vector<8x1xbf16>
    %143 = tpu.concatenate %141, %142 in 1 : vector<8x511xbf16>, vector<8x1xbf16> -> vector<8x512xbf16>
    %144 = vector.broadcast %140 : vector<1x512xbf16> to vector<8x512xbf16>
    %145 = arith.mulf %143, %144 : vector<8x512xbf16>
    %c6_48 = arith.constant 6 : index
    %c0_49 = arith.constant 0 : index
    %146 = vector.load %arg4[%c6_48, %c0_49] : memref<9x512xbf16, #tpu.memory_space<vmem>>, vector<1x512xbf16>
    %147 = vector.extract_strided_slice %115 {offsets = [0, 15], sizes = [8, 497], strides = [1, 1]} : vector<8x512xbf16> to vector<8x497xbf16>
    %148 = vector.extract_strided_slice %115 {offsets = [0, 0], sizes = [8, 15], strides = [1, 1]} : vector<8x512xbf16> to vector<8x15xbf16>
    %149 = tpu.concatenate %147, %148 in 1 : vector<8x497xbf16>, vector<8x15xbf16> -> vector<8x512xbf16>
    %150 = vector.broadcast %146 : vector<1x512xbf16> to vector<8x512xbf16>
    %151 = arith.mulf %149, %150 : vector<8x512xbf16>
    %c7_50 = arith.constant 7 : index
    %c0_51 = arith.constant 0 : index
    %152 = vector.load %arg4[%c7_50, %c0_51] : memref<9x512xbf16, #tpu.memory_space<vmem>>, vector<1x512xbf16>
    %153 = vector.extract_strided_slice %115 {offsets = [0, 16], sizes = [8, 496], strides = [1, 1]} : vector<8x512xbf16> to vector<8x496xbf16>
    %154 = vector.extract_strided_slice %115 {offsets = [0, 0], sizes = [8, 16], strides = [1, 1]} : vector<8x512xbf16> to vector<8x16xbf16>
    %155 = tpu.concatenate %153, %154 in 1 : vector<8x496xbf16>, vector<8x16xbf16> -> vector<8x512xbf16>
    %156 = vector.broadcast %152 : vector<1x512xbf16> to vector<8x512xbf16>
    %157 = arith.mulf %155, %156 : vector<8x512xbf16>
    %c8_52 = arith.constant 8 : index
    %c0_53 = arith.constant 0 : index
    %158 = vector.load %arg4[%c8_52, %c0_53] : memref<9x512xbf16, #tpu.memory_space<vmem>>, vector<1x512xbf16>
    %159 = vector.extract_strided_slice %115 {offsets = [0, 17], sizes = [8, 495], strides = [1, 1]} : vector<8x512xbf16> to vector<8x495xbf16>
    %160 = vector.extract_strided_slice %115 {offsets = [0, 0], sizes = [8, 17], strides = [1, 1]} : vector<8x512xbf16> to vector<8x17xbf16>
    %161 = tpu.concatenate %159, %160 in 1 : vector<8x495xbf16>, vector<8x17xbf16> -> vector<8x512xbf16>
    %162 = vector.broadcast %158 : vector<1x512xbf16> to vector<8x512xbf16>
    %163 = arith.mulf %161, %162 : vector<8x512xbf16>
    %164 = tpu.concatenate %121, %127, %133, %139, %115, %145, %151, %157, %163 in 0 : vector<8x512xbf16>, vector<8x512xbf16>, vector<8x512xbf16>, vector<8x512xbf16>, vector<8x512xbf16>, vector<8x512xbf16>, vector<8x512xbf16>, vector<8x512xbf16>, vector<8x512xbf16> -> vector<72x512xbf16>
    %c0_54 = arith.constant 0 : index
    %c0_55 = arith.constant 0 : index
    %165 = vector.load %arg7[%c0_54, %c0_55] : memref<8x72xbf16, #tpu.memory_space<vmem>>, vector<8x72xbf16>
    %cst_56 = arith.constant dense<0.000000e+00> : vector<8x512xf32>
    %166 = tpu.matmul %165, %164, %cst_56 {dimension_numbers = #tpu.dot_dimension_numbers<[1], [0], [0], [1], [0, 0, 1, 1], [], []>} : vector<8x72xbf16>, vector<72x512xbf16>, vector<8x512xf32> -> vector<8x512xf32>
    %c0_57 = arith.constant 0 : index
    %c0_58 = arith.constant 0 : index
    %167 = vector.load %arg8[%c0_57, %c0_58] : memref<8x1xf32, #tpu.memory_space<vmem>>, vector<8x1xf32>
    %168 = vector.broadcast %167 : vector<8x1xf32> to vector<8x512xf32>
    %169 = arith.addf %166, %168 : vector<8x512xf32>
    %170 = arith.addf %169, %57 : vector<8x512xf32>
    %cst_59 = arith.constant 0.000000e+00 : f32
    %171 = vector.broadcast %cst_59 : f32 to vector<8x512xf32>
    %172 = arith.maximumf %170, %171 : vector<8x512xf32>
    %173 = arith.truncf %172 : vector<8x512xf32> to vector<8x512xbf16>
    %c0_60 = arith.constant 0 : index
    %c0_61 = arith.constant 0 : index
    %174 = vector.load %arg11[%c0_60, %c0_61] : memref<512x128xbf16, #tpu.memory_space<vmem>>, vector<512x128xbf16>
    %cst_62 = arith.constant dense<0.000000e+00> : vector<8x128xf32>
    %175 = tpu.matmul %173, %174, %cst_62 {dimension_numbers = #tpu.dot_dimension_numbers<[1], [0], [0], [1], [0, 0, 1, 1], [], []>} : vector<8x512xbf16>, vector<512x128xbf16>, vector<8x128xf32> -> vector<8x128xf32>
    %176 = arith.truncf %175 : vector<8x128xf32> to vector<8x128xbf16>
    %c0_63 = arith.constant 0 : index
    %c0_64 = arith.constant 0 : index
    %177 = vector.load %arg15[%c0_63, %c0_64] : memref<8x8xbf16, #tpu.memory_space<vmem>>, vector<8x8xbf16>
    %cst_65 = arith.constant dense<0.000000e+00> : vector<8x128xf32>
    %178 = tpu.matmul %177, %176, %cst_65 {dimension_numbers = #tpu.dot_dimension_numbers<[1], [0], [0], [1], [0, 0, 1, 1], [], []>} : vector<8x8xbf16>, vector<8x128xbf16>, vector<8x128xf32> -> vector<8x128xf32>
    %c0_66 = arith.constant 0 : index
    %c0_67 = arith.constant 0 : index
    %179 = vector.load %arg16[%c0_66, %c0_67] : memref<8x1xf32, #tpu.memory_space<vmem>>, vector<8x1xf32>
    %180 = vector.broadcast %179 : vector<8x1xf32> to vector<8x128xf32>
    %181 = arith.addf %178, %180 : vector<8x128xf32>
    %182 = arith.truncf %172 : vector<8x512xf32> to vector<8x512xbf16>
    %c0_68 = arith.constant 0 : index
    %c0_69 = arith.constant 0 : index
    %183 = vector.load %arg4[%c0_68, %c0_69] : memref<9x512xbf16, #tpu.memory_space<vmem>>, vector<1x512xbf16>
    %184 = vector.extract_strided_slice %182 {offsets = [0, 495], sizes = [8, 17], strides = [1, 1]} : vector<8x512xbf16> to vector<8x17xbf16>
    %185 = vector.extract_strided_slice %182 {offsets = [0, 0], sizes = [8, 495], strides = [1, 1]} : vector<8x512xbf16> to vector<8x495xbf16>
    %186 = tpu.concatenate %184, %185 in 1 : vector<8x17xbf16>, vector<8x495xbf16> -> vector<8x512xbf16>
    %187 = vector.broadcast %183 : vector<1x512xbf16> to vector<8x512xbf16>
    %188 = arith.mulf %186, %187 : vector<8x512xbf16>
    %c1_70 = arith.constant 1 : index
    %c0_71 = arith.constant 0 : index
    %189 = vector.load %arg4[%c1_70, %c0_71] : memref<9x512xbf16, #tpu.memory_space<vmem>>, vector<1x512xbf16>
    %190 = vector.extract_strided_slice %182 {offsets = [0, 496], sizes = [8, 16], strides = [1, 1]} : vector<8x512xbf16> to vector<8x16xbf16>
    %191 = vector.extract_strided_slice %182 {offsets = [0, 0], sizes = [8, 496], strides = [1, 1]} : vector<8x512xbf16> to vector<8x496xbf16>
    %192 = tpu.concatenate %190, %191 in 1 : vector<8x16xbf16>, vector<8x496xbf16> -> vector<8x512xbf16>
    %193 = vector.broadcast %189 : vector<1x512xbf16> to vector<8x512xbf16>
    %194 = arith.mulf %192, %193 : vector<8x512xbf16>
    %c2_72 = arith.constant 2 : index
    %c0_73 = arith.constant 0 : index
    %195 = vector.load %arg4[%c2_72, %c0_73] : memref<9x512xbf16, #tpu.memory_space<vmem>>, vector<1x512xbf16>
    %196 = vector.extract_strided_slice %182 {offsets = [0, 497], sizes = [8, 15], strides = [1, 1]} : vector<8x512xbf16> to vector<8x15xbf16>
    %197 = vector.extract_strided_slice %182 {offsets = [0, 0], sizes = [8, 497], strides = [1, 1]} : vector<8x512xbf16> to vector<8x497xbf16>
    %198 = tpu.concatenate %196, %197 in 1 : vector<8x15xbf16>, vector<8x497xbf16> -> vector<8x512xbf16>
    %199 = vector.broadcast %195 : vector<1x512xbf16> to vector<8x512xbf16>
    %200 = arith.mulf %198, %199 : vector<8x512xbf16>
    %c3_74 = arith.constant 3 : index
    %c0_75 = arith.constant 0 : index
    %201 = vector.load %arg4[%c3_74, %c0_75] : memref<9x512xbf16, #tpu.memory_space<vmem>>, vector<1x512xbf16>
    %202 = vector.extract_strided_slice %182 {offsets = [0, 511], sizes = [8, 1], strides = [1, 1]} : vector<8x512xbf16> to vector<8x1xbf16>
    %203 = vector.extract_strided_slice %182 {offsets = [0, 0], sizes = [8, 511], strides = [1, 1]} : vector<8x512xbf16> to vector<8x511xbf16>
    %204 = tpu.concatenate %202, %203 in 1 : vector<8x1xbf16>, vector<8x511xbf16> -> vector<8x512xbf16>
    %205 = vector.broadcast %201 : vector<1x512xbf16> to vector<8x512xbf16>
    %206 = arith.mulf %204, %205 : vector<8x512xbf16>
    %c5_76 = arith.constant 5 : index
    %c0_77 = arith.constant 0 : index
    %207 = vector.load %arg4[%c5_76, %c0_77] : memref<9x512xbf16, #tpu.memory_space<vmem>>, vector<1x512xbf16>
    %208 = vector.extract_strided_slice %182 {offsets = [0, 1], sizes = [8, 511], strides = [1, 1]} : vector<8x512xbf16> to vector<8x511xbf16>
    %209 = vector.extract_strided_slice %182 {offsets = [0, 0], sizes = [8, 1], strides = [1, 1]} : vector<8x512xbf16> to vector<8x1xbf16>
    %210 = tpu.concatenate %208, %209 in 1 : vector<8x511xbf16>, vector<8x1xbf16> -> vector<8x512xbf16>
    %211 = vector.broadcast %207 : vector<1x512xbf16> to vector<8x512xbf16>
    %212 = arith.mulf %210, %211 : vector<8x512xbf16>
    %c6_78 = arith.constant 6 : index
    %c0_79 = arith.constant 0 : index
    %213 = vector.load %arg4[%c6_78, %c0_79] : memref<9x512xbf16, #tpu.memory_space<vmem>>, vector<1x512xbf16>
    %214 = vector.extract_strided_slice %182 {offsets = [0, 15], sizes = [8, 497], strides = [1, 1]} : vector<8x512xbf16> to vector<8x497xbf16>
    %215 = vector.extract_strided_slice %182 {offsets = [0, 0], sizes = [8, 15], strides = [1, 1]} : vector<8x512xbf16> to vector<8x15xbf16>
    %216 = tpu.concatenate %214, %215 in 1 : vector<8x497xbf16>, vector<8x15xbf16> -> vector<8x512xbf16>
    %217 = vector.broadcast %213 : vector<1x512xbf16> to vector<8x512xbf16>
    %218 = arith.mulf %216, %217 : vector<8x512xbf16>
    %c7_80 = arith.constant 7 : index
    %c0_81 = arith.constant 0 : index
    %219 = vector.load %arg4[%c7_80, %c0_81] : memref<9x512xbf16, #tpu.memory_space<vmem>>, vector<1x512xbf16>
    %220 = vector.extract_strided_slice %182 {offsets = [0, 16], sizes = [8, 496], strides = [1, 1]} : vector<8x512xbf16> to vector<8x496xbf16>
    %221 = vector.extract_strided_slice %182 {offsets = [0, 0], sizes = [8, 16], strides = [1, 1]} : vector<8x512xbf16> to vector<8x16xbf16>
    %222 = tpu.concatenate %220, %221 in 1 : vector<8x496xbf16>, vector<8x16xbf16> -> vector<8x512xbf16>
    %223 = vector.broadcast %219 : vector<1x512xbf16> to vector<8x512xbf16>
    %224 = arith.mulf %222, %223 : vector<8x512xbf16>
    %c8_82 = arith.constant 8 : index
    %c0_83 = arith.constant 0 : index
    %225 = vector.load %arg4[%c8_82, %c0_83] : memref<9x512xbf16, #tpu.memory_space<vmem>>, vector<1x512xbf16>
    %226 = vector.extract_strided_slice %182 {offsets = [0, 17], sizes = [8, 495], strides = [1, 1]} : vector<8x512xbf16> to vector<8x495xbf16>
    %227 = vector.extract_strided_slice %182 {offsets = [0, 0], sizes = [8, 17], strides = [1, 1]} : vector<8x512xbf16> to vector<8x17xbf16>
    %228 = tpu.concatenate %226, %227 in 1 : vector<8x495xbf16>, vector<8x17xbf16> -> vector<8x512xbf16>
    %229 = vector.broadcast %225 : vector<1x512xbf16> to vector<8x512xbf16>
    %230 = arith.mulf %228, %229 : vector<8x512xbf16>
    %231 = tpu.concatenate %188, %194, %200, %206, %182, %212, %218, %224, %230 in 0 : vector<8x512xbf16>, vector<8x512xbf16>, vector<8x512xbf16>, vector<8x512xbf16>, vector<8x512xbf16>, vector<8x512xbf16>, vector<8x512xbf16>, vector<8x512xbf16>, vector<8x512xbf16> -> vector<72x512xbf16>
    %c0_84 = arith.constant 0 : index
    %c0_85 = arith.constant 0 : index
    %232 = vector.load %arg11[%c0_84, %c0_85] : memref<512x128xbf16, #tpu.memory_space<vmem>>, vector<512x128xbf16>
    %cst_86 = arith.constant dense<0.000000e+00> : vector<72x128xf32>
    %233 = tpu.matmul %231, %232, %cst_86 {dimension_numbers = #tpu.dot_dimension_numbers<[1], [0], [0], [1], [0, 0, 1, 1], [], []>} : vector<72x512xbf16>, vector<512x128xbf16>, vector<72x128xf32> -> vector<72x128xf32>
    %234 = arith.truncf %233 : vector<72x128xf32> to vector<72x128xbf16>
    %c0_87 = arith.constant 0 : index
    %c0_88 = arith.constant 0 : index
    %235 = vector.load %arg9[%c0_87, %c0_88] : memref<8x72xbf16, #tpu.memory_space<vmem>>, vector<8x72xbf16>
    %cst_89 = arith.constant dense<0.000000e+00> : vector<8x128xf32>
    %236 = tpu.matmul %235, %234, %cst_89 {dimension_numbers = #tpu.dot_dimension_numbers<[1], [0], [0], [1], [0, 0, 1, 1], [], []>} : vector<8x72xbf16>, vector<72x128xbf16>, vector<8x128xf32> -> vector<8x128xf32>
    %c0_90 = arith.constant 0 : index
    %c0_91 = arith.constant 0 : index
    %237 = vector.load %arg10[%c0_90, %c0_91] : memref<8x1xf32, #tpu.memory_space<vmem>>, vector<8x1xf32>
    %238 = vector.broadcast %237 : vector<8x1xf32> to vector<8x128xf32>
    %239 = arith.addf %236, %238 : vector<8x128xf32>
    %cst_92 = arith.constant 0.000000e+00 : f32
    %240 = vector.broadcast %cst_92 : f32 to vector<8x128xf32>
    %241 = arith.maximumf %239, %240 : vector<8x128xf32>
    %242 = arith.truncf %241 : vector<8x128xf32> to vector<8x128xbf16>
    %c0_93 = arith.constant 0 : index
    %c0_94 = arith.constant 0 : index
    %243 = vector.load %arg14[%c0_93, %c0_94] : memref<9x128xbf16, #tpu.memory_space<vmem>>, vector<1x128xbf16>
    %244 = vector.extract_strided_slice %242 {offsets = [0, 119], sizes = [8, 9], strides = [1, 1]} : vector<8x128xbf16> to vector<8x9xbf16>
    %245 = vector.extract_strided_slice %242 {offsets = [0, 0], sizes = [8, 119], strides = [1, 1]} : vector<8x128xbf16> to vector<8x119xbf16>
    %246 = tpu.concatenate %244, %245 in 1 : vector<8x9xbf16>, vector<8x119xbf16> -> vector<8x128xbf16>
    %247 = vector.broadcast %243 : vector<1x128xbf16> to vector<8x128xbf16>
    %248 = arith.mulf %246, %247 : vector<8x128xbf16>
    %c1_95 = arith.constant 1 : index
    %c0_96 = arith.constant 0 : index
    %249 = vector.load %arg14[%c1_95, %c0_96] : memref<9x128xbf16, #tpu.memory_space<vmem>>, vector<1x128xbf16>
    %250 = vector.extract_strided_slice %242 {offsets = [0, 120], sizes = [8, 8], strides = [1, 1]} : vector<8x128xbf16> to vector<8x8xbf16>
    %251 = vector.extract_strided_slice %242 {offsets = [0, 0], sizes = [8, 120], strides = [1, 1]} : vector<8x128xbf16> to vector<8x120xbf16>
    %252 = tpu.concatenate %250, %251 in 1 : vector<8x8xbf16>, vector<8x120xbf16> -> vector<8x128xbf16>
    %253 = vector.broadcast %249 : vector<1x128xbf16> to vector<8x128xbf16>
    %254 = arith.mulf %252, %253 : vector<8x128xbf16>
    %c2_97 = arith.constant 2 : index
    %c0_98 = arith.constant 0 : index
    %255 = vector.load %arg14[%c2_97, %c0_98] : memref<9x128xbf16, #tpu.memory_space<vmem>>, vector<1x128xbf16>
    %256 = vector.extract_strided_slice %242 {offsets = [0, 121], sizes = [8, 7], strides = [1, 1]} : vector<8x128xbf16> to vector<8x7xbf16>
    %257 = vector.extract_strided_slice %242 {offsets = [0, 0], sizes = [8, 121], strides = [1, 1]} : vector<8x128xbf16> to vector<8x121xbf16>
    %258 = tpu.concatenate %256, %257 in 1 : vector<8x7xbf16>, vector<8x121xbf16> -> vector<8x128xbf16>
    %259 = vector.broadcast %255 : vector<1x128xbf16> to vector<8x128xbf16>
    %260 = arith.mulf %258, %259 : vector<8x128xbf16>
    %c3_99 = arith.constant 3 : index
    %c0_100 = arith.constant 0 : index
    %261 = vector.load %arg14[%c3_99, %c0_100] : memref<9x128xbf16, #tpu.memory_space<vmem>>, vector<1x128xbf16>
    %262 = vector.extract_strided_slice %242 {offsets = [0, 127], sizes = [8, 1], strides = [1, 1]} : vector<8x128xbf16> to vector<8x1xbf16>
    %263 = vector.extract_strided_slice %242 {offsets = [0, 0], sizes = [8, 127], strides = [1, 1]} : vector<8x128xbf16> to vector<8x127xbf16>
    %264 = tpu.concatenate %262, %263 in 1 : vector<8x1xbf16>, vector<8x127xbf16> -> vector<8x128xbf16>
    %265 = vector.broadcast %261 : vector<1x128xbf16> to vector<8x128xbf16>
    %266 = arith.mulf %264, %265 : vector<8x128xbf16>
    %c5_101 = arith.constant 5 : index
    %c0_102 = arith.constant 0 : index
    %267 = vector.load %arg14[%c5_101, %c0_102] : memref<9x128xbf16, #tpu.memory_space<vmem>>, vector<1x128xbf16>
    %268 = vector.extract_strided_slice %242 {offsets = [0, 1], sizes = [8, 127], strides = [1, 1]} : vector<8x128xbf16> to vector<8x127xbf16>
    %269 = vector.extract_strided_slice %242 {offsets = [0, 0], sizes = [8, 1], strides = [1, 1]} : vector<8x128xbf16> to vector<8x1xbf16>
    %270 = tpu.concatenate %268, %269 in 1 : vector<8x127xbf16>, vector<8x1xbf16> -> vector<8x128xbf16>
    %271 = vector.broadcast %267 : vector<1x128xbf16> to vector<8x128xbf16>
    %272 = arith.mulf %270, %271 : vector<8x128xbf16>
    %c6_103 = arith.constant 6 : index
    %c0_104 = arith.constant 0 : index
    %273 = vector.load %arg14[%c6_103, %c0_104] : memref<9x128xbf16, #tpu.memory_space<vmem>>, vector<1x128xbf16>
    %274 = vector.extract_strided_slice %242 {offsets = [0, 7], sizes = [8, 121], strides = [1, 1]} : vector<8x128xbf16> to vector<8x121xbf16>
    %275 = vector.extract_strided_slice %242 {offsets = [0, 0], sizes = [8, 7], strides = [1, 1]} : vector<8x128xbf16> to vector<8x7xbf16>
    %276 = tpu.concatenate %274, %275 in 1 : vector<8x121xbf16>, vector<8x7xbf16> -> vector<8x128xbf16>
    %277 = vector.broadcast %273 : vector<1x128xbf16> to vector<8x128xbf16>
    %278 = arith.mulf %276, %277 : vector<8x128xbf16>
    %c7_105 = arith.constant 7 : index
    %c0_106 = arith.constant 0 : index
    %279 = vector.load %arg14[%c7_105, %c0_106] : memref<9x128xbf16, #tpu.memory_space<vmem>>, vector<1x128xbf16>
    %280 = vector.extract_strided_slice %242 {offsets = [0, 8], sizes = [8, 120], strides = [1, 1]} : vector<8x128xbf16> to vector<8x120xbf16>
    %281 = vector.extract_strided_slice %242 {offsets = [0, 0], sizes = [8, 8], strides = [1, 1]} : vector<8x128xbf16> to vector<8x8xbf16>
    %282 = tpu.concatenate %280, %281 in 1 : vector<8x120xbf16>, vector<8x8xbf16> -> vector<8x128xbf16>
    %283 = vector.broadcast %279 : vector<1x128xbf16> to vector<8x128xbf16>
    %284 = arith.mulf %282, %283 : vector<8x128xbf16>
    %c8_107 = arith.constant 8 : index
    %c0_108 = arith.constant 0 : index
    %285 = vector.load %arg14[%c8_107, %c0_108] : memref<9x128xbf16, #tpu.memory_space<vmem>>, vector<1x128xbf16>
    %286 = vector.extract_strided_slice %242 {offsets = [0, 9], sizes = [8, 119], strides = [1, 1]} : vector<8x128xbf16> to vector<8x119xbf16>
    %287 = vector.extract_strided_slice %242 {offsets = [0, 0], sizes = [8, 9], strides = [1, 1]} : vector<8x128xbf16> to vector<8x9xbf16>
    %288 = tpu.concatenate %286, %287 in 1 : vector<8x119xbf16>, vector<8x9xbf16> -> vector<8x128xbf16>
    %289 = vector.broadcast %285 : vector<1x128xbf16> to vector<8x128xbf16>
    %290 = arith.mulf %288, %289 : vector<8x128xbf16>
    %291 = tpu.concatenate %248, %254, %260, %266, %242, %272, %278, %284, %290 in 0 : vector<8x128xbf16>, vector<8x128xbf16>, vector<8x128xbf16>, vector<8x128xbf16>, vector<8x128xbf16>, vector<8x128xbf16>, vector<8x128xbf16>, vector<8x128xbf16>, vector<8x128xbf16> -> vector<72x128xbf16>
    %c0_109 = arith.constant 0 : index
    %c0_110 = arith.constant 0 : index
    %292 = vector.load %arg12[%c0_109, %c0_110] : memref<8x72xbf16, #tpu.memory_space<vmem>>, vector<8x72xbf16>
    %cst_111 = arith.constant dense<0.000000e+00> : vector<8x128xf32>
    %293 = tpu.matmul %292, %291, %cst_111 {dimension_numbers = #tpu.dot_dimension_numbers<[1], [0], [0], [1], [0, 0, 1, 1], [], []>} : vector<8x72xbf16>, vector<72x128xbf16>, vector<8x128xf32> -> vector<8x128xf32>
    %c0_112 = arith.constant 0 : index
    %c0_113 = arith.constant 0 : index
    %294 = vector.load %arg13[%c0_112, %c0_113] : memref<8x1xf32, #tpu.memory_space<vmem>>, vector<8x1xf32>
    %295 = vector.broadcast %294 : vector<8x1xf32> to vector<8x128xf32>
    %296 = arith.addf %293, %295 : vector<8x128xf32>
    %297 = arith.addf %296, %181 : vector<8x128xf32>
    %cst_114 = arith.constant 0.000000e+00 : f32
    %298 = vector.broadcast %cst_114 : f32 to vector<8x128xf32>
    %299 = arith.maximumf %297, %298 : vector<8x128xf32>
    %300 = arith.truncf %299 : vector<8x128xf32> to vector<8x128xbf16>
    %c0_115 = arith.constant 0 : index
    %c0_116 = arith.constant 0 : index
    %301 = vector.load %arg19[%c0_115, %c0_116] : memref<128x32xbf16, #tpu.memory_space<vmem>>, vector<128x32xbf16>
    %cst_117 = arith.constant dense<0.000000e+00> : vector<8x32xf32>
    %302 = tpu.matmul %300, %301, %cst_117 {dimension_numbers = #tpu.dot_dimension_numbers<[1], [0], [0], [1], [0, 0, 1, 1], [], []>} : vector<8x128xbf16>, vector<128x32xbf16>, vector<8x32xf32> -> vector<8x32xf32>
    %303 = arith.truncf %302 : vector<8x32xf32> to vector<8x32xbf16>
    %c0_118 = arith.constant 0 : index
    %c0_119 = arith.constant 0 : index
    %304 = vector.load %arg23[%c0_118, %c0_119] : memref<16x8xbf16, #tpu.memory_space<vmem>>, vector<16x8xbf16>
    %cst_120 = arith.constant dense<0.000000e+00> : vector<16x32xf32>
    %305 = tpu.matmul %304, %303, %cst_120 {dimension_numbers = #tpu.dot_dimension_numbers<[1], [0], [0], [1], [0, 0, 1, 1], [], []>} : vector<16x8xbf16>, vector<8x32xbf16>, vector<16x32xf32> -> vector<16x32xf32>
    %c0_121 = arith.constant 0 : index
    %c0_122 = arith.constant 0 : index
    %306 = vector.load %arg24[%c0_121, %c0_122] : memref<16x1xf32, #tpu.memory_space<vmem>>, vector<16x1xf32>
    %307 = vector.broadcast %306 : vector<16x1xf32> to vector<16x32xf32>
    %308 = arith.addf %305, %307 : vector<16x32xf32>
    %309 = arith.truncf %299 : vector<8x128xf32> to vector<8x128xbf16>
    %c0_123 = arith.constant 0 : index
    %c0_124 = arith.constant 0 : index
    %310 = vector.load %arg14[%c0_123, %c0_124] : memref<9x128xbf16, #tpu.memory_space<vmem>>, vector<1x128xbf16>
    %311 = vector.extract_strided_slice %309 {offsets = [0, 119], sizes = [8, 9], strides = [1, 1]} : vector<8x128xbf16> to vector<8x9xbf16>
    %312 = vector.extract_strided_slice %309 {offsets = [0, 0], sizes = [8, 119], strides = [1, 1]} : vector<8x128xbf16> to vector<8x119xbf16>
    %313 = tpu.concatenate %311, %312 in 1 : vector<8x9xbf16>, vector<8x119xbf16> -> vector<8x128xbf16>
    %314 = vector.broadcast %310 : vector<1x128xbf16> to vector<8x128xbf16>
    %315 = arith.mulf %313, %314 : vector<8x128xbf16>
    %c1_125 = arith.constant 1 : index
    %c0_126 = arith.constant 0 : index
    %316 = vector.load %arg14[%c1_125, %c0_126] : memref<9x128xbf16, #tpu.memory_space<vmem>>, vector<1x128xbf16>
    %317 = vector.extract_strided_slice %309 {offsets = [0, 120], sizes = [8, 8], strides = [1, 1]} : vector<8x128xbf16> to vector<8x8xbf16>
    %318 = vector.extract_strided_slice %309 {offsets = [0, 0], sizes = [8, 120], strides = [1, 1]} : vector<8x128xbf16> to vector<8x120xbf16>
    %319 = tpu.concatenate %317, %318 in 1 : vector<8x8xbf16>, vector<8x120xbf16> -> vector<8x128xbf16>
    %320 = vector.broadcast %316 : vector<1x128xbf16> to vector<8x128xbf16>
    %321 = arith.mulf %319, %320 : vector<8x128xbf16>
    %c2_127 = arith.constant 2 : index
    %c0_128 = arith.constant 0 : index
    %322 = vector.load %arg14[%c2_127, %c0_128] : memref<9x128xbf16, #tpu.memory_space<vmem>>, vector<1x128xbf16>
    %323 = vector.extract_strided_slice %309 {offsets = [0, 121], sizes = [8, 7], strides = [1, 1]} : vector<8x128xbf16> to vector<8x7xbf16>
    %324 = vector.extract_strided_slice %309 {offsets = [0, 0], sizes = [8, 121], strides = [1, 1]} : vector<8x128xbf16> to vector<8x121xbf16>
    %325 = tpu.concatenate %323, %324 in 1 : vector<8x7xbf16>, vector<8x121xbf16> -> vector<8x128xbf16>
    %326 = vector.broadcast %322 : vector<1x128xbf16> to vector<8x128xbf16>
    %327 = arith.mulf %325, %326 : vector<8x128xbf16>
    %c3_129 = arith.constant 3 : index
    %c0_130 = arith.constant 0 : index
    %328 = vector.load %arg14[%c3_129, %c0_130] : memref<9x128xbf16, #tpu.memory_space<vmem>>, vector<1x128xbf16>
    %329 = vector.extract_strided_slice %309 {offsets = [0, 127], sizes = [8, 1], strides = [1, 1]} : vector<8x128xbf16> to vector<8x1xbf16>
    %330 = vector.extract_strided_slice %309 {offsets = [0, 0], sizes = [8, 127], strides = [1, 1]} : vector<8x128xbf16> to vector<8x127xbf16>
    %331 = tpu.concatenate %329, %330 in 1 : vector<8x1xbf16>, vector<8x127xbf16> -> vector<8x128xbf16>
    %332 = vector.broadcast %328 : vector<1x128xbf16> to vector<8x128xbf16>
    %333 = arith.mulf %331, %332 : vector<8x128xbf16>
    %c5_131 = arith.constant 5 : index
    %c0_132 = arith.constant 0 : index
    %334 = vector.load %arg14[%c5_131, %c0_132] : memref<9x128xbf16, #tpu.memory_space<vmem>>, vector<1x128xbf16>
    %335 = vector.extract_strided_slice %309 {offsets = [0, 1], sizes = [8, 127], strides = [1, 1]} : vector<8x128xbf16> to vector<8x127xbf16>
    %336 = vector.extract_strided_slice %309 {offsets = [0, 0], sizes = [8, 1], strides = [1, 1]} : vector<8x128xbf16> to vector<8x1xbf16>
    %337 = tpu.concatenate %335, %336 in 1 : vector<8x127xbf16>, vector<8x1xbf16> -> vector<8x128xbf16>
    %338 = vector.broadcast %334 : vector<1x128xbf16> to vector<8x128xbf16>
    %339 = arith.mulf %337, %338 : vector<8x128xbf16>
    %c6_133 = arith.constant 6 : index
    %c0_134 = arith.constant 0 : index
    %340 = vector.load %arg14[%c6_133, %c0_134] : memref<9x128xbf16, #tpu.memory_space<vmem>>, vector<1x128xbf16>
    %341 = vector.extract_strided_slice %309 {offsets = [0, 7], sizes = [8, 121], strides = [1, 1]} : vector<8x128xbf16> to vector<8x121xbf16>
    %342 = vector.extract_strided_slice %309 {offsets = [0, 0], sizes = [8, 7], strides = [1, 1]} : vector<8x128xbf16> to vector<8x7xbf16>
    %343 = tpu.concatenate %341, %342 in 1 : vector<8x121xbf16>, vector<8x7xbf16> -> vector<8x128xbf16>
    %344 = vector.broadcast %340 : vector<1x128xbf16> to vector<8x128xbf16>
    %345 = arith.mulf %343, %344 : vector<8x128xbf16>
    %c7_135 = arith.constant 7 : index
    %c0_136 = arith.constant 0 : index
    %346 = vector.load %arg14[%c7_135, %c0_136] : memref<9x128xbf16, #tpu.memory_space<vmem>>, vector<1x128xbf16>
    %347 = vector.extract_strided_slice %309 {offsets = [0, 8], sizes = [8, 120], strides = [1, 1]} : vector<8x128xbf16> to vector<8x120xbf16>
    %348 = vector.extract_strided_slice %309 {offsets = [0, 0], sizes = [8, 8], strides = [1, 1]} : vector<8x128xbf16> to vector<8x8xbf16>
    %349 = tpu.concatenate %347, %348 in 1 : vector<8x120xbf16>, vector<8x8xbf16> -> vector<8x128xbf16>
    %350 = vector.broadcast %346 : vector<1x128xbf16> to vector<8x128xbf16>
    %351 = arith.mulf %349, %350 : vector<8x128xbf16>
    %c8_137 = arith.constant 8 : index
    %c0_138 = arith.constant 0 : index
    %352 = vector.load %arg14[%c8_137, %c0_138] : memref<9x128xbf16, #tpu.memory_space<vmem>>, vector<1x128xbf16>
    %353 = vector.extract_strided_slice %309 {offsets = [0, 9], sizes = [8, 119], strides = [1, 1]} : vector<8x128xbf16> to vector<8x119xbf16>
    %354 = vector.extract_strided_slice %309 {offsets = [0, 0], sizes = [8, 9], strides = [1, 1]} : vector<8x128xbf16> to vector<8x9xbf16>
    %355 = tpu.concatenate %353, %354 in 1 : vector<8x119xbf16>, vector<8x9xbf16> -> vector<8x128xbf16>
    %356 = vector.broadcast %352 : vector<1x128xbf16> to vector<8x128xbf16>
    %357 = arith.mulf %355, %356 : vector<8x128xbf16>
    %358 = tpu.concatenate %315, %321, %327, %333, %309, %339, %345, %351, %357 in 0 : vector<8x128xbf16>, vector<8x128xbf16>, vector<8x128xbf16>, vector<8x128xbf16>, vector<8x128xbf16>, vector<8x128xbf16>, vector<8x128xbf16>, vector<8x128xbf16>, vector<8x128xbf16> -> vector<72x128xbf16>
    %c0_139 = arith.constant 0 : index
    %c0_140 = arith.constant 0 : index
    %359 = vector.load %arg19[%c0_139, %c0_140] : memref<128x32xbf16, #tpu.memory_space<vmem>>, vector<128x32xbf16>
    %cst_141 = arith.constant dense<0.000000e+00> : vector<72x32xf32>
    %360 = tpu.matmul %358, %359, %cst_141 {dimension_numbers = #tpu.dot_dimension_numbers<[1], [0], [0], [1], [0, 0, 1, 1], [], []>} : vector<72x128xbf16>, vector<128x32xbf16>, vector<72x32xf32> -> vector<72x32xf32>
    %361 = arith.truncf %360 : vector<72x32xf32> to vector<72x32xbf16>
    %c0_142 = arith.constant 0 : index
    %c0_143 = arith.constant 0 : index
    %362 = vector.load %arg17[%c0_142, %c0_143] : memref<16x72xbf16, #tpu.memory_space<vmem>>, vector<16x72xbf16>
    %cst_144 = arith.constant dense<0.000000e+00> : vector<16x32xf32>
    %363 = tpu.matmul %362, %361, %cst_144 {dimension_numbers = #tpu.dot_dimension_numbers<[1], [0], [0], [1], [0, 0, 1, 1], [], []>} : vector<16x72xbf16>, vector<72x32xbf16>, vector<16x32xf32> -> vector<16x32xf32>
    %c0_145 = arith.constant 0 : index
    %c0_146 = arith.constant 0 : index
    %364 = vector.load %arg18[%c0_145, %c0_146] : memref<16x1xf32, #tpu.memory_space<vmem>>, vector<16x1xf32>
    %365 = vector.broadcast %364 : vector<16x1xf32> to vector<16x32xf32>
    %366 = arith.addf %363, %365 : vector<16x32xf32>
    %cst_147 = arith.constant 0.000000e+00 : f32
    %367 = vector.broadcast %cst_147 : f32 to vector<16x32xf32>
    %368 = arith.maximumf %366, %367 : vector<16x32xf32>
    %369 = arith.truncf %368 : vector<16x32xf32> to vector<16x32xbf16>
    %c0_148 = arith.constant 0 : index
    %c0_149 = arith.constant 0 : index
    %c0_150 = arith.constant 0 : index
    %370 = vector.load %arg22[%c0_148, %c0_149, %c0_150] : memref<9x32x32xbf16, #tpu.memory_space<vmem>>, vector<1x32x32xbf16>
    %371 = vector.shape_cast %370 : vector<1x32x32xbf16> to vector<32x32xbf16>
    %cst_151 = arith.constant dense<0.000000e+00> : vector<16x32xf32>
    %372 = tpu.matmul %369, %371, %cst_151 {dimension_numbers = #tpu.dot_dimension_numbers<[1], [0], [0], [1], [0, 0, 1, 1], [], []>} : vector<16x32xbf16>, vector<32x32xbf16>, vector<16x32xf32> -> vector<16x32xf32>
    %373 = arith.truncf %372 : vector<16x32xf32> to vector<16x32xbf16>
    %c1_152 = arith.constant 1 : index
    %c0_153 = arith.constant 0 : index
    %c0_154 = arith.constant 0 : index
    %374 = vector.load %arg22[%c1_152, %c0_153, %c0_154] : memref<9x32x32xbf16, #tpu.memory_space<vmem>>, vector<1x32x32xbf16>
    %375 = vector.shape_cast %374 : vector<1x32x32xbf16> to vector<32x32xbf16>
    %cst_155 = arith.constant dense<0.000000e+00> : vector<16x32xf32>
    %376 = tpu.matmul %369, %375, %cst_155 {dimension_numbers = #tpu.dot_dimension_numbers<[1], [0], [0], [1], [0, 0, 1, 1], [], []>} : vector<16x32xbf16>, vector<32x32xbf16>, vector<16x32xf32> -> vector<16x32xf32>
    %377 = arith.truncf %376 : vector<16x32xf32> to vector<16x32xbf16>
    %c2_156 = arith.constant 2 : index
    %c0_157 = arith.constant 0 : index
    %c0_158 = arith.constant 0 : index
    %378 = vector.load %arg22[%c2_156, %c0_157, %c0_158] : memref<9x32x32xbf16, #tpu.memory_space<vmem>>, vector<1x32x32xbf16>
    %379 = vector.shape_cast %378 : vector<1x32x32xbf16> to vector<32x32xbf16>
    %cst_159 = arith.constant dense<0.000000e+00> : vector<16x32xf32>
    %380 = tpu.matmul %369, %379, %cst_159 {dimension_numbers = #tpu.dot_dimension_numbers<[1], [0], [0], [1], [0, 0, 1, 1], [], []>} : vector<16x32xbf16>, vector<32x32xbf16>, vector<16x32xf32> -> vector<16x32xf32>
    %381 = arith.truncf %380 : vector<16x32xf32> to vector<16x32xbf16>
    %c3_160 = arith.constant 3 : index
    %c0_161 = arith.constant 0 : index
    %c0_162 = arith.constant 0 : index
    %382 = vector.load %arg22[%c3_160, %c0_161, %c0_162] : memref<9x32x32xbf16, #tpu.memory_space<vmem>>, vector<1x32x32xbf16>
    %383 = vector.shape_cast %382 : vector<1x32x32xbf16> to vector<32x32xbf16>
    %cst_163 = arith.constant dense<0.000000e+00> : vector<16x32xf32>
    %384 = tpu.matmul %369, %383, %cst_163 {dimension_numbers = #tpu.dot_dimension_numbers<[1], [0], [0], [1], [0, 0, 1, 1], [], []>} : vector<16x32xbf16>, vector<32x32xbf16>, vector<16x32xf32> -> vector<16x32xf32>
    %385 = arith.truncf %384 : vector<16x32xf32> to vector<16x32xbf16>
    %c4 = arith.constant 4 : index
    %c0_164 = arith.constant 0 : index
    %c0_165 = arith.constant 0 : index
    %386 = vector.load %arg22[%c4, %c0_164, %c0_165] : memref<9x32x32xbf16, #tpu.memory_space<vmem>>, vector<1x32x32xbf16>
    %387 = vector.shape_cast %386 : vector<1x32x32xbf16> to vector<32x32xbf16>
    %cst_166 = arith.constant dense<0.000000e+00> : vector<16x32xf32>
    %388 = tpu.matmul %369, %387, %cst_166 {dimension_numbers = #tpu.dot_dimension_numbers<[1], [0], [0], [1], [0, 0, 1, 1], [], []>} : vector<16x32xbf16>, vector<32x32xbf16>, vector<16x32xf32> -> vector<16x32xf32>
    %389 = arith.truncf %388 : vector<16x32xf32> to vector<16x32xbf16>
    %c5_167 = arith.constant 5 : index
    %c0_168 = arith.constant 0 : index
    %c0_169 = arith.constant 0 : index
    %390 = vector.load %arg22[%c5_167, %c0_168, %c0_169] : memref<9x32x32xbf16, #tpu.memory_space<vmem>>, vector<1x32x32xbf16>
    %391 = vector.shape_cast %390 : vector<1x32x32xbf16> to vector<32x32xbf16>
    %cst_170 = arith.constant dense<0.000000e+00> : vector<16x32xf32>
    %392 = tpu.matmul %369, %391, %cst_170 {dimension_numbers = #tpu.dot_dimension_numbers<[1], [0], [0], [1], [0, 0, 1, 1], [], []>} : vector<16x32xbf16>, vector<32x32xbf16>, vector<16x32xf32> -> vector<16x32xf32>
    %393 = arith.truncf %392 : vector<16x32xf32> to vector<16x32xbf16>
    %c6_171 = arith.constant 6 : index
    %c0_172 = arith.constant 0 : index
    %c0_173 = arith.constant 0 : index
    %394 = vector.load %arg22[%c6_171, %c0_172, %c0_173] : memref<9x32x32xbf16, #tpu.memory_space<vmem>>, vector<1x32x32xbf16>
    %395 = vector.shape_cast %394 : vector<1x32x32xbf16> to vector<32x32xbf16>
    %cst_174 = arith.constant dense<0.000000e+00> : vector<16x32xf32>
    %396 = tpu.matmul %369, %395, %cst_174 {dimension_numbers = #tpu.dot_dimension_numbers<[1], [0], [0], [1], [0, 0, 1, 1], [], []>} : vector<16x32xbf16>, vector<32x32xbf16>, vector<16x32xf32> -> vector<16x32xf32>
    %397 = arith.truncf %396 : vector<16x32xf32> to vector<16x32xbf16>
    %c7_175 = arith.constant 7 : index
    %c0_176 = arith.constant 0 : index
    %c0_177 = arith.constant 0 : index
    %398 = vector.load %arg22[%c7_175, %c0_176, %c0_177] : memref<9x32x32xbf16, #tpu.memory_space<vmem>>, vector<1x32x32xbf16>
    %399 = vector.shape_cast %398 : vector<1x32x32xbf16> to vector<32x32xbf16>
    %cst_178 = arith.constant dense<0.000000e+00> : vector<16x32xf32>
    %400 = tpu.matmul %369, %399, %cst_178 {dimension_numbers = #tpu.dot_dimension_numbers<[1], [0], [0], [1], [0, 0, 1, 1], [], []>} : vector<16x32xbf16>, vector<32x32xbf16>, vector<16x32xf32> -> vector<16x32xf32>
    %401 = arith.truncf %400 : vector<16x32xf32> to vector<16x32xbf16>
    %c8_179 = arith.constant 8 : index
    %c0_180 = arith.constant 0 : index
    %c0_181 = arith.constant 0 : index
    %402 = vector.load %arg22[%c8_179, %c0_180, %c0_181] : memref<9x32x32xbf16, #tpu.memory_space<vmem>>, vector<1x32x32xbf16>
    %403 = vector.shape_cast %402 : vector<1x32x32xbf16> to vector<32x32xbf16>
    %cst_182 = arith.constant dense<0.000000e+00> : vector<16x32xf32>
    %404 = tpu.matmul %369, %403, %cst_182 {dimension_numbers = #tpu.dot_dimension_numbers<[1], [0], [0], [1], [0, 0, 1, 1], [], []>} : vector<16x32xbf16>, vector<32x32xbf16>, vector<16x32xf32> -> vector<16x32xf32>
    %405 = arith.truncf %404 : vector<16x32xf32> to vector<16x32xbf16>
    %406 = tpu.concatenate %373, %377, %381, %385, %389, %393, %397, %401, %405 in 0 : vector<16x32xbf16>, vector<16x32xbf16>, vector<16x32xbf16>, vector<16x32xbf16>, vector<16x32xbf16>, vector<16x32xbf16>, vector<16x32xbf16>, vector<16x32xbf16>, vector<16x32xbf16> -> vector<144x32xbf16>
    %c0_183 = arith.constant 0 : index
    %c0_184 = arith.constant 0 : index
    %407 = vector.load %arg20[%c0_183, %c0_184] : memref<16x144xbf16, #tpu.memory_space<vmem>>, vector<16x144xbf16>
    %cst_185 = arith.constant dense<0.000000e+00> : vector<16x32xf32>
    %408 = tpu.matmul %407, %406, %cst_185 {dimension_numbers = #tpu.dot_dimension_numbers<[1], [0], [0], [1], [0, 0, 1, 1], [], []>} : vector<16x144xbf16>, vector<144x32xbf16>, vector<16x32xf32> -> vector<16x32xf32>
    %c0_186 = arith.constant 0 : index
    %c0_187 = arith.constant 0 : index
    %409 = vector.load %arg21[%c0_186, %c0_187] : memref<16x1xf32, #tpu.memory_space<vmem>>, vector<16x1xf32>
    %410 = vector.broadcast %409 : vector<16x1xf32> to vector<16x32xf32>
    %411 = arith.addf %408, %410 : vector<16x32xf32>
    %412 = arith.addf %411, %308 : vector<16x32xf32>
    %cst_188 = arith.constant 0.000000e+00 : f32
    %413 = vector.broadcast %cst_188 : f32 to vector<16x32xf32>
    %414 = arith.maximumf %412, %413 : vector<16x32xf32>
    %415 = arith.truncf %414 : vector<16x32xf32> to vector<16x32xbf16>
    %c0_189 = arith.constant 0 : index
    %c0_190 = arith.constant 0 : index
    %416 = vector.load %arg33[%c0_189, %c0_190] : memref<32x8xbf16, #tpu.memory_space<vmem>>, vector<32x8xbf16>
    %cst_191 = arith.constant dense<0.000000e+00> : vector<16x8xf32>
    %417 = tpu.matmul %415, %416, %cst_191 {dimension_numbers = #tpu.dot_dimension_numbers<[1], [0], [0], [1], [0, 0, 1, 1], [], []>} : vector<16x32xbf16>, vector<32x8xbf16>, vector<16x8xf32> -> vector<16x8xf32>
    %418 = arith.truncf %417 : vector<16x8xf32> to vector<16x8xbf16>
    %c0_192 = arith.constant 0 : index
    %c0_193 = arith.constant 0 : index
    %419 = vector.load %arg31[%c0_192, %c0_193] : memref<16x16xbf16, #tpu.memory_space<vmem>>, vector<16x16xbf16>
    %cst_194 = arith.constant dense<0.000000e+00> : vector<16x8xf32>
    %420 = tpu.matmul %419, %418, %cst_194 {dimension_numbers = #tpu.dot_dimension_numbers<[1], [0], [0], [1], [0, 0, 1, 1], [], []>} : vector<16x16xbf16>, vector<16x8xbf16>, vector<16x8xf32> -> vector<16x8xf32>
    %c0_195 = arith.constant 0 : index
    %c0_196 = arith.constant 0 : index
    %421 = vector.load %arg32[%c0_195, %c0_196] : memref<16x1xf32, #tpu.memory_space<vmem>>, vector<16x1xf32>
    %422 = vector.broadcast %421 : vector<16x1xf32> to vector<16x8xf32>
    %423 = arith.addf %420, %422 : vector<16x8xf32>
    %424 = arith.truncf %414 : vector<16x32xf32> to vector<16x32xbf16>
    %c0_197 = arith.constant 0 : index
    %c0_198 = arith.constant 0 : index
    %c0_199 = arith.constant 0 : index
    %425 = vector.load %arg27[%c0_197, %c0_198, %c0_199] : memref<9x32x8xbf16, #tpu.memory_space<vmem>>, vector<1x32x8xbf16>
    %426 = vector.shape_cast %425 : vector<1x32x8xbf16> to vector<32x8xbf16>
    %cst_200 = arith.constant dense<0.000000e+00> : vector<16x8xf32>
    %427 = tpu.matmul %424, %426, %cst_200 {dimension_numbers = #tpu.dot_dimension_numbers<[1], [0], [0], [1], [0, 0, 1, 1], [], []>} : vector<16x32xbf16>, vector<32x8xbf16>, vector<16x8xf32> -> vector<16x8xf32>
    %428 = arith.truncf %427 : vector<16x8xf32> to vector<16x8xbf16>
    %c1_201 = arith.constant 1 : index
    %c0_202 = arith.constant 0 : index
    %c0_203 = arith.constant 0 : index
    %429 = vector.load %arg27[%c1_201, %c0_202, %c0_203] : memref<9x32x8xbf16, #tpu.memory_space<vmem>>, vector<1x32x8xbf16>
    %430 = vector.shape_cast %429 : vector<1x32x8xbf16> to vector<32x8xbf16>
    %cst_204 = arith.constant dense<0.000000e+00> : vector<16x8xf32>
    %431 = tpu.matmul %424, %430, %cst_204 {dimension_numbers = #tpu.dot_dimension_numbers<[1], [0], [0], [1], [0, 0, 1, 1], [], []>} : vector<16x32xbf16>, vector<32x8xbf16>, vector<16x8xf32> -> vector<16x8xf32>
    %432 = arith.truncf %431 : vector<16x8xf32> to vector<16x8xbf16>
    %c2_205 = arith.constant 2 : index
    %c0_206 = arith.constant 0 : index
    %c0_207 = arith.constant 0 : index
    %433 = vector.load %arg27[%c2_205, %c0_206, %c0_207] : memref<9x32x8xbf16, #tpu.memory_space<vmem>>, vector<1x32x8xbf16>
    %434 = vector.shape_cast %433 : vector<1x32x8xbf16> to vector<32x8xbf16>
    %cst_208 = arith.constant dense<0.000000e+00> : vector<16x8xf32>
    %435 = tpu.matmul %424, %434, %cst_208 {dimension_numbers = #tpu.dot_dimension_numbers<[1], [0], [0], [1], [0, 0, 1, 1], [], []>} : vector<16x32xbf16>, vector<32x8xbf16>, vector<16x8xf32> -> vector<16x8xf32>
    %436 = arith.truncf %435 : vector<16x8xf32> to vector<16x8xbf16>
    %c3_209 = arith.constant 3 : index
    %c0_210 = arith.constant 0 : index
    %c0_211 = arith.constant 0 : index
    %437 = vector.load %arg27[%c3_209, %c0_210, %c0_211] : memref<9x32x8xbf16, #tpu.memory_space<vmem>>, vector<1x32x8xbf16>
    %438 = vector.shape_cast %437 : vector<1x32x8xbf16> to vector<32x8xbf16>
    %cst_212 = arith.constant dense<0.000000e+00> : vector<16x8xf32>
    %439 = tpu.matmul %424, %438, %cst_212 {dimension_numbers = #tpu.dot_dimension_numbers<[1], [0], [0], [1], [0, 0, 1, 1], [], []>} : vector<16x32xbf16>, vector<32x8xbf16>, vector<16x8xf32> -> vector<16x8xf32>
    %440 = arith.truncf %439 : vector<16x8xf32> to vector<16x8xbf16>
    %c4_213 = arith.constant 4 : index
    %c0_214 = arith.constant 0 : index
    %c0_215 = arith.constant 0 : index
    %441 = vector.load %arg27[%c4_213, %c0_214, %c0_215] : memref<9x32x8xbf16, #tpu.memory_space<vmem>>, vector<1x32x8xbf16>
    %442 = vector.shape_cast %441 : vector<1x32x8xbf16> to vector<32x8xbf16>
    %cst_216 = arith.constant dense<0.000000e+00> : vector<16x8xf32>
    %443 = tpu.matmul %424, %442, %cst_216 {dimension_numbers = #tpu.dot_dimension_numbers<[1], [0], [0], [1], [0, 0, 1, 1], [], []>} : vector<16x32xbf16>, vector<32x8xbf16>, vector<16x8xf32> -> vector<16x8xf32>
    %444 = arith.truncf %443 : vector<16x8xf32> to vector<16x8xbf16>
    %c5_217 = arith.constant 5 : index
    %c0_218 = arith.constant 0 : index
    %c0_219 = arith.constant 0 : index
    %445 = vector.load %arg27[%c5_217, %c0_218, %c0_219] : memref<9x32x8xbf16, #tpu.memory_space<vmem>>, vector<1x32x8xbf16>
    %446 = vector.shape_cast %445 : vector<1x32x8xbf16> to vector<32x8xbf16>
    %cst_220 = arith.constant dense<0.000000e+00> : vector<16x8xf32>
    %447 = tpu.matmul %424, %446, %cst_220 {dimension_numbers = #tpu.dot_dimension_numbers<[1], [0], [0], [1], [0, 0, 1, 1], [], []>} : vector<16x32xbf16>, vector<32x8xbf16>, vector<16x8xf32> -> vector<16x8xf32>
    %448 = arith.truncf %447 : vector<16x8xf32> to vector<16x8xbf16>
    %c6_221 = arith.constant 6 : index
    %c0_222 = arith.constant 0 : index
    %c0_223 = arith.constant 0 : index
    %449 = vector.load %arg27[%c6_221, %c0_222, %c0_223] : memref<9x32x8xbf16, #tpu.memory_space<vmem>>, vector<1x32x8xbf16>
    %450 = vector.shape_cast %449 : vector<1x32x8xbf16> to vector<32x8xbf16>
    %cst_224 = arith.constant dense<0.000000e+00> : vector<16x8xf32>
    %451 = tpu.matmul %424, %450, %cst_224 {dimension_numbers = #tpu.dot_dimension_numbers<[1], [0], [0], [1], [0, 0, 1, 1], [], []>} : vector<16x32xbf16>, vector<32x8xbf16>, vector<16x8xf32> -> vector<16x8xf32>
    %452 = arith.truncf %451 : vector<16x8xf32> to vector<16x8xbf16>
    %c7_225 = arith.constant 7 : index
    %c0_226 = arith.constant 0 : index
    %c0_227 = arith.constant 0 : index
    %453 = vector.load %arg27[%c7_225, %c0_226, %c0_227] : memref<9x32x8xbf16, #tpu.memory_space<vmem>>, vector<1x32x8xbf16>
    %454 = vector.shape_cast %453 : vector<1x32x8xbf16> to vector<32x8xbf16>
    %cst_228 = arith.constant dense<0.000000e+00> : vector<16x8xf32>
    %455 = tpu.matmul %424, %454, %cst_228 {dimension_numbers = #tpu.dot_dimension_numbers<[1], [0], [0], [1], [0, 0, 1, 1], [], []>} : vector<16x32xbf16>, vector<32x8xbf16>, vector<16x8xf32> -> vector<16x8xf32>
    %456 = arith.truncf %455 : vector<16x8xf32> to vector<16x8xbf16>
    %c8_229 = arith.constant 8 : index
    %c0_230 = arith.constant 0 : index
    %c0_231 = arith.constant 0 : index
    %457 = vector.load %arg27[%c8_229, %c0_230, %c0_231] : memref<9x32x8xbf16, #tpu.memory_space<vmem>>, vector<1x32x8xbf16>
    %458 = vector.shape_cast %457 : vector<1x32x8xbf16> to vector<32x8xbf16>
    %cst_232 = arith.constant dense<0.000000e+00> : vector<16x8xf32>
    %459 = tpu.matmul %424, %458, %cst_232 {dimension_numbers = #tpu.dot_dimension_numbers<[1], [0], [0], [1], [0, 0, 1, 1], [], []>} : vector<16x32xbf16>, vector<32x8xbf16>, vector<16x8xf32> -> vector<16x8xf32>
    %460 = arith.truncf %459 : vector<16x8xf32> to vector<16x8xbf16>
    %461 = tpu.concatenate %428, %432, %436, %440, %444, %448, %452, %456, %460 in 0 : vector<16x8xbf16>, vector<16x8xbf16>, vector<16x8xbf16>, vector<16x8xbf16>, vector<16x8xbf16>, vector<16x8xbf16>, vector<16x8xbf16>, vector<16x8xbf16>, vector<16x8xbf16> -> vector<144x8xbf16>
    %c0_233 = arith.constant 0 : index
    %c0_234 = arith.constant 0 : index
    %462 = vector.load %arg25[%c0_233, %c0_234] : memref<16x144xbf16, #tpu.memory_space<vmem>>, vector<16x144xbf16>
    %cst_235 = arith.constant dense<0.000000e+00> : vector<16x8xf32>
    %463 = tpu.matmul %462, %461, %cst_235 {dimension_numbers = #tpu.dot_dimension_numbers<[1], [0], [0], [1], [0, 0, 1, 1], [], []>} : vector<16x144xbf16>, vector<144x8xbf16>, vector<16x8xf32> -> vector<16x8xf32>
    %c0_236 = arith.constant 0 : index
    %c0_237 = arith.constant 0 : index
    %464 = vector.load %arg26[%c0_236, %c0_237] : memref<16x1xf32, #tpu.memory_space<vmem>>, vector<16x1xf32>
    %465 = vector.broadcast %464 : vector<16x1xf32> to vector<16x8xf32>
    %466 = arith.addf %463, %465 : vector<16x8xf32>
    %cst_238 = arith.constant 0.000000e+00 : f32
    %467 = vector.broadcast %cst_238 : f32 to vector<16x8xf32>
    %468 = arith.maximumf %466, %467 : vector<16x8xf32>
    %469 = arith.truncf %468 : vector<16x8xf32> to vector<16x8xbf16>
    %c0_239 = arith.constant 0 : index
    %c0_240 = arith.constant 0 : index
    %c0_241 = arith.constant 0 : index
    %470 = vector.load %arg30[%c0_239, %c0_240, %c0_241] : memref<9x8x8xbf16, #tpu.memory_space<vmem>>, vector<1x8x8xbf16>
    %471 = vector.shape_cast %470 : vector<1x8x8xbf16> to vector<8x8xbf16>
    %cst_242 = arith.constant dense<0.000000e+00> : vector<16x8xf32>
    %472 = tpu.matmul %469, %471, %cst_242 {dimension_numbers = #tpu.dot_dimension_numbers<[1], [0], [0], [1], [0, 0, 1, 1], [], []>} : vector<16x8xbf16>, vector<8x8xbf16>, vector<16x8xf32> -> vector<16x8xf32>
    %473 = arith.truncf %472 : vector<16x8xf32> to vector<16x8xbf16>
    %c1_243 = arith.constant 1 : index
    %c0_244 = arith.constant 0 : index
    %c0_245 = arith.constant 0 : index
    %474 = vector.load %arg30[%c1_243, %c0_244, %c0_245] : memref<9x8x8xbf16, #tpu.memory_space<vmem>>, vector<1x8x8xbf16>
    %475 = vector.shape_cast %474 : vector<1x8x8xbf16> to vector<8x8xbf16>
    %cst_246 = arith.constant dense<0.000000e+00> : vector<16x8xf32>
    %476 = tpu.matmul %469, %475, %cst_246 {dimension_numbers = #tpu.dot_dimension_numbers<[1], [0], [0], [1], [0, 0, 1, 1], [], []>} : vector<16x8xbf16>, vector<8x8xbf16>, vector<16x8xf32> -> vector<16x8xf32>
    %477 = arith.truncf %476 : vector<16x8xf32> to vector<16x8xbf16>
    %c2_247 = arith.constant 2 : index
    %c0_248 = arith.constant 0 : index
    %c0_249 = arith.constant 0 : index
    %478 = vector.load %arg30[%c2_247, %c0_248, %c0_249] : memref<9x8x8xbf16, #tpu.memory_space<vmem>>, vector<1x8x8xbf16>
    %479 = vector.shape_cast %478 : vector<1x8x8xbf16> to vector<8x8xbf16>
    %cst_250 = arith.constant dense<0.000000e+00> : vector<16x8xf32>
    %480 = tpu.matmul %469, %479, %cst_250 {dimension_numbers = #tpu.dot_dimension_numbers<[1], [0], [0], [1], [0, 0, 1, 1], [], []>} : vector<16x8xbf16>, vector<8x8xbf16>, vector<16x8xf32> -> vector<16x8xf32>
    %481 = arith.truncf %480 : vector<16x8xf32> to vector<16x8xbf16>
    %c3_251 = arith.constant 3 : index
    %c0_252 = arith.constant 0 : index
    %c0_253 = arith.constant 0 : index
    %482 = vector.load %arg30[%c3_251, %c0_252, %c0_253] : memref<9x8x8xbf16, #tpu.memory_space<vmem>>, vector<1x8x8xbf16>
    %483 = vector.shape_cast %482 : vector<1x8x8xbf16> to vector<8x8xbf16>
    %cst_254 = arith.constant dense<0.000000e+00> : vector<16x8xf32>
    %484 = tpu.matmul %469, %483, %cst_254 {dimension_numbers = #tpu.dot_dimension_numbers<[1], [0], [0], [1], [0, 0, 1, 1], [], []>} : vector<16x8xbf16>, vector<8x8xbf16>, vector<16x8xf32> -> vector<16x8xf32>
    %485 = arith.truncf %484 : vector<16x8xf32> to vector<16x8xbf16>
    %c4_255 = arith.constant 4 : index
    %c0_256 = arith.constant 0 : index
    %c0_257 = arith.constant 0 : index
    %486 = vector.load %arg30[%c4_255, %c0_256, %c0_257] : memref<9x8x8xbf16, #tpu.memory_space<vmem>>, vector<1x8x8xbf16>
    %487 = vector.shape_cast %486 : vector<1x8x8xbf16> to vector<8x8xbf16>
    %cst_258 = arith.constant dense<0.000000e+00> : vector<16x8xf32>
    %488 = tpu.matmul %469, %487, %cst_258 {dimension_numbers = #tpu.dot_dimension_numbers<[1], [0], [0], [1], [0, 0, 1, 1], [], []>} : vector<16x8xbf16>, vector<8x8xbf16>, vector<16x8xf32> -> vector<16x8xf32>
    %489 = arith.truncf %488 : vector<16x8xf32> to vector<16x8xbf16>
    %c5_259 = arith.constant 5 : index
    %c0_260 = arith.constant 0 : index
    %c0_261 = arith.constant 0 : index
    %490 = vector.load %arg30[%c5_259, %c0_260, %c0_261] : memref<9x8x8xbf16, #tpu.memory_space<vmem>>, vector<1x8x8xbf16>
    %491 = vector.shape_cast %490 : vector<1x8x8xbf16> to vector<8x8xbf16>
    %cst_262 = arith.constant dense<0.000000e+00> : vector<16x8xf32>
    %492 = tpu.matmul %469, %491, %cst_262 {dimension_numbers = #tpu.dot_dimension_numbers<[1], [0], [0], [1], [0, 0, 1, 1], [], []>} : vector<16x8xbf16>, vector<8x8xbf16>, vector<16x8xf32> -> vector<16x8xf32>
    %493 = arith.truncf %492 : vector<16x8xf32> to vector<16x8xbf16>
    %c6_263 = arith.constant 6 : index
    %c0_264 = arith.constant 0 : index
    %c0_265 = arith.constant 0 : index
    %494 = vector.load %arg30[%c6_263, %c0_264, %c0_265] : memref<9x8x8xbf16, #tpu.memory_space<vmem>>, vector<1x8x8xbf16>
    %495 = vector.shape_cast %494 : vector<1x8x8xbf16> to vector<8x8xbf16>
    %cst_266 = arith.constant dense<0.000000e+00> : vector<16x8xf32>
    %496 = tpu.matmul %469, %495, %cst_266 {dimension_numbers = #tpu.dot_dimension_numbers<[1], [0], [0], [1], [0, 0, 1, 1], [], []>} : vector<16x8xbf16>, vector<8x8xbf16>, vector<16x8xf32> -> vector<16x8xf32>
    %497 = arith.truncf %496 : vector<16x8xf32> to vector<16x8xbf16>
    %c7_267 = arith.constant 7 : index
    %c0_268 = arith.constant 0 : index
    %c0_269 = arith.constant 0 : index
    %498 = vector.load %arg30[%c7_267, %c0_268, %c0_269] : memref<9x8x8xbf16, #tpu.memory_space<vmem>>, vector<1x8x8xbf16>
    %499 = vector.shape_cast %498 : vector<1x8x8xbf16> to vector<8x8xbf16>
    %cst_270 = arith.constant dense<0.000000e+00> : vector<16x8xf32>
    %500 = tpu.matmul %469, %499, %cst_270 {dimension_numbers = #tpu.dot_dimension_numbers<[1], [0], [0], [1], [0, 0, 1, 1], [], []>} : vector<16x8xbf16>, vector<8x8xbf16>, vector<16x8xf32> -> vector<16x8xf32>
    %501 = arith.truncf %500 : vector<16x8xf32> to vector<16x8xbf16>
    %c8_271 = arith.constant 8 : index
    %c0_272 = arith.constant 0 : index
    %c0_273 = arith.constant 0 : index
    %502 = vector.load %arg30[%c8_271, %c0_272, %c0_273] : memref<9x8x8xbf16, #tpu.memory_space<vmem>>, vector<1x8x8xbf16>
    %503 = vector.shape_cast %502 : vector<1x8x8xbf16> to vector<8x8xbf16>
    %cst_274 = arith.constant dense<0.000000e+00> : vector<16x8xf32>
    %504 = tpu.matmul %469, %503, %cst_274 {dimension_numbers = #tpu.dot_dimension_numbers<[1], [0], [0], [1], [0, 0, 1, 1], [], []>} : vector<16x8xbf16>, vector<8x8xbf16>, vector<16x8xf32> -> vector<16x8xf32>
    %505 = arith.truncf %504 : vector<16x8xf32> to vector<16x8xbf16>
    %506 = tpu.concatenate %473, %477, %481, %485, %489, %493, %497, %501, %505 in 0 : vector<16x8xbf16>, vector<16x8xbf16>, vector<16x8xbf16>, vector<16x8xbf16>, vector<16x8xbf16>, vector<16x8xbf16>, vector<16x8xbf16>, vector<16x8xbf16>, vector<16x8xbf16> -> vector<144x8xbf16>
    %c0_275 = arith.constant 0 : index
    %c0_276 = arith.constant 0 : index
    %507 = vector.load %arg28[%c0_275, %c0_276] : memref<16x144xbf16, #tpu.memory_space<vmem>>, vector<16x144xbf16>
    %cst_277 = arith.constant dense<0.000000e+00> : vector<16x8xf32>
    %508 = tpu.matmul %507, %506, %cst_277 {dimension_numbers = #tpu.dot_dimension_numbers<[1], [0], [0], [1], [0, 0, 1, 1], [], []>} : vector<16x144xbf16>, vector<144x8xbf16>, vector<16x8xf32> -> vector<16x8xf32>
    %c0_278 = arith.constant 0 : index
    %c0_279 = arith.constant 0 : index
    %509 = vector.load %arg29[%c0_278, %c0_279] : memref<16x1xf32, #tpu.memory_space<vmem>>, vector<16x1xf32>
    %510 = vector.broadcast %509 : vector<16x1xf32> to vector<16x8xf32>
    %511 = arith.addf %508, %510 : vector<16x8xf32>
    %512 = arith.addf %511, %423 : vector<16x8xf32>
    %cst_280 = arith.constant 0.000000e+00 : f32
    %513 = vector.broadcast %cst_280 : f32 to vector<16x8xf32>
    %514 = arith.maximumf %512, %513 : vector<16x8xf32>
    %515 = arith.truncf %514 : vector<16x8xf32> to vector<16x8xbf16>
    %c0_281 = arith.constant 0 : index
    %c0_282 = arith.constant 0 : index
    %516 = vector.load %arg36[%c0_281, %c0_282] : memref<8x128xbf16, #tpu.memory_space<vmem>>, vector<8x128xbf16>
    %cst_283 = arith.constant dense<0.000000e+00> : vector<16x128xf32>
    %517 = tpu.matmul %515, %516, %cst_283 {dimension_numbers = #tpu.dot_dimension_numbers<[1], [0], [0], [1], [0, 0, 1, 1], [], []>} : vector<16x8xbf16>, vector<8x128xbf16>, vector<16x128xf32> -> vector<16x128xf32>
    %c0_284 = arith.constant 0 : index
    %c0_285 = arith.constant 0 : index
    %c0_286 = arith.constant 0 : index
    %518 = vector.load %arg37[%c0_284, %c0_285, %c0_286] : memref<1x16x128xf32, #tpu.memory_space<vmem>>, vector<1x16x128xf32>
    %519 = vector.shape_cast %518 : vector<1x16x128xf32> to vector<16x128xf32>
    %520 = vector.shape_cast %517 : vector<16x128xf32> to vector<1x16x128xf32>
    tpu.vector_store %arg37[%c0_284, %c0_285, %c0_286], %520 {strides = array<i32>} : memref<1x16x128xf32, #tpu.memory_space<vmem>>, vector<1x16x128xf32>,
    %521 = arith.truncf %414 : vector<16x32xf32> to vector<16x32xbf16>
    %c0_287 = arith.constant 0 : index
    %c0_288 = arith.constant 0 : index
    %522 = vector.load %arg35[%c0_287, %c0_288] : memref<32x128xbf16, #tpu.memory_space<vmem>>, vector<32x128xbf16>
    %cst_289 = arith.constant dense<0.000000e+00> : vector<16x128xf32>
    %523 = tpu.matmul %521, %522, %cst_289 {dimension_numbers = #tpu.dot_dimension_numbers<[1], [0], [0], [1], [0, 0, 1, 1], [], []>} : vector<16x32xbf16>, vector<32x128xbf16>, vector<16x128xf32> -> vector<16x128xf32>
    %c0_290 = arith.constant 0 : index
    %c0_291 = arith.constant 0 : index
    %c0_292 = arith.constant 0 : index
    %524 = vector.load %arg38[%c0_290, %c0_291, %c0_292] : memref<1x16x128xf32, #tpu.memory_space<vmem>>, vector<1x16x128xf32>
    %525 = vector.shape_cast %524 : vector<1x16x128xf32> to vector<16x128xf32>
    %526 = vector.shape_cast %523 : vector<16x128xf32> to vector<1x16x128xf32>
    tpu.vector_store %arg38[%c0_290, %c0_291, %c0_292], %526 {strides = array<i32>} : memref<1x16x128xf32, #tpu.memory_space<vmem>>, vector<1x16x128xf32>,
    %527 = arith.truncf %299 : vector<8x128xf32> to vector<8x128xbf16>
    %c0_293 = arith.constant 0 : index
    %c0_294 = arith.constant 0 : index
    %528 = vector.load %arg34[%c0_293, %c0_294] : memref<128x128xbf16, #tpu.memory_space<vmem>>, vector<128x128xbf16>
    %cst_295 = arith.constant dense<0.000000e+00> : vector<8x128xf32>
    %529 = tpu.matmul %527, %528, %cst_295 {dimension_numbers = #tpu.dot_dimension_numbers<[1], [0], [0], [1], [0, 0, 1, 1], [], []>} : vector<8x128xbf16>, vector<128x128xbf16>, vector<8x128xf32> -> vector<8x128xf32>
    %c0_296 = arith.constant 0 : index
    %c0_297 = arith.constant 0 : index
    %c0_298 = arith.constant 0 : index
    %530 = vector.load %arg39[%c0_296, %c0_297, %c0_298] : memref<1x8x128xf32, #tpu.memory_space<vmem>>, vector<1x8x128xf32>
    %531 = vector.shape_cast %530 : vector<1x8x128xf32> to vector<8x128xf32>
    %532 = vector.shape_cast %529 : vector<8x128xf32> to vector<1x8x128xf32>
    tpu.vector_store %arg39[%c0_296, %c0_297, %c0_298], %532 {strides = array<i32>} : memref<1x8x128xf32, #tpu.memory_space<vmem>>, vector<1x8x128xf32>,
    return
  }
  func.func @transform_0(%arg0: i32) -> (i32, i32, i32) {
    %c0_i32 = arith.constant 0 : i32
    %c0_i32_0 = arith.constant 0 : i32
    %c0_i32_1 = arith.constant 0 : i32
    return %arg0, %c0_i32, %c0_i32_0 : i32, i32, i32
  }
  func.func @transform_1(%arg0: i32) -> (i32, i32) {
    %c0_i32 = arith.constant 0 : i32
    %c0_i32_0 = arith.constant 0 : i32
    %c0_i32_1 = arith.constant 0 : i32
    return %c0_i32, %c0_i32_0 : i32, i32
  }
  func.func @transform_2(%arg0: i32) -> (i32, i32) {
    %c0_i32 = arith.constant 0 : i32
    %c0_i32_0 = arith.constant 0 : i32
    %c0_i32_1 = arith.constant 0 : i32
    return %c0_i32, %c0_i32_0 : i32, i32
  }
  func.func @transform_3(%arg0: i32) -> (i32, i32) {
    %c0_i32 = arith.constant 0 : i32
    %c0_i32_0 = arith.constant 0 : i32
    %c0_i32_1 = arith.constant 0 : i32
    return %c0_i32, %c0_i32_0 : i32, i32
  }
  func.func @transform_4(%arg0: i32) -> (i32, i32) {
    %c0_i32 = arith.constant 0 : i32
    %c0_i32_0 = arith.constant 0 : i32
    %c0_i32_1 = arith.constant 0 : i32
    return %c0_i32, %c0_i32_0 : i32, i32
  }
  func.func @transform_5(%arg0: i32) -> (i32, i32) {
    %c0_i32 = arith.constant 0 : i32
    %c0_i32_0 = arith.constant 0 : i32
    %c0_i32_1 = arith.constant 0 : i32
    return %c0_i32, %c0_i32_0 : i32, i32
  }
  func.func @transform_6(%arg0: i32) -> (i32, i32) {
    %c0_i32 = arith.constant 0 : i32
    %c0_i32_0 = arith.constant 0 : i32
    %c0_i32_1 = arith.constant 0 : i32
    return %c0_i32, %c0_i32_0 : i32, i32
  }
  func.func @transform_7(%arg0: i32) -> (i32, i32) {
    %c0_i32 = arith.constant 0 : i32
    %c0_i32_0 = arith.constant 0 : i32
    %c0_i32_1 = arith.constant 0 : i32
    return %c0_i32, %c0_i32_0 : i32, i32
  }
  func.func @transform_8(%arg0: i32) -> (i32, i32) {
    %c0_i32 = arith.constant 0 : i32
    %c0_i32_0 = arith.constant 0 : i32
    %c0_i32_1 = arith.constant 0 : i32
    return %c0_i32, %c0_i32_0 : i32, i32
  }
  func.func @transform_9(%arg0: i32) -> (i32, i32) {
    %c0_i32 = arith.constant 0 : i32
    %c0_i32_0 = arith.constant 0 : i32
    %c0_i32_1 = arith.constant 0 : i32
    return %c0_i32, %c0_i32_0 : i32, i32
  }
  func.func @transform_10(%arg0: i32) -> (i32, i32) {
    %c0_i32 = arith.constant 0 : i32
    %c0_i32_0 = arith.constant 0 : i32
    %c0_i32_1 = arith.constant 0 : i32
    return %c0_i32, %c0_i32_0 : i32, i32
  }
  func.func @transform_11(%arg0: i32) -> (i32, i32) {
    %c0_i32 = arith.constant 0 : i32
    %c0_i32_0 = arith.constant 0 : i32
    %c0_i32_1 = arith.constant 0 : i32
    return %c0_i32, %c0_i32_0 : i32, i32
  }
  func.func @transform_12(%arg0: i32) -> (i32, i32) {
    %c0_i32 = arith.constant 0 : i32
    %c0_i32_0 = arith.constant 0 : i32
    %c0_i32_1 = arith.constant 0 : i32
    return %c0_i32, %c0_i32_0 : i32, i32
  }
  func.func @transform_13(%arg0: i32) -> (i32, i32) {
    %c0_i32 = arith.constant 0 : i32
    %c0_i32_0 = arith.constant 0 : i32
    %c0_i32_1 = arith.constant 0 : i32
    return %c0_i32, %c0_i32_0 : i32, i32
  }
  func.func @transform_14(%arg0: i32) -> (i32, i32) {
    %c0_i32 = arith.constant 0 : i32
    %c0_i32_0 = arith.constant 0 : i32
    %c0_i32_1 = arith.constant 0 : i32
    return %c0_i32, %c0_i32_0 : i32, i32
  }
  func.func @transform_15(%arg0: i32) -> (i32, i32) {
    %c0_i32 = arith.constant 0 : i32
    %c0_i32_0 = arith.constant 0 : i32
    %c0_i32_1 = arith.constant 0 : i32
    return %c0_i32, %c0_i32_0 : i32, i32
  }
  func.func @transform_16(%arg0: i32) -> (i32, i32) {
    %c0_i32 = arith.constant 0 : i32
    %c0_i32_0 = arith.constant 0 : i32
    %c0_i32_1 = arith.constant 0 : i32
    return %c0_i32, %c0_i32_0 : i32, i32
  }
  func.func @transform_17(%arg0: i32) -> (i32, i32) {
    %c0_i32 = arith.constant 0 : i32
    %c0_i32_0 = arith.constant 0 : i32
    %c0_i32_1 = arith.constant 0 : i32
    return %c0_i32, %c0_i32_0 : i32, i32
  }
  func.func @transform_18(%arg0: i32) -> (i32, i32) {
    %c0_i32 = arith.constant 0 : i32
    %c0_i32_0 = arith.constant 0 : i32
    %c0_i32_1 = arith.constant 0 : i32
    return %c0_i32, %c0_i32_0 : i32, i32
  }
  func.func @transform_19(%arg0: i32) -> (i32, i32) {
    %c0_i32 = arith.constant 0 : i32
    %c0_i32_0 = arith.constant 0 : i32
    %c0_i32_1 = arith.constant 0 : i32
    return %c0_i32, %c0_i32_0 : i32, i32
  }
  func.func @transform_20(%arg0: i32) -> (i32, i32) {
    %c0_i32 = arith.constant 0 : i32
    %c0_i32_0 = arith.constant 0 : i32
    %c0_i32_1 = arith.constant 0 : i32
    return %c0_i32, %c0_i32_0 : i32, i32
  }
  func.func @transform_21(%arg0: i32) -> (i32, i32, i32) {
    %c0_i32 = arith.constant 0 : i32
    %c0_i32_0 = arith.constant 0 : i32
    %c0_i32_1 = arith.constant 0 : i32
    %c0_i32_2 = arith.constant 0 : i32
    return %c0_i32, %c0_i32_0, %c0_i32_1 : i32, i32, i32
  }
  func.func @transform_22(%arg0: i32) -> (i32, i32) {
    %c0_i32 = arith.constant 0 : i32
    %c0_i32_0 = arith.constant 0 : i32
    %c0_i32_1 = arith.constant 0 : i32
    return %c0_i32, %c0_i32_0 : i32, i32
  }
  func.func @transform_23(%arg0: i32) -> (i32, i32) {
    %c0_i32 = arith.constant 0 : i32
    %c0_i32_0 = arith.constant 0 : i32
    %c0_i32_1 = arith.constant 0 : i32
    return %c0_i32, %c0_i32_0 : i32, i32
  }
  func.func @transform_24(%arg0: i32) -> (i32, i32) {
    %c0_i32 = arith.constant 0 : i32
    %c0_i32_0 = arith.constant 0 : i32
    %c0_i32_1 = arith.constant 0 : i32
    return %c0_i32, %c0_i32_0 : i32, i32
  }
  func.func @transform_25(%arg0: i32) -> (i32, i32) {
    %c0_i32 = arith.constant 0 : i32
    %c0_i32_0 = arith.constant 0 : i32
    %c0_i32_1 = arith.constant 0 : i32
    return %c0_i32, %c0_i32_0 : i32, i32
  }
  func.func @transform_26(%arg0: i32) -> (i32, i32, i32) {
    %c0_i32 = arith.constant 0 : i32
    %c0_i32_0 = arith.constant 0 : i32
    %c0_i32_1 = arith.constant 0 : i32
    %c0_i32_2 = arith.constant 0 : i32
    return %c0_i32, %c0_i32_0, %c0_i32_1 : i32, i32, i32
  }
  func.func @transform_27(%arg0: i32) -> (i32, i32) {
    %c0_i32 = arith.constant 0 : i32
    %c0_i32_0 = arith.constant 0 : i32
    %c0_i32_1 = arith.constant 0 : i32
    return %c0_i32, %c0_i32_0 : i32, i32
  }
  func.func @transform_28(%arg0: i32) -> (i32, i32) {
    %c0_i32 = arith.constant 0 : i32
    %c0_i32_0 = arith.constant 0 : i32
    %c0_i32_1 = arith.constant 0 : i32
    return %c0_i32, %c0_i32_0 : i32, i32
  }
  func.func @transform_29(%arg0: i32) -> (i32, i32, i32) {
    %c0_i32 = arith.constant 0 : i32
    %c0_i32_0 = arith.constant 0 : i32
    %c0_i32_1 = arith.constant 0 : i32
    %c0_i32_2 = arith.constant 0 : i32
    return %c0_i32, %c0_i32_0, %c0_i32_1 : i32, i32, i32
  }
  func.func @transform_30(%arg0: i32) -> (i32, i32) {
    %c0_i32 = arith.constant 0 : i32
    %c0_i32_0 = arith.constant 0 : i32
    %c0_i32_1 = arith.constant 0 : i32
    return %c0_i32, %c0_i32_0 : i32, i32
  }
  func.func @transform_31(%arg0: i32) -> (i32, i32) {
    %c0_i32 = arith.constant 0 : i32
    %c0_i32_0 = arith.constant 0 : i32
    %c0_i32_1 = arith.constant 0 : i32
    return %c0_i32, %c0_i32_0 : i32, i32
  }
  func.func @transform_32(%arg0: i32) -> (i32, i32) {
    %c0_i32 = arith.constant 0 : i32
    %c0_i32_0 = arith.constant 0 : i32
    %c0_i32_1 = arith.constant 0 : i32
    return %c0_i32, %c0_i32_0 : i32, i32
  }
  func.func @transform_33(%arg0: i32) -> (i32, i32) {
    %c0_i32 = arith.constant 0 : i32
    %c0_i32_0 = arith.constant 0 : i32
    %c0_i32_1 = arith.constant 0 : i32
    return %c0_i32, %c0_i32_0 : i32, i32
  }
  func.func @transform_34(%arg0: i32) -> (i32, i32) {
    %c0_i32 = arith.constant 0 : i32
    %c0_i32_0 = arith.constant 0 : i32
    %c0_i32_1 = arith.constant 0 : i32
    return %c0_i32, %c0_i32_0 : i32, i32
  }
  func.func @transform_35(%arg0: i32) -> (i32, i32) {
    %c0_i32 = arith.constant 0 : i32
    %c0_i32_0 = arith.constant 0 : i32
    %c0_i32_1 = arith.constant 0 : i32
    return %c0_i32, %c0_i32_0 : i32, i32
  }
  func.func @transform_36(%arg0: i32) -> (i32, i32, i32) {
    %c0_i32 = arith.constant 0 : i32
    %c0_i32_0 = arith.constant 0 : i32
    %c0_i32_1 = arith.constant 0 : i32
    return %arg0, %c0_i32, %c0_i32_0 : i32, i32, i32
  }
  func.func @transform_37(%arg0: i32) -> (i32, i32, i32) {
    %c0_i32 = arith.constant 0 : i32
    %c0_i32_0 = arith.constant 0 : i32
    %c0_i32_1 = arith.constant 0 : i32
    return %arg0, %c0_i32, %c0_i32_0 : i32, i32, i32
  }
  func.func @transform_38(%arg0: i32) -> (i32, i32, i32) {
    %c0_i32 = arith.constant 0 : i32
    %c0_i32_0 = arith.constant 0 : i32
    %c0_i32_1 = arith.constant 0 : i32
    return %arg0, %c0_i32, %c0_i32_0 : i32, i32, i32
  }
}

</mosaic_0001>

<llo_original>
// kernel: _lambda_.1
$region0: #{_lambda_.1}
  #allocation0 [shape = 'u32[]', space=smem, size = 0x4, offset = 0x4, fixed_abs, tag = 'smem constant byte address 0x4 - core index']
  #allocation1 [shape = 'u32[72,128]{1,0:T(1,128)}', space=vmem, size = 0x9000, scoped, tag = 'internal scratch']
  %s0 = inlined_call_operand.smem [shape: u32[39], index: -1, kind: input, shape index: {}]
  %s1 = sld [smem:[%s0]]
  %s2 = scalar_lea.smem %s0, 1
  %s3 = sld [smem:[%s2]]
  %s4 = scalar_lea.smem %s0, 2
  %s5 = sld [smem:[%s4]]
  %s6 = scalar_lea.smem %s0, 3
  %s7 = sld [smem:[%s6]]
  %s8 = scalar_lea.smem %s0, 4
  %s9 = sld [smem:[%s8]]
  %s10 = scalar_lea.smem %s0, 5
  %s11 = sld [smem:[%s10]]
  %s12 = scalar_lea.smem %s0, 6
  %s13 = sld [smem:[%s12]]
  %s14 = scalar_lea.smem %s0, 7
  %s15 = sld [smem:[%s14]]
  %s16 = scalar_lea.smem %s0, 8
  %s17 = sld [smem:[%s16]]
  %s18 = scalar_lea.smem %s0, 9
  %s19 = sld [smem:[%s18]]
  %s20 = scalar_lea.smem %s0, 10
  %s21 = sld [smem:[%s20]]
  %s22 = scalar_lea.smem %s0, 11
  %s23 = sld [smem:[%s22]]
  %s24 = scalar_lea.smem %s0, 12
  %s25 = sld [smem:[%s24]]
  %s26 = scalar_lea.smem %s0, 13
  %s27 = sld [smem:[%s26]]
  %s28 = scalar_lea.smem %s0, 14
  %s29 = sld [smem:[%s28]]
  %s30 = scalar_lea.smem %s0, 15
  %s31 = sld [smem:[%s30]]
  %s32 = scalar_lea.smem %s0, 16
  %s33 = sld [smem:[%s32]]
  %s34 = scalar_lea.smem %s0, 17
  %s35 = sld [smem:[%s34]]
  %s36 = scalar_lea.smem %s0, 18
  %s37 = sld [smem:[%s36]]
  %s38 = scalar_lea.smem %s0, 19
  %s39 = sld [smem:[%s38]]
  %s40 = scalar_lea.smem %s0, 20
  %s41 = sld [smem:[%s40]]
  %s42 = scalar_lea.smem %s0, 21
  %s43 = sld [smem:[%s42]]
  %s44 = scalar_lea.smem %s0, 22
  %s45 = sld [smem:[%s44]]
  %s46 = scalar_lea.smem %s0, 23
  %s47 = sld [smem:[%s46]]
  %s48 = scalar_lea.smem %s0, 24
  %s49 = sld [smem:[%s48]]
  %s50 = scalar_lea.smem %s0, 25
  %s51 = sld [smem:[%s50]]
  %s52 = scalar_lea.smem %s0, 26
  %s53 = sld [smem:[%s52]]
  %s54 = scalar_lea.smem %s0, 27
  %s55 = sld [smem:[%s54]]
  %s56 = scalar_lea.smem %s0, 28
  %s57 = sld [smem:[%s56]]
  %s58 = scalar_lea.smem %s0, 29
  %s59 = sld [smem:[%s58]]
  %s60 = scalar_lea.smem %s0, 30
  %s61 = sld [smem:[%s60]]
  %s62 = scalar_lea.smem %s0, 31
  %s63 = sld [smem:[%s62]]
  %s64 = scalar_lea.smem %s0, 32
  %s65 = sld [smem:[%s64]]
  %s66 = scalar_lea.smem %s0, 33
  %s67 = sld [smem:[%s66]]
  %s68 = scalar_lea.smem %s0, 34
  %s69 = sld [smem:[%s68]]
  %s70 = scalar_lea.smem %s0, 35
  %s71 = sld [smem:[%s70]]
  %s72 = scalar_lea.smem %s0, 36
  %s73 = sld [smem:[%s72]]
  %s74 = scalar_lea.smem %s0, 37
  %s75 = sld [smem:[%s74]]
  %s76 = scalar_lea.smem %s0, 38
  %s77 = sld [smem:[%s76]]
  %78 = xla_tuple %s73, %s75, %s77
  %s79 = sld [smem:[#allocation0]]
  $region198: #{_lambda_.1} parent=0
    _
  %s81 = ssub.s32 1, %s79
  %s82 = scalar_select 0, %s81, %s79
  $region1: #{_lambda_.1} parent=0
    #allocation2 [shape = 'u8[2048]{0}', space=vmem, size = 0x800, scoped, tag = 'input window, operand 1, single buffered']
    #allocation3 [shape = 's32[1]{0}', space=sflag, size = 0x4, scoped, tag = 'scoped memory for _lambda_.1']
    #allocation4 [shape = 'u8[2048]{0}', space=vmem, size = 0x800, scoped, tag = 'input window, operand 4, single buffered']
    #allocation5 [shape = 's32[1]{0}', space=sflag, size = 0x4, scoped, tag = 'scoped memory for _lambda_.1']
    #allocation6 [shape = 'u8[2048]{0}', space=vmem, size = 0x800, scoped, tag = 'input window, operand 6, single buffered']
    #allocation7 [shape = 'u8[2048]{0}', space=vmem, size = 0x800, scoped, tag = 'input window, operand 8, single buffered']
    #allocation8 [shape = 's32[1]{0}', space=sflag, size = 0x4, scoped, tag = 'scoped memory for _lambda_.1']
    #allocation9 [shape = 'u8[2048]{0}', space=vmem, size = 0x800, scoped, tag = 'input window, operand 11, single buffered']
    #allocation10 [shape = 'u8[2048]{0}', space=vmem, size = 0x800, scoped, tag = 'input window, operand 14, single buffered']
    #allocation11 [shape = 's32[1]{0}', space=sflag, size = 0x4, scoped, tag = 'scoped memory for _lambda_.1']
    #allocation12 [shape = 'u8[2048]{0}', space=vmem, size = 0x800, scoped, tag = 'input window, operand 35, single buffered']
    %83 = vsyncpa [#allocation3], 0
    %84 = vsyncpa [#allocation5], 0
    %85 = vsyncpa [#allocation8], 0
    %86 = vsyncpa [#allocation11], 0
    // Predicated region
    $region2: #{_lambda_.1} parent=1 // pred_check
      _
    $region3: #{_lambda_.1} parent=1 // pred_check_branch
      %88 = sbr.rel (0) target = $region5
    $region4: #{_lambda_.1} parent=1 // pred_region
      _
    $region5: #{_lambda_.1} parent=1 // pred_fallthru
      _
    // Predicated region
    $region6: #{_lambda_.1} parent=1 // pred_check
      _
    $region7: #{_lambda_.1} parent=1 // pred_check_branch
      %90 = sbr.rel (0) target = $region9
    $region8: #{_lambda_.1} parent=1 // pred_region
      %92 = vsyncadd [#allocation3], 0
      %s94 = sshll.u32 %s3, 4
      %s95 = int_to_ptr.hbm [resolvable:$true] %s94
      %s96 = sshll.u32 [#allocation2], 4
      %s97 = int_to_ptr.vmem [resolvable:$true] %s96
      %99 = dma.hbm_to_vmem [thread:$0]  %s95, 64, %s97, [#allocation3]
    $region9: #{_lambda_.1} parent=1 // pred_fallthru
      _
    // Predicated region
    $region10: #{_lambda_.1} parent=1 // pred_check
      _
    $region11: #{_lambda_.1} parent=1 // pred_check_branch
      %101 = sbr.rel (0) target = $region13
    $region12: #{_lambda_.1} parent=1 // pred_region
      _
    $region13: #{_lambda_.1} parent=1 // pred_fallthru
      _
    // Predicated region
    $region14: #{_lambda_.1} parent=1 // pred_check
      _
    $region15: #{_lambda_.1} parent=1 // pred_check_branch
      %103 = sbr.rel (0) target = $region17
    $region16: #{_lambda_.1} parent=1 // pred_region
      _
    $region17: #{_lambda_.1} parent=1 // pred_fallthru
      _
    // Predicated region
    $region18: #{_lambda_.1} parent=1 // pred_check
      _
    $region19: #{_lambda_.1} parent=1 // pred_check_branch
      %105 = sbr.rel (0) target = $region21
    $region20: #{_lambda_.1} parent=1 // pred_region
      %107 = vsyncadd [#allocation5], 0
      %s109 = sshll.u32 %s9, 4
      %s110 = int_to_ptr.hbm [resolvable:$true] %s109
      %s111 = sshll.u32 [#allocation4], 4
      %s112 = int_to_ptr.vmem [resolvable:$true] %s111
      %114 = dma.hbm_to_vmem [thread:$0]  %s110, 64, %s112, [#allocation5]
    $region21: #{_lambda_.1} parent=1 // pred_fallthru
      _
    // Predicated region
    $region22: #{_lambda_.1} parent=1 // pred_check
      _
    $region23: #{_lambda_.1} parent=1 // pred_check_branch
      %116 = sbr.rel (0) target = $region25
    $region24: #{_lambda_.1} parent=1 // pred_region
      _
    $region25: #{_lambda_.1} parent=1 // pred_fallthru
      _
    // Predicated region
    $region26: #{_lambda_.1} parent=1 // pred_check
      _
    $region27: #{_lambda_.1} parent=1 // pred_check_branch
      %118 = sbr.rel (0) target = $region29
    $region28: #{_lambda_.1} parent=1 // pred_region
      %120 = vsyncadd [#allocation5], 0
      %s122 = sshll.u32 %s13, 4
      %s123 = int_to_ptr.hbm [resolvable:$true] %s122
      %s124 = sshll.u32 [#allocation6], 4
      %s125 = int_to_ptr.vmem [resolvable:$true] %s124
      %127 = dma.hbm_to_vmem [thread:$0]  %s123, 64, %s125, [#allocation5]
    $region29: #{_lambda_.1} parent=1 // pred_fallthru
      _
    // Predicated region
    $region30: #{_lambda_.1} parent=1 // pred_check
      _
    $region31: #{_lambda_.1} parent=1 // pred_check_branch
      %129 = sbr.rel (0) target = $region33
    $region32: #{_lambda_.1} parent=1 // pred_region
      _
    $region33: #{_lambda_.1} parent=1 // pred_fallthru
      _
    // Predicated region
    $region34: #{_lambda_.1} parent=1 // pred_check
      _
    $region35: #{_lambda_.1} parent=1 // pred_check_branch
      %131 = sbr.rel (0) target = $region37
    $region36: #{_lambda_.1} parent=1 // pred_region
      %133 = vsyncadd [#allocation8], 0
      %s135 = sshll.u32 %s17, 4
      %s136 = int_to_ptr.hbm [resolvable:$true] %s135
      %s137 = sshll.u32 [#allocation7], 4
      %s138 = int_to_ptr.vmem [resolvable:$true] %s137
      %140 = dma.hbm_to_vmem [thread:$0]  %s136, 64, %s138, [#allocation8]
    $region37: #{_lambda_.1} parent=1 // pred_fallthru
      _
    // Predicated region
    $region38: #{_lambda_.1} parent=1 // pred_check
      _
    $region39: #{_lambda_.1} parent=1 // pred_check_branch
      %142 = sbr.rel (0) target = $region41
    $region40: #{_lambda_.1} parent=1 // pred_region
      _
    $region41: #{_lambda_.1} parent=1 // pred_fallthru
      _
    // Predicated region
    $region42: #{_lambda_.1} parent=1 // pred_check
      _
    $region43: #{_lambda_.1} parent=1 // pred_check_branch
      %144 = sbr.rel (0) target = $region45
    $region44: #{_lambda_.1} parent=1 // pred_region
      _
    $region45: #{_lambda_.1} parent=1 // pred_fallthru
      _
    // Predicated region
    $region46: #{_lambda_.1} parent=1 // pred_check
      _
    $region47: #{_lambda_.1} parent=1 // pred_check_branch
      %146 = sbr.rel (0) target = $region49
    $region48: #{_lambda_.1} parent=1 // pred_region
      %148 = vsyncadd [#allocation8], 0
      %s150 = sshll.u32 %s23, 4
      %s151 = int_to_ptr.hbm [resolvable:$true] %s150
      %s152 = sshll.u32 [#allocation9], 4
      %s153 = int_to_ptr.vmem [resolvable:$true] %s152
      %155 = dma.hbm_to_vmem [thread:$0]  %s151, 64, %s153, [#allocation8]
    $region49: #{_lambda_.1} parent=1 // pred_fallthru
      _
    // Predicated region
    $region50: #{_lambda_.1} parent=1 // pred_check
      _
    $region51: #{_lambda_.1} parent=1 // pred_check_branch
      %157 = sbr.rel (0) target = $region53
    $region52: #{_lambda_.1} parent=1 // pred_region
      _
    $region53: #{_lambda_.1} parent=1 // pred_fallthru
      _
    // Predicated region
    $region54: #{_lambda_.1} parent=1 // pred_check
      _
    $region55: #{_lambda_.1} parent=1 // pred_check_branch
      %159 = sbr.rel (0) target = $region57
    $region56: #{_lambda_.1} parent=1 // pred_region
      _
    $region57: #{_lambda_.1} parent=1 // pred_fallthru
      _
    // Predicated region
    $region58: #{_lambda_.1} parent=1 // pred_check
      _
    $region59: #{_lambda_.1} parent=1 // pred_check_branch
      %161 = sbr.rel (0) target = $region61
    $region60: #{_lambda_.1} parent=1 // pred_region
      %163 = vsyncadd [#allocation11], 0
      %s165 = sshll.u32 %s29, 4
      %s166 = int_to_ptr.hbm [resolvable:$true] %s165
      %s167 = sshll.u32 [#allocation10], 4
      %s168 = int_to_ptr.vmem [resolvable:$true] %s167
      %170 = dma.hbm_to_vmem [thread:$0]  %s166, 64, %s168, [#allocation11]
    $region61: #{_lambda_.1} parent=1 // pred_fallthru
      _
    // Predicated region
    $region62: #{_lambda_.1} parent=1 // pred_check
      _
    $region63: #{_lambda_.1} parent=1 // pred_check_branch
      %172 = sbr.rel (0) target = $region65
    $region64: #{_lambda_.1} parent=1 // pred_region
      _
    $region65: #{_lambda_.1} parent=1 // pred_fallthru
      _
    // Predicated region
    $region66: #{_lambda_.1} parent=1 // pred_check
      _
    $region67: #{_lambda_.1} parent=1 // pred_check_branch
      %174 = sbr.rel (0) target = $region69
    $region68: #{_lambda_.1} parent=1 // pred_region
      _
    $region69: #{_lambda_.1} parent=1 // pred_fallthru
      _
    // Predicated region
    $region70: #{_lambda_.1} parent=1 // pred_check
      _
    $region71: #{_lambda_.1} parent=1 // pred_check_branch
      %176 = sbr.rel (0) target = $region73
    $region72: #{_lambda_.1} parent=1 // pred_region
      _
    $region73: #{_lambda_.1} parent=1 // pred_fallthru
      _
    // Predicated region
    $region74: #{_lambda_.1} parent=1 // pred_check
      _
    $region75: #{_lambda_.1} parent=1 // pred_check_branch
      %178 = sbr.rel (0) target = $region77
    $region76: #{_lambda_.1} parent=1 // pred_region
      _
    $region77: #{_lambda_.1} parent=1 // pred_fallthru
      _
    // Predicated region
    $region78: #{_lambda_.1} parent=1 // pred_check
      _
    $region79: #{_lambda_.1} parent=1 // pred_check_branch
      %180 = sbr.rel (0) target = $region81
    $region80: #{_lambda_.1} parent=1 // pred_region
      _
    $region81: #{_lambda_.1} parent=1 // pred_fallthru
      _
    // Predicated region
    $region82: #{_lambda_.1} parent=1 // pred_check
      _
    $region83: #{_lambda_.1} parent=1 // pred_check_branch
      %182 = sbr.rel (0) target = $region85
    $region84: #{_lambda_.1} parent=1 // pred_region
      _
    $region85: #{_lambda_.1} parent=1 // pred_fallthru
      _
    // Predicated region
    $region86: #{_lambda_.1} parent=1 // pred_check
      _
    $region87: #{_lambda_.1} parent=1 // pred_check_branch
      %184 = sbr.rel (0) target = $region89
    $region88: #{_lambda_.1} parent=1 // pred_region
      _
    $region89: #{_lambda_.1} parent=1 // pred_fallthru
      _
    // Predicated region
    $region90: #{_lambda_.1} parent=1 // pred_check
      _
    $region91: #{_lambda_.1} parent=1 // pred_check_branch
      %186 = sbr.rel (0) target = $region93
    $region92: #{_lambda_.1} parent=1 // pred_region
      _
    $region93: #{_lambda_.1} parent=1 // pred_fallthru
      _
    // Predicated region
    $region94: #{_lambda_.1} parent=1 // pred_check
      _
    $region95: #{_lambda_.1} parent=1 // pred_check_branch
      %188 = sbr.rel (0) target = $region97
    $region96: #{_lambda_.1} parent=1 // pred_region
      _
    $region97: #{_lambda_.1} parent=1 // pred_fallthru
      _
    // Predicated region
    $region98: #{_lambda_.1} parent=1 // pred_check
      _
    $region99: #{_lambda_.1} parent=1 // pred_check_branch
      %190 = sbr.rel (0) target = $region101
    $region100: #{_lambda_.1} parent=1 // pred_region
      _
    $region101: #{_lambda_.1} parent=1 // pred_fallthru
      _
    // Predicated region
    $region102: #{_lambda_.1} parent=1 // pred_check
      _
    $region103: #{_lambda_.1} parent=1 // pred_check_branch
      %192 = sbr.rel (0) target = $region105
    $region104: #{_lambda_.1} parent=1 // pred_region
      _
    $region105: #{_lambda_.1} parent=1 // pred_fallthru
      _
    // Predicated region
    $region106: #{_lambda_.1} parent=1 // pred_check
      _
    $region107: #{_lambda_.1} parent=1 // pred_check_branch
      %194 = sbr.rel (0) target = $region109
    $region108: #{_lambda_.1} parent=1 // pred_region
      _
    $region109: #{_lambda_.1} parent=1 // pred_fallthru
      _
    // Predicated region
    $region110: #{_lambda_.1} parent=1 // pred_check
      _
    $region111: #{_lambda_.1} parent=1 // pred_check_branch
      %196 = sbr.rel (0) target = $region113
    $region112: #{_lambda_.1} parent=1 // pred_region
      _
    $region113: #{_lambda_.1} parent=1 // pred_fallthru
      _
    // Predicated region
    $region114: #{_lambda_.1} parent=1 // pred_check
      _
    $region115: #{_lambda_.1} parent=1 // pred_check_branch
      %198 = sbr.rel (0) target = $region117
    $region116: #{_lambda_.1} parent=1 // pred_region
      _
    $region117: #{_lambda_.1} parent=1 // pred_fallthru
      _
    // Predicated region
    $region118: #{_lambda_.1} parent=1 // pred_check
      _
    $region119: #{_lambda_.1} parent=1 // pred_check_branch
      %200 = sbr.rel (0) target = $region121
    $region120: #{_lambda_.1} parent=1 // pred_region
      _
    $region121: #{_lambda_.1} parent=1 // pred_fallthru
      _
    // Predicated region
    $region122: #{_lambda_.1} parent=1 // pred_check
      _
    $region123: #{_lambda_.1} parent=1 // pred_check_branch
      %202 = sbr.rel (0) target = $region125
    $region124: #{_lambda_.1} parent=1 // pred_region
      _
    $region125: #{_lambda_.1} parent=1 // pred_fallthru
      _
    // Predicated region
    $region126: #{_lambda_.1} parent=1 // pred_check
      _
    $region127: #{_lambda_.1} parent=1 // pred_check_branch
      %204 = sbr.rel (0) target = $region129
    $region128: #{_lambda_.1} parent=1 // pred_region
      _
    $region129: #{_lambda_.1} parent=1 // pred_fallthru
      _
    // Predicated region
    $region130: #{_lambda_.1} parent=1 // pred_check
      _
    $region131: #{_lambda_.1} parent=1 // pred_check_branch
      %206 = sbr.rel (0) target = $region133
    $region132: #{_lambda_.1} parent=1 // pred_region
      _
    $region133: #{_lambda_.1} parent=1 // pred_fallthru
      _
    // Predicated region
    $region134: #{_lambda_.1} parent=1 // pred_check
      _
    $region135: #{_lambda_.1} parent=1 // pred_check_branch
      %208 = sbr.rel (0) target = $region137
    $region136: #{_lambda_.1} parent=1 // pred_region
      _
    $region137: #{_lambda_.1} parent=1 // pred_fallthru
      _
    // Predicated region
    $region138: #{_lambda_.1} parent=1 // pred_check
      _
    $region139: #{_lambda_.1} parent=1 // pred_check_branch
      %210 = sbr.rel (0) target = $region141
    $region140: #{_lambda_.1} parent=1 // pred_region
      _
    $region141: #{_lambda_.1} parent=1 // pred_fallthru
      _
    // Predicated region
    $region142: #{_lambda_.1} parent=1 // pred_check
      _
    $region143: #{_lambda_.1} parent=1 // pred_check_branch
      %212 = sbr.rel (0) target = $region145
    $region144: #{_lambda_.1} parent=1 // pred_region
      %214 = vsyncadd [#allocation11], 0
      %s216 = sshll.u32 %s71, 4
      %s217 = int_to_ptr.hbm [resolvable:$true] %s216
      %s218 = sshll.u32 [#allocation12], 4
      %s219 = int_to_ptr.vmem [resolvable:$true] %s218
      %221 = dma.hbm_to_vmem [thread:$0]  %s217, 64, %s219, [#allocation11]
    $region145: #{_lambda_.1} parent=1 // pred_fallthru
      _
    // Predicated region
    $region146: #{_lambda_.1} parent=1 // pred_check
      _
    $region147: #{_lambda_.1} parent=1 // pred_check_branch
      %223 = sbr.rel (0) target = $region149
    $region148: #{_lambda_.1} parent=1 // pred_region
      %225 = dma.done [#allocation3], 64
    $region149: #{_lambda_.1} parent=1 // pred_fallthru
      _
    // Predicated region
    $region150: #{_lambda_.1} parent=1 // pred_check
      _
    $region151: #{_lambda_.1} parent=1 // pred_check_branch
      %227 = sbr.rel (0) target = $region153
    $region152: #{_lambda_.1} parent=1 // pred_region
      %229 = dma.done [#allocation5], 64
    $region153: #{_lambda_.1} parent=1 // pred_fallthru
      _
    // Predicated region
    $region154: #{_lambda_.1} parent=1 // pred_check
      _
    $region155: #{_lambda_.1} parent=1 // pred_check_branch
      %231 = sbr.rel (0) target = $region157
    $region156: #{_lambda_.1} parent=1 // pred_region
      %233 = dma.done [#allocation5], 64
    $region157: #{_lambda_.1} parent=1 // pred_fallthru
      _
    // Predicated region
    $region158: #{_lambda_.1} parent=1 // pred_check
      _
    $region159: #{_lambda_.1} parent=1 // pred_check_branch
      %235 = sbr.rel (0) target = $region161
    $region160: #{_lambda_.1} parent=1 // pred_region
      %237 = dma.done [#allocation8], 64
    $region161: #{_lambda_.1} parent=1 // pred_fallthru
      _
    // Predicated region
    $region162: #{_lambda_.1} parent=1 // pred_check
      _
    $region163: #{_lambda_.1} parent=1 // pred_check_branch
      %239 = sbr.rel (0) target = $region165
    $region164: #{_lambda_.1} parent=1 // pred_region
      %241 = dma.done [#allocation8], 64
    $region165: #{_lambda_.1} parent=1 // pred_fallthru
      _
    // Predicated region
    $region166: #{_lambda_.1} parent=1 // pred_check
      _
    $region167: #{_lambda_.1} parent=1 // pred_check_branch
      %243 = sbr.rel (0) target = $region169
    $region168: #{_lambda_.1} parent=1 // pred_region
      %245 = dma.done [#allocation11], 64
    $region169: #{_lambda_.1} parent=1 // pred_fallthru
      _
    // Predicated region
    $region170: #{_lambda_.1} parent=1 // pred_check
      _
    $region171: #{_lambda_.1} parent=1 // pred_check_branch
      %247 = sbr.rel (0) target = $region173
    $region172: #{_lambda_.1} parent=1 // pred_region
      %249 = dma.done [#allocation11], 64
    $region173: #{_lambda_.1} parent=1 // pred_fallthru
      _
    %v251 = vld [vmem:[%s1] sm:$0xff]
    %v252 = vld [vmem:[%s7] sm:$0x11]
    %v253 = vld [vmem:[%s7 + $0x8] sm:$0x11]
    %255 = vst [vmem:[#allocation1] ss:$4 sm:$0xff] %v251
    %v256 = vld.sshfl [vmem:[#allocation1 + $0x18] sm:$0xff pattern:$0x73625140]
    %258 = vrot.lane.b32.xlu0 %v256, 17
    %v259 = vpop.permute.xlu0 %258
    %260 = vst [vmem:[#allocation1] ss:$4 sm:$0xff] %v251
    %v261 = vld.sshfl [vmem:[#allocation1] sm:$0xff pattern:$0x73625140]
    %v263 = vld.sshfl [vmem:[#allocation1 + $0x8] sm:$0xff pattern:$0x73625140]
    %v265 = vld.sshfl [vmem:[#allocation1 + $0x10] sm:$0xff pattern:$0x73625140]
    %v267 = vld.sshfl [vmem:[#allocation1 + $0x18] sm:$0xff pattern:$0x73625140]
    %269 = vrot.lane.b32.xlu0 %v261, 17
    %v270 = vpop.permute.xlu0 %269
    %271 = vrot.lane.b32.xlu0 %v263, 17
    %v272 = vpop.permute.xlu0 %271
    %273 = vrot.lane.b32.xlu0 %v265, 17
    %v274 = vpop.permute.xlu0 %273
    %275 = vrot.lane.b32.xlu0 %v267, 17
    %v276 = vpop.permute.xlu0 %275
    %vm277 = vcmask 138240
    %v278 = vsel %vm277, %v270, %v272
    %v279 = vsel %vm277, %v272, %v274
    %v280 = vsel %vm277, %v274, %v276
    %vm284 = vcmask 138240
    %v287 = vsel %vm284, %v259, %v270
    %v291 = vunpack.c.l.b16 %v252
    %v292 = vunpack.c.h.b16 %v252
    %v293 = vunpack.c.l.b16 %v253
    %v294 = vunpack.c.h.b16 %v253
    %v295 = vpack.c.b16 %v291, %v291
    %v296 = vpack.c.b16 %v292, %v292
    %v297 = vpack.c.b16 %v293, %v293
    %v298 = vpack.c.b16 %v294, %v294
    %v300 = vpack.i.b16 %v295, %v295
    %v302 = vperm.slane %v300, 0
    %v304 = vpack.i.b16 %v296, %v296
    %v306 = vperm.slane %v304, 0
    %v308 = vpack.i.b16 %v297, %v297
    %v310 = vperm.slane %v308, 0
    %v312 = vpack.i.b16 %v298, %v298
    %v314 = vperm.slane %v312, 0
    %v315 = vunpack.c.l.bf16 %v287
    %v316 = vunpack.c.l.bf16 %v278
    %v317 = vunpack.c.l.bf16 %v279
    %v318 = vunpack.c.l.bf16 %v280
    %v319 = vunpack.c.l.bf16 %v302
    %v320 = vunpack.c.l.bf16 %v306
    %v321 = vunpack.c.l.bf16 %v310
    %v322 = vunpack.c.l.bf16 %v314
    %v323 = vmul.f32 %v315, %v319
    %v324 = vmul.f32 %v316, %v320
    %v325 = vmul.f32 %v317, %v321
    %v326 = vmul.f32 %v318, %v322
    %v327 = vpack.c.bf16 %v324, %v323
    %v328 = vpack.c.bf16 %v326, %v325
    %v329 = vld [vmem:[%s7] sm:$0x11]
    %v330 = vld [vmem:[%s7 + $0x8] sm:$0x11]
    %331 = vst [vmem:[#allocation1] ss:$4 sm:$0xff] %v251
    %v332 = vld.sshfl [vmem:[#allocation1 + $0x18] sm:$0xff pattern:$0x73625140]
    %334 = vrot.lane.b32.xlu0 %v332, 16
    %v335 = vpop.permute.xlu0 %334
    %336 = vst [vmem:[#allocation1] ss:$4 sm:$0xff] %v251
    %v337 = vld.sshfl [vmem:[#allocation1] sm:$0xff pattern:$0x73625140]
    %v339 = vld.sshfl [vmem:[#allocation1 + $0x8] sm:$0xff pattern:$0x73625140]
    %v341 = vld.sshfl [vmem:[#allocation1 + $0x10] sm:$0xff pattern:$0x73625140]
    %v343 = vld.sshfl [vmem:[#allocation1 + $0x18] sm:$0xff pattern:$0x73625140]
    %345 = vrot.lane.b32.xlu0 %v337, 16
    %v346 = vpop.permute.xlu0 %345
    %347 = vrot.lane.b32.xlu0 %v339, 16
    %v348 = vpop.permute.xlu0 %347
    %349 = vrot.lane.b32.xlu0 %v341, 16
    %v350 = vpop.permute.xlu0 %349
    %351 = vrot.lane.b32.xlu0 %v343, 16
    %v352 = vpop.permute.xlu0 %351
    %vm353 = vcmask 130048
    %v354 = vsel %vm353, %v346, %v348
    %v355 = vsel %vm353, %v348, %v350
    %v356 = vsel %vm353, %v350, %v352
    %vm360 = vcmask 130048
    %v363 = vsel %vm360, %v335, %v346
    %v367 = vunpack.c.l.b16 %v329
    %v368 = vunpack.c.h.b16 %v329
    %v369 = vunpack.c.l.b16 %v330
    %v370 = vunpack.c.h.b16 %v330
    %v371 = vpack.c.b16 %v367, %v367
    %v372 = vpack.c.b16 %v368, %v368
    %v373 = vpack.c.b16 %v369, %v369
    %v374 = vpack.c.b16 %v370, %v370
    %v376 = vshrl.u32 %v371, 16
    %v377 = vpack.i.b16 %v376, %v376
    %v379 = vperm.slane %v377, 0
    %v381 = vshrl.u32 %v372, 16
    %v382 = vpack.i.b16 %v381, %v381
    %v384 = vperm.slane %v382, 0
    %v386 = vshrl.u32 %v373, 16
    %v387 = vpack.i.b16 %v386, %v386
    %v389 = vperm.slane %v387, 0
    %v391 = vshrl.u32 %v374, 16
    %v392 = vpack.i.b16 %v391, %v391
    %v394 = vperm.slane %v392, 0
    %v395 = vunpack.c.l.bf16 %v363
    %v396 = vunpack.c.l.bf16 %v354
    %v397 = vunpack.c.l.bf16 %v355
    %v398 = vunpack.c.l.bf16 %v356
    %v399 = vunpack.c.l.bf16 %v379
    %v400 = vunpack.c.l.bf16 %v384
    %v401 = vunpack.c.l.bf16 %v389
    %v402 = vunpack.c.l.bf16 %v394
    %v403 = vmul.f32 %v395, %v399
    %v404 = vmul.f32 %v396, %v400
    %v405 = vmul.f32 %v397, %v401
    %v406 = vmul.f32 %v398, %v402
    %v407 = vpack.c.bf16 %v404, %v403
    %v408 = vpack.c.bf16 %v406, %v405
    %v409 = vld [vmem:[%s7] sm:$0x22]
    %v410 = vld [vmem:[%s7 + $0x8] sm:$0x22]
    %411 = vst [vmem:[#allocation1] ss:$4 sm:$0xff] %v251
    %v412 = vld.sshfl [vmem:[#allocation1 + $0x18] sm:$0xff pattern:$0x73625140]
    %414 = vrot.lane.b32.xlu0 %v412, 15
    %v415 = vpop.permute.xlu0 %414
    %416 = vst [vmem:[#allocation1] ss:$4 sm:$0xff] %v251
    %v417 = vld.sshfl [vmem:[#allocation1] sm:$0xff pattern:$0x73625140]
    %v419 = vld.sshfl [vmem:[#allocation1 + $0x8] sm:$0xff pattern:$0x73625140]
    %v421 = vld.sshfl [vmem:[#allocation1 + $0x10] sm:$0xff pattern:$0x73625140]
    %v423 = vld.sshfl [vmem:[#allocation1 + $0x18] sm:$0xff pattern:$0x73625140]
    %425 = vrot.lane.b32.xlu0 %v417, 15
    %v426 = vpop.permute.xlu0 %425
    %427 = vrot.lane.b32.xlu0 %v419, 15
    %v428 = vpop.permute.xlu0 %427
    %429 = vrot.lane.b32.xlu0 %v421, 15
    %v430 = vpop.permute.xlu0 %429
    %431 = vrot.lane.b32.xlu0 %v423, 15
    %v432 = vpop.permute.xlu0 %431
    %vm433 = vcmask 121856
    %v434 = vsel %vm433, %v426, %v428
    %v435 = vsel %vm433, %v428, %v430
    %v436 = vsel %vm433, %v430, %v432
    %vm440 = vcmask 121856
    %v443 = vsel %vm440, %v415, %v426
    %v447 = vunpack.c.l.b16 %v409
    %v448 = vunpack.c.h.b16 %v409
    %v449 = vunpack.c.l.b16 %v410
    %v450 = vunpack.c.h.b16 %v410
    %v451 = vpack.c.b16 %v447, %v447
    %v452 = vpack.c.b16 %v448, %v448
    %v453 = vpack.c.b16 %v449, %v449
    %v454 = vpack.c.b16 %v450, %v450
    %v456 = vpack.i.b16 %v451, %v451
    %v458 = vperm.slane %v456, 1
    %v460 = vpack.i.b16 %v452, %v452
    %v462 = vperm.slane %v460, 1
    %v464 = vpack.i.b16 %v453, %v453
    %v466 = vperm.slane %v464, 1
    %v468 = vpack.i.b16 %v454, %v454
    %v470 = vperm.slane %v468, 1
    %v471 = vunpack.c.l.bf16 %v443
    %v472 = vunpack.c.l.bf16 %v434
    %v473 = vunpack.c.l.bf16 %v435
    %v474 = vunpack.c.l.bf16 %v436
    %v475 = vunpack.c.l.bf16 %v458
    %v476 = vunpack.c.l.bf16 %v462
    %v477 = vunpack.c.l.bf16 %v466
    %v478 = vunpack.c.l.bf16 %v470
    %v479 = vmul.f32 %v471, %v475
    %v480 = vmul.f32 %v472, %v476
    %v481 = vmul.f32 %v473, %v477
    %v482 = vmul.f32 %v474, %v478
    %v483 = vpack.c.bf16 %v480, %v479
    %v484 = vpack.c.bf16 %v482, %v481
    %v485 = vld [vmem:[%s7] sm:$0x22]
    %v486 = vld [vmem:[%s7 + $0x8] sm:$0x22]
    %487 = vst [vmem:[#allocation1] ss:$4 sm:$0xff] %v251
    %v488 = vld.sshfl [vmem:[#allocation1 + $0x18] sm:$0xff pattern:$0x73625140]
    %490 = vrot.lane.b32.xlu0 %v488, 1
    %v491 = vpop.permute.xlu0 %490
    %492 = vst [vmem:[#allocation1] ss:$4 sm:$0xff] %v251
    %v493 = vld.sshfl [vmem:[#allocation1] sm:$0xff pattern:$0x73625140]
    %v495 = vld.sshfl [vmem:[#allocation1 + $0x8] sm:$0xff pattern:$0x73625140]
    %v497 = vld.sshfl [vmem:[#allocation1 + $0x10] sm:$0xff pattern:$0x73625140]
    %v499 = vld.sshfl [vmem:[#allocation1 + $0x18] sm:$0xff pattern:$0x73625140]
    %501 = vrot.lane.b32.xlu0 %v493, 1
    %v502 = vpop.permute.xlu0 %501
    %503 = vrot.lane.b32.xlu0 %v495, 1
    %v504 = vpop.permute.xlu0 %503
    %505 = vrot.lane.b32.xlu0 %v497, 1
    %v506 = vpop.permute.xlu0 %505
    %507 = vrot.lane.b32.xlu0 %v499, 1
    %v508 = vpop.permute.xlu0 %507
    %vm509 = vcmask 7168
    %v510 = vsel %vm509, %v502, %v504
    %v511 = vsel %vm509, %v504, %v506
    %v512 = vsel %vm509, %v506, %v508
    %vm516 = vcmask 7168
    %v519 = vsel %vm516, %v491, %v502
    %v523 = vunpack.c.l.b16 %v485
    %v524 = vunpack.c.h.b16 %v485
    %v525 = vunpack.c.l.b16 %v486
    %v526 = vunpack.c.h.b16 %v486
    %v527 = vpack.c.b16 %v523, %v523
    %v528 = vpack.c.b16 %v524, %v524
    %v529 = vpack.c.b16 %v525, %v525
    %v530 = vpack.c.b16 %v526, %v526
    %v532 = vshrl.u32 %v527, 16
    %v533 = vpack.i.b16 %v532, %v532
    %v535 = vperm.slane %v533, 1
    %v537 = vshrl.u32 %v528, 16
    %v538 = vpack.i.b16 %v537, %v537
    %v540 = vperm.slane %v538, 1
    %v542 = vshrl.u32 %v529, 16
    %v543 = vpack.i.b16 %v542, %v542
    %v545 = vperm.slane %v543, 1
    %v547 = vshrl.u32 %v530, 16
    %v548 = vpack.i.b16 %v547, %v547
    %v550 = vperm.slane %v548, 1
    %v551 = vunpack.c.l.bf16 %v519
    %v552 = vunpack.c.l.bf16 %v510
    %v553 = vunpack.c.l.bf16 %v511
    %v554 = vunpack.c.l.bf16 %v512
    %v555 = vunpack.c.l.bf16 %v535
    %v556 = vunpack.c.l.bf16 %v540
    %v557 = vunpack.c.l.bf16 %v545
    %v558 = vunpack.c.l.bf16 %v550
    %v559 = vmul.f32 %v551, %v555
    %v560 = vmul.f32 %v552, %v556
    %v561 = vmul.f32 %v553, %v557
    %v562 = vmul.f32 %v554, %v558
    %v563 = vpack.c.bf16 %v560, %v559
    %v564 = vpack.c.bf16 %v562, %v561
    %v565 = vld [vmem:[%s7] sm:$0x44]
    %v566 = vld [vmem:[%s7 + $0x8] sm:$0x44]
    %567 = vst [vmem:[#allocation1] ss:$4 sm:$0xff] %v251
    %v568 = vld.sshfl [vmem:[#allocation1] sm:$0xff pattern:$0x73625140]
    %v570 = vld.sshfl [vmem:[#allocation1 + $0x8] sm:$0xff pattern:$0x73625140]
    %v572 = vld.sshfl [vmem:[#allocation1 + $0x10] sm:$0xff pattern:$0x73625140]
    %v574 = vld.sshfl [vmem:[#allocation1 + $0x18] sm:$0xff pattern:$0x73625140]
    %576 = vrot.lane.b32.xlu0 %v568, 127
    %v577 = vpop.permute.xlu0 %576
    %578 = vrot.lane.b32.xlu0 %v570, 127
    %v579 = vpop.permute.xlu0 %578
    %580 = vrot.lane.b32.xlu0 %v572, 127
    %v581 = vpop.permute.xlu0 %580
    %582 = vrot.lane.b32.xlu0 %v574, 127
    %v583 = vpop.permute.xlu0 %582
    %vm584 = vcmask 1039360
    %v585 = vsel %vm584, %v577, %v579
    %v586 = vsel %vm584, %v579, %v581
    %v587 = vsel %vm584, %v581, %v583
    %591 = vst [vmem:[#allocation1] ss:$4 sm:$0xff] %v251
    %v592 = vld.sshfl [vmem:[#allocation1] sm:$0xff pattern:$0x73625140]
    %594 = vrot.lane.b32.xlu0 %v592, 127
    %v595 = vpop.permute.xlu0 %594
    %vm596 = vcmask 1039360
    %v599 = vsel %vm596, %v583, %v595
    %v603 = vunpack.c.l.b16 %v565
    %v604 = vunpack.c.h.b16 %v565
    %v605 = vunpack.c.l.b16 %v566
    %v606 = vunpack.c.h.b16 %v566
    %v607 = vpack.c.b16 %v603, %v603
    %v608 = vpack.c.b16 %v604, %v604
    %v609 = vpack.c.b16 %v605, %v605
    %v610 = vpack.c.b16 %v606, %v606
    %v612 = vshrl.u32 %v607, 16
    %v613 = vpack.i.b16 %v612, %v612
    %v615 = vperm.slane %v613, 2
    %v617 = vshrl.u32 %v608, 16
    %v618 = vpack.i.b16 %v617, %v617
    %v620 = vperm.slane %v618, 2
    %v622 = vshrl.u32 %v609, 16
    %v623 = vpack.i.b16 %v622, %v622
    %v625 = vperm.slane %v623, 2
    %v627 = vshrl.u32 %v610, 16
    %v628 = vpack.i.b16 %v627, %v627
    %v630 = vperm.slane %v628, 2
    %v631 = vunpack.c.l.bf16 %v585
    %v632 = vunpack.c.l.bf16 %v586
    %v633 = vunpack.c.l.bf16 %v587
    %v634 = vunpack.c.l.bf16 %v599
    %v635 = vunpack.c.l.bf16 %v615
    %v636 = vunpack.c.l.bf16 %v620
    %v637 = vunpack.c.l.bf16 %v625
    %v638 = vunpack.c.l.bf16 %v630
    %v639 = vmul.f32 %v631, %v635
    %v640 = vmul.f32 %v632, %v636
    %v641 = vmul.f32 %v633, %v637
    %v642 = vmul.f32 %v634, %v638
    %v643 = vpack.c.bf16 %v640, %v639
    %v644 = vpack.c.bf16 %v642, %v641
    %v645 = vld [vmem:[%s7] sm:$0x88]
    %v646 = vld [vmem:[%s7 + $0x8] sm:$0x88]
    %647 = vst [vmem:[#allocation1] ss:$4 sm:$0xff] %v251
    %v648 = vld.sshfl [vmem:[#allocation1] sm:$0xff pattern:$0x73625140]
    %v650 = vld.sshfl [vmem:[#allocation1 + $0x8] sm:$0xff pattern:$0x73625140]
    %v652 = vld.sshfl [vmem:[#allocation1 + $0x10] sm:$0xff pattern:$0x73625140]
    %v654 = vld.sshfl [vmem:[#allocation1 + $0x18] sm:$0xff pattern:$0x73625140]
    %656 = vrot.lane.b32.xlu0 %v648, 113
    %v657 = vpop.permute.xlu0 %656
    %658 = vrot.lane.b32.xlu0 %v650, 113
    %v659 = vpop.permute.xlu0 %658
    %660 = vrot.lane.b32.xlu0 %v652, 113
    %v661 = vpop.permute.xlu0 %660
    %662 = vrot.lane.b32.xlu0 %v654, 113
    %v663 = vpop.permute.xlu0 %662
    %vm664 = vcmask 924672
    %v665 = vsel %vm664, %v657, %v659
    %v666 = vsel %vm664, %v659, %v661
    %v667 = vsel %vm664, %v661, %v663
    %671 = vst [vmem:[#allocation1] ss:$4 sm:$0xff] %v251
    %v672 = vld.sshfl [vmem:[#allocation1] sm:$0xff pattern:$0x73625140]
    %674 = vrot.lane.b32.xlu0 %v672, 113
    %v675 = vpop.permute.xlu0 %674
    %vm676 = vcmask 924672
    %v679 = vsel %vm676, %v663, %v675
    %v683 = vunpack.c.l.b16 %v645
    %v684 = vunpack.c.h.b16 %v645
    %v685 = vunpack.c.l.b16 %v646
    %v686 = vunpack.c.h.b16 %v646
    %v687 = vpack.c.b16 %v683, %v683
    %v688 = vpack.c.b16 %v684, %v684
    %v689 = vpack.c.b16 %v685, %v685
    %v690 = vpack.c.b16 %v686, %v686
    %v692 = vpack.i.b16 %v687, %v687
    %v694 = vperm.slane %v692, 3
    %v696 = vpack.i.b16 %v688, %v688
    %v698 = vperm.slane %v696, 3
    %v700 = vpack.i.b16 %v689, %v689
    %v702 = vperm.slane %v700, 3
    %v704 = vpack.i.b16 %v690, %v690
    %v706 = vperm.slane %v704, 3
    %v707 = vunpack.c.l.bf16 %v665
    %v708 = vunpack.c.l.bf16 %v666
    %v709 = vunpack.c.l.bf16 %v667
    %v710 = vunpack.c.l.bf16 %v679
    %v711 = vunpack.c.l.bf16 %v694
    %v712 = vunpack.c.l.bf16 %v698
    %v713 = vunpack.c.l.bf16 %v702
    %v714 = vunpack.c.l.bf16 %v706
    %v715 = vmul.f32 %v707, %v711
    %v716 = vmul.f32 %v708, %v712
    %v717 = vmul.f32 %v709, %v713
    %v718 = vmul.f32 %v710, %v714
    %v719 = vpack.c.bf16 %v716, %v715
    %v720 = vpack.c.bf16 %v718, %v717
    %v721 = vld [vmem:[%s7] sm:$0x88]
    %v722 = vld [vmem:[%s7 + $0x8] sm:$0x88]
    %723 = vst [vmem:[#allocation1] ss:$4 sm:$0xff] %v251
    %v724 = vld.sshfl [vmem:[#allocation1] sm:$0xff pattern:$0x73625140]
    %v726 = vld.sshfl [vmem:[#allocation1 + $0x8] sm:$0xff pattern:$0x73625140]
    %v728 = vld.sshfl [vmem:[#allocation1 + $0x10] sm:$0xff pattern:$0x73625140]
    %v730 = vld.sshfl [vmem:[#allocation1 + $0x18] sm:$0xff pattern:$0x73625140]
    %732 = vrot.lane.b32.xlu0 %v724, 112
    %v733 = vpop.permute.xlu0 %732
    %734 = vrot.lane.b32.xlu0 %v726, 112
    %v735 = vpop.permute.xlu0 %734
    %736 = vrot.lane.b32.xlu0 %v728, 112
    %v737 = vpop.permute.xlu0 %736
    %738 = vrot.lane.b32.xlu0 %v730, 112
    %v739 = vpop.permute.xlu0 %738
    %vm740 = vcmask 916480
    %v741 = vsel %vm740, %v733, %v735
    %v742 = vsel %vm740, %v735, %v737
    %v743 = vsel %vm740, %v737, %v739
    %747 = vst [vmem:[#allocation1] ss:$4 sm:$0xff] %v251
    %v748 = vld.sshfl [vmem:[#allocation1] sm:$0xff pattern:$0x73625140]
    %750 = vrot.lane.b32.xlu0 %v748, 112
    %v751 = vpop.permute.xlu0 %750
    %vm752 = vcmask 916480
    %v755 = vsel %vm752, %v739, %v751
    %v759 = vunpack.c.l.b16 %v721
    %v760 = vunpack.c.h.b16 %v721
    %v761 = vunpack.c.l.b16 %v722
    %v762 = vunpack.c.h.b16 %v722
    %v763 = vpack.c.b16 %v759, %v759
    %v764 = vpack.c.b16 %v760, %v760
    %v765 = vpack.c.b16 %v761, %v761
    %v766 = vpack.c.b16 %v762, %v762
    %v768 = vshrl.u32 %v763, 16
    %v769 = vpack.i.b16 %v768, %v768
    %v771 = vperm.slane %v769, 3
    %v773 = vshrl.u32 %v764, 16
    %v774 = vpack.i.b16 %v773, %v773
    %v776 = vperm.slane %v774, 3
    %v778 = vshrl.u32 %v765, 16
    %v779 = vpack.i.b16 %v778, %v778
    %v781 = vperm.slane %v779, 3
    %v783 = vshrl.u32 %v766, 16
    %v784 = vpack.i.b16 %v783, %v783
    %v786 = vperm.slane %v784, 3
    %v787 = vunpack.c.l.bf16 %v741
    %v788 = vunpack.c.l.bf16 %v742
    %v789 = vunpack.c.l.bf16 %v743
    %v790 = vunpack.c.l.bf16 %v755
    %v791 = vunpack.c.l.bf16 %v771
    %v792 = vunpack.c.l.bf16 %v776
    %v793 = vunpack.c.l.bf16 %v781
    %v794 = vunpack.c.l.bf16 %v786
    %v795 = vmul.f32 %v787, %v791
    %v796 = vmul.f32 %v788, %v792
    %v797 = vmul.f32 %v789, %v793
    %v798 = vmul.f32 %v790, %v794
    %v799 = vpack.c.bf16 %v796, %v795
    %v800 = vpack.c.bf16 %v798, %v797
    %v801 = vld [vmem:[%s7 + $0x10] sm:$0x11]
    %v802 = vld [vmem:[%s7 + $0x18] sm:$0x11]
    %803 = vst [vmem:[#allocation1] ss:$4 sm:$0xff] %v251
    %v804 = vld.sshfl [vmem:[#allocation1] sm:$0xff pattern:$0x73625140]
    %v806 = vld.sshfl [vmem:[#allocation1 + $0x8] sm:$0xff pattern:$0x73625140]
    %v808 = vld.sshfl [vmem:[#allocation1 + $0x10] sm:$0xff pattern:$0x73625140]
    %v810 = vld.sshfl [vmem:[#allocation1 + $0x18] sm:$0xff pattern:$0x73625140]
    %812 = vrot.lane.b32.xlu0 %v804, 111
    %v813 = vpop.permute.xlu0 %812
    %814 = vrot.lane.b32.xlu0 %v806, 111
    %v815 = vpop.permute.xlu0 %814
    %816 = vrot.lane.b32.xlu0 %v808, 111
    %v817 = vpop.permute.xlu0 %816
    %818 = vrot.lane.b32.xlu0 %v810, 111
    %v819 = vpop.permute.xlu0 %818
    %vm820 = vcmask 908288
    %v821 = vsel %vm820, %v813, %v815
    %v822 = vsel %vm820, %v815, %v817
    %v823 = vsel %vm820, %v817, %v819
    %827 = vst [vmem:[#allocation1] ss:$4 sm:$0xff] %v251
    %v828 = vld.sshfl [vmem:[#allocation1] sm:$0xff pattern:$0x73625140]
    %830 = vrot.lane.b32.xlu0 %v828, 111
    %v831 = vpop.permute.xlu0 %830
    %vm832 = vcmask 908288
    %v835 = vsel %vm832, %v819, %v831
    %v839 = vunpack.c.l.b16 %v801
    %v840 = vunpack.c.h.b16 %v801
    %v841 = vunpack.c.l.b16 %v802
    %v842 = vunpack.c.h.b16 %v802
    %v843 = vpack.c.b16 %v839, %v839
    %v844 = vpack.c.b16 %v840, %v840
    %v845 = vpack.c.b16 %v841, %v841
    %v846 = vpack.c.b16 %v842, %v842
    %v848 = vpack.i.b16 %v843, %v843
    %v850 = vperm.slane %v848, 0
    %v852 = vpack.i.b16 %v844, %v844
    %v854 = vperm.slane %v852, 0
    %v856 = vpack.i.b16 %v845, %v845
    %v858 = vperm.slane %v856, 0
    %v860 = vpack.i.b16 %v846, %v846
    %v862 = vperm.slane %v860, 0
    %v863 = vunpack.c.l.bf16 %v821
    %v864 = vunpack.c.l.bf16 %v822
    %v865 = vunpack.c.l.bf16 %v823
    %v866 = vunpack.c.l.bf16 %v835
    %v867 = vunpack.c.l.bf16 %v850
    %v868 = vunpack.c.l.bf16 %v854
    %v869 = vunpack.c.l.bf16 %v858
    %v870 = vunpack.c.l.bf16 %v862
    %v871 = vmul.f32 %v863, %v867
    %v872 = vmul.f32 %v864, %v868
    %v873 = vmul.f32 %v865, %v869
    %v874 = vmul.f32 %v866, %v870
    %v875 = vpack.c.bf16 %v872, %v871
    %v876 = vpack.c.bf16 %v874, %v873
    %v879 = vunpack.c.l.b16 %v327
    %v880 = vunpack.c.h.b16 %v327
    %v881 = vunpack.c.l.b16 %v328
    %v882 = vunpack.c.h.b16 %v328
    %v883 = vpack.c.b16 %v879, %v879
    %v884 = vpack.c.b16 %v880, %v880
    %v885 = vpack.c.b16 %v881, %v881
    %v886 = vpack.c.b16 %v882, %v882
    %v893 = vunpack.c.l.b16 %v407
    %v894 = vunpack.c.h.b16 %v407
    %v895 = vunpack.c.l.b16 %v408
    %v896 = vunpack.c.h.b16 %v408
    %v897 = vpack.c.b16 %v893, %v893
    %v898 = vpack.c.b16 %v894, %v894
    %v899 = vpack.c.b16 %v895, %v895
    %v900 = vpack.c.b16 %v896, %v896
    %v902 = vshrl.u32 %v897, 16
    %v904 = vrot.slane %v902, 6
    %v905 = vshll.u32 %v897, 16
    %v907 = vrot.slane %v905, 7
    %v908 = vor.u32 %v904, %v907
    %v910 = vshrl.u32 %v898, 16
    %v912 = vrot.slane %v910, 6
    %v913 = vshll.u32 %v898, 16
    %v915 = vrot.slane %v913, 7
    %v916 = vor.u32 %v912, %v915
    %v918 = vshrl.u32 %v899, 16
    %v920 = vrot.slane %v918, 6
    %v921 = vshll.u32 %v899, 16
    %v923 = vrot.slane %v921, 7
    %v924 = vor.u32 %v920, %v923
    %v926 = vshrl.u32 %v900, 16
    %v928 = vrot.slane %v926, 6
    %v929 = vshll.u32 %v900, 16
    %v931 = vrot.slane %v929, 7
    %v932 = vor.u32 %v928, %v931
    %v939 = vunpack.c.l.b16 %v483
    %v940 = vunpack.c.h.b16 %v483
    %v941 = vunpack.c.l.b16 %v484
    %v942 = vunpack.c.h.b16 %v484
    %v943 = vpack.c.b16 %v939, %v939
    %v944 = vpack.c.b16 %v940, %v940
    %v945 = vpack.c.b16 %v941, %v941
    %v946 = vpack.c.b16 %v942, %v942
    %v947 = vrot.slane %v943, 5
    %v948 = vrot.slane %v944, 5
    %v949 = vrot.slane %v945, 5
    %v950 = vrot.slane %v946, 5
    %v953 = vunpack.c.l.b16 %v563
    %v954 = vunpack.c.h.b16 %v563
    %v955 = vunpack.c.l.b16 %v564
    %v956 = vunpack.c.h.b16 %v564
    %v957 = vpack.c.b16 %v953, %v953
    %v958 = vpack.c.b16 %v954, %v954
    %v959 = vpack.c.b16 %v955, %v955
    %v960 = vpack.c.b16 %v956, %v956
    %v962 = vshrl.u32 %v957, 16
    %v964 = vrot.slane %v962, 3
    %v965 = vshll.u32 %v957, 16
    %v967 = vrot.slane %v965, 4
    %v968 = vor.u32 %v964, %v967
    %v970 = vshrl.u32 %v958, 16
    %v972 = vrot.slane %v970, 3
    %v973 = vshll.u32 %v958, 16
    %v975 = vrot.slane %v973, 4
    %v976 = vor.u32 %v972, %v975
    %v978 = vshrl.u32 %v959, 16
    %v980 = vrot.slane %v978, 3
    %v981 = vshll.u32 %v959, 16
    %v983 = vrot.slane %v981, 4
    %v984 = vor.u32 %v980, %v983
    %v986 = vshrl.u32 %v960, 16
    %v988 = vrot.slane %v986, 3
    %v989 = vshll.u32 %v960, 16
    %v991 = vrot.slane %v989, 4
    %v992 = vor.u32 %v988, %v991
    %s997 = scalar_lea.vmem [#allocation1], 3
    %998 = vst [vmem:[%s997] ss:$4 sm:$0xff] %v251
    %v999 = vld.sshfl [vmem:[#allocation1] sm:$0xff pattern:$0x73625140]
    %v1000 = vld.sshfl [vmem:[#allocation1 + $0x8] sm:$0xff pattern:$0x73625140]
    %v1001 = vld.sshfl [vmem:[#allocation1 + $0x10] sm:$0xff pattern:$0x73625140]
    %v1002 = vld.sshfl [vmem:[#allocation1 + $0x18] sm:$0xff pattern:$0x73625140]
    %v1005 = vunpack.c.l.b16 %v643
    %v1006 = vunpack.c.h.b16 %v643
    %v1007 = vunpack.c.l.b16 %v644
    %v1008 = vunpack.c.h.b16 %v644
    %v1009 = vpack.c.b16 %v1005, %v1005
    %v1010 = vpack.c.b16 %v1006, %v1006
    %v1011 = vpack.c.b16 %v1007, %v1007
    %v1012 = vpack.c.b16 %v1008, %v1008
    %v1014 = vshll.u32 %v1009, 16
    %v1016 = vrot.slane %v1014, 1
    %v1018 = vshll.u32 %v1010, 16
    %v1020 = vrot.slane %v1018, 1
    %v1022 = vshll.u32 %v1011, 16
    %v1024 = vrot.slane %v1022, 1
    %v1026 = vshll.u32 %v1012, 16
    %v1028 = vrot.slane %v1026, 1
    %v1029 = vshrl.u32 %v1009, 16
    %v1031 = vor.u32 %v1029, %v1016
    %v1032 = vshrl.u32 %v1010, 16
    %v1034 = vor.u32 %v1032, %v1020
    %v1035 = vshrl.u32 %v1011, 16
    %v1037 = vor.u32 %v1035, %v1024
    %v1038 = vshrl.u32 %v1012, 16
    %v1040 = vor.u32 %v1038, %v1028
    %v1047 = vunpack.c.l.b16 %v719
    %v1048 = vunpack.c.h.b16 %v719
    %v1049 = vunpack.c.l.b16 %v720
    %v1050 = vunpack.c.h.b16 %v720
    %v1051 = vpack.c.b16 %v1047, %v1047
    %v1052 = vpack.c.b16 %v1048, %v1048
    %v1053 = vpack.c.b16 %v1049, %v1049
    %v1054 = vpack.c.b16 %v1050, %v1050
    %v1055 = vrot.slane %v1051, 7
    %v1056 = vrot.slane %v1052, 7
    %v1057 = vrot.slane %v1053, 7
    %v1058 = vrot.slane %v1054, 7
    %v1061 = vunpack.c.l.b16 %v799
    %v1062 = vunpack.c.h.b16 %v799
    %v1063 = vunpack.c.l.b16 %v800
    %v1064 = vunpack.c.h.b16 %v800
    %v1065 = vpack.c.b16 %v1061, %v1061
    %v1066 = vpack.c.b16 %v1062, %v1062
    %v1067 = vpack.c.b16 %v1063, %v1063
    %v1068 = vpack.c.b16 %v1064, %v1064
    %v1070 = vshrl.u32 %v1065, 16
    %v1072 = vrot.slane %v1070, 5
    %v1073 = vshll.u32 %v1065, 16
    %v1075 = vrot.slane %v1073, 6
    %v1076 = vor.u32 %v1072, %v1075
    %v1078 = vshrl.u32 %v1066, 16
    %v1080 = vrot.slane %v1078, 5
    %v1081 = vshll.u32 %v1066, 16
    %v1083 = vrot.slane %v1081, 6
    %v1084 = vor.u32 %v1080, %v1083
    %v1086 = vshrl.u32 %v1067, 16
    %v1088 = vrot.slane %v1086, 5
    %v1089 = vshll.u32 %v1067, 16
    %v1091 = vrot.slane %v1089, 6
    %v1092 = vor.u32 %v1088, %v1091
    %v1094 = vshrl.u32 %v1068, 16
    %v1096 = vrot.slane %v1094, 5
    %v1097 = vshll.u32 %v1068, 16
    %v1099 = vrot.slane %v1097, 6
    %v1100 = vor.u32 %v1096, %v1099
    %v1107 = vunpack.c.l.b16 %v875
    %v1108 = vunpack.c.h.b16 %v875
    %v1109 = vunpack.c.l.b16 %v876
    %v1110 = vunpack.c.h.b16 %v876
    %v1111 = vpack.c.b16 %v1107, %v1107
    %v1112 = vpack.c.b16 %v1108, %v1108
    %v1113 = vpack.c.b16 %v1109, %v1109
    %v1114 = vpack.c.b16 %v1110, %v1110
    %vm1115 = vcmask 1041408
    %vm1116 = vsmask.f32 1280
    %vm1117 = vmand %vm1115, %vm1116
    %v1118 = vsel %vm1117, %v883, %v908
    %v1119 = vsel %vm1117, %v884, %v916
    %v1120 = vsel %vm1117, %v885, %v924
    %v1121 = vsel %vm1117, %v886, %v932
    %vm1122 = vcmask 1042432
    %v1125 = vsel %vm1122, %v1118, %v947
    %v1129 = vsel %vm1122, %v1119, %v948
    %v1133 = vsel %vm1122, %v1120, %v949
    %v1137 = vsel %vm1122, %v1121, %v950
    %vm1139 = vcmask 1044480
    %vm1140 = vsmask.f32 4352
    %vm1141 = vmand %vm1139, %vm1140
    %v1142 = vsel %vm1141, %v1125, %v968
    %v1143 = vsel %vm1141, %v1129, %v976
    %v1144 = vsel %vm1141, %v1133, %v984
    %v1145 = vsel %vm1141, %v1137, %v992
    %vm1146 = vcmask 1045504
    %v1148 = vsel %vm1146, %v1142, %v999
    %v1151 = vsel %vm1146, %v1143, %v1000
    %v1154 = vsel %vm1146, %v1144, %v1001
    %v1157 = vsel %vm1146, %v1145, %v1002
    %vm1159 = vcmask 1047552
    %vm1160 = vsmask.f32 7424
    %vm1161 = vmand %vm1159, %vm1160
    %v1162 = vsel %vm1161, %v1148, %v1016
    %v1163 = vsel %vm1161, %v1151, %v1020
    %v1164 = vsel %vm1161, %v1154, %v1024
    %v1165 = vsel %vm1161, %v1157, %v1028
    %vm1166 = vcmask 1040384
    %v1169 = vsel %vm1166, %v1031, %v1055
    %v1173 = vsel %vm1166, %v1034, %v1056
    %v1177 = vsel %vm1166, %v1037, %v1057
    %v1181 = vsel %vm1166, %v1040, %v1058
    %vm1183 = vcmask 1042432
    %vm1184 = vsmask.f32 2304
    %vm1185 = vmand %vm1183, %vm1184
    %v1186 = vsel %vm1185, %v1169, %v1076
    %v1187 = vsel %vm1185, %v1173, %v1084
    %v1188 = vsel %vm1185, %v1177, %v1092
    %v1189 = vsel %vm1185, %v1181, %v1100
    %vm1190 = vcmask 1043456
    %v1193 = vsel %vm1190, %v1186, %v1111
    %v1196 = vsel %vm1190, %v1187, %v1112
    %v1199 = vsel %vm1190, %v1188, %v1113
    %v1202 = vsel %vm1190, %v1189, %v1114
    %v1203 = vld [vmem:[#allocation2] sm:$0xf]
    %v1204 = vld [vmem:[%s5] sm:$0xff]
    %1206 = vset.pattern.permute.xlu0 0
    %1207 = vperm.xlu0 %1206, %v1204
    %v1208 = vpop.permute.xlu0 %1207
    %vm1210 = vcmask 220160
    %v1212 = vsel %vm1210, %v1203, 0
    %vm1214 = vcmask 1044480
    %v1215 = vsel %vm1214, 4294967295, 65535
    %v1216 = vsel %vm1146, %v1215, 0
    %v1217 = vand.u32 %v1193, %v1216
    %v1219 = vand.u32 %v1196, %v1216
    %v1221 = vand.u32 %v1199, %v1216
    %v1223 = vand.u32 %v1202, %v1216
    %1225 = vmatpush.bf16.msra.mxu0 0
    %1226 = vmatpush.bf16.msra.mxu0 0
    %1227 = vmatpush.bf16.msra.mxu0 0
    %1228 = vmatpush.bf16.msra.mxu0 0
    %1229 = vmatpush.bf16.msra.mxu0 0
    %1230 = vmatpush.bf16.msra.mxu0 0
    %1231 = vmatpush.bf16.msra.mxu0 %v1217
    %1232 = vmatpush.bf16.msra.mxu0 %v1162
    %1233 = vmatmul.bf16.gmra.mxu0 %v1212
    %v1234 = vpop.f32.mrf.mxu0
    %v1235 = vadd.f32 %v1208, %v1234
    %v1236 = vpop.f32.mrf.mxu0
    %1237 = vdwg.mxu0
    %1238 = vmatpush.bf16.msra.mxu0 0
    %1239 = vmatpush.bf16.msra.mxu0 0
    %1240 = vmatpush.bf16.msra.mxu0 0
    %1241 = vmatpush.bf16.msra.mxu0 0
    %1242 = vmatpush.bf16.msra.mxu0 0
    %1243 = vmatpush.bf16.msra.mxu0 0
    %1244 = vmatpush.bf16.msra.mxu0 %v1219
    %1245 = vmatpush.bf16.msra.mxu0 %v1163
    %1246 = vmatmul.bf16.gmra.mxu0 %v1212
    %v1247 = vpop.f32.mrf.mxu0
    %v1248 = vadd.f32 %v1208, %v1247
    %v1249 = vpop.f32.mrf.mxu0
    %1250 = vdwg.mxu0
    %1251 = vmatpush.bf16.msra.mxu0 0
    %1252 = vmatpush.bf16.msra.mxu0 0
    %1253 = vmatpush.bf16.msra.mxu0 0
    %1254 = vmatpush.bf16.msra.mxu0 0
    %1255 = vmatpush.bf16.msra.mxu0 0
    %1256 = vmatpush.bf16.msra.mxu0 0
    %1257 = vmatpush.bf16.msra.mxu0 %v1221
    %1258 = vmatpush.bf16.msra.mxu0 %v1164
    %1259 = vmatmul.bf16.gmra.mxu0 %v1212
    %v1260 = vpop.f32.mrf.mxu0
    %v1261 = vadd.f32 %v1208, %v1260
    %v1262 = vpop.f32.mrf.mxu0
    %1263 = vdwg.mxu0
    %1264 = vmatpush.bf16.msra.mxu0 0
    %1265 = vmatpush.bf16.msra.mxu0 0
    %1266 = vmatpush.bf16.msra.mxu0 0
    %1267 = vmatpush.bf16.msra.mxu0 0
    %1268 = vmatpush.bf16.msra.mxu0 0
    %1269 = vmatpush.bf16.msra.mxu0 0
    %1270 = vmatpush.bf16.msra.mxu0 %v1223
    %1271 = vmatpush.bf16.msra.mxu0 %v1165
    %1272 = vmatmul.bf16.gmra.mxu0 %v1212
    %v1273 = vpop.f32.mrf.mxu0
    %v1274 = vadd.f32 %v1208, %v1273
    %v1275 = vpop.f32.mrf.mxu0
    %1276 = vdwg.mxu0
    %v1277 = vmax.f32 %v1235, 0.0
    %v1278 = vmax.f32 %v1248, 0.0
    %v1279 = vmax.f32 %v1261, 0.0
    %v1280 = vmax.f32 %v1274, 0.0
    %v1281 = vpack.c.bf16 %v1278, %v1277
    %v1282 = vpack.c.bf16 %v1280, %v1279
    %v1284 = vunpack.c.h.b16 %v1282
    %v1285 = vpack.c.b16 %v1284, %v1284
    %1286 = vrot.lane.b32.xlu0 %v1285, 17
    %v1287 = vpop.permute.xlu0 %1286
    %v1289 = vunpack.c.l.b16 %v1281
    %v1290 = vunpack.c.h.b16 %v1281
    %v1291 = vunpack.c.l.b16 %v1282
    %v1292 = vpack.c.b16 %v1289, %v1289
    %v1293 = vpack.c.b16 %v1290, %v1290
    %v1294 = vpack.c.b16 %v1291, %v1291
    %1295 = vrot.lane.b32.xlu0 %v1292, 17
    %v1296 = vpop.permute.xlu0 %1295
    %1297 = vrot.lane.b32.xlu0 %v1293, 17
    %v1298 = vpop.permute.xlu0 %1297
    %1299 = vrot.lane.b32.xlu0 %v1294, 17
    %v1300 = vpop.permute.xlu0 %1299
    %v1301 = vsel %vm277, %v1296, %v1298
    %v1302 = vsel %vm277, %v1298, %v1300
    %v1303 = vsel %vm277, %v1300, %v1287
    %v1309 = vsel %vm284, %v1287, %v1296
    %v1311 = vunpack.c.l.bf16 %v1309
    %v1312 = vunpack.c.l.bf16 %v1301
    %v1313 = vunpack.c.l.bf16 %v1302
    %v1314 = vunpack.c.l.bf16 %v1303
    %v1315 = vmul.f32 %v1311, %v319
    %v1316 = vmul.f32 %v1312, %v320
    %v1317 = vmul.f32 %v1313, %v321
    %v1318 = vmul.f32 %v1314, %v322
    %v1319 = vpack.c.bf16 %v1316, %v1315
    %v1320 = vpack.c.bf16 %v1318, %v1317
    %1321 = vrot.lane.b32.xlu0 %v1285, 16
    %v1322 = vpop.permute.xlu0 %1321
    %1323 = vrot.lane.b32.xlu0 %v1292, 16
    %v1324 = vpop.permute.xlu0 %1323
    %1325 = vrot.lane.b32.xlu0 %v1293, 16
    %v1326 = vpop.permute.xlu0 %1325
    %1327 = vrot.lane.b32.xlu0 %v1294, 16
    %v1328 = vpop.permute.xlu0 %1327
    %v1329 = vsel %vm353, %v1324, %v1326
    %v1330 = vsel %vm353, %v1326, %v1328
    %v1331 = vsel %vm353, %v1328, %v1322
    %v1337 = vsel %vm360, %v1322, %v1324
    %v1339 = vunpack.c.l.bf16 %v1337
    %v1340 = vunpack.c.l.bf16 %v1329
    %v1341 = vunpack.c.l.bf16 %v1330
    %v1342 = vunpack.c.l.bf16 %v1331
    %v1343 = vmul.f32 %v1339, %v399
    %v1344 = vmul.f32 %v1340, %v400
    %v1345 = vmul.f32 %v1341, %v401
    %v1346 = vmul.f32 %v1342, %v402
    %v1347 = vpack.c.bf16 %v1344, %v1343
    %v1348 = vpack.c.bf16 %v1346, %v1345
    %1349 = vrot.lane.b32.xlu0 %v1285, 15
    %v1350 = vpop.permute.xlu0 %1349
    %1351 = vrot.lane.b32.xlu0 %v1292, 15
    %v1352 = vpop.permute.xlu0 %1351
    %1353 = vrot.lane.b32.xlu0 %v1293, 15
    %v1354 = vpop.permute.xlu0 %1353
    %1355 = vrot.lane.b32.xlu0 %v1294, 15
    %v1356 = vpop.permute.xlu0 %1355
    %v1357 = vsel %vm433, %v1352, %v1354
    %v1358 = vsel %vm433, %v1354, %v1356
    %v1359 = vsel %vm433, %v1356, %v1350
    %v1365 = vsel %vm440, %v1350, %v1352
    %v1367 = vunpack.c.l.bf16 %v1365
    %v1368 = vunpack.c.l.bf16 %v1357
    %v1369 = vunpack.c.l.bf16 %v1358
    %v1370 = vunpack.c.l.bf16 %v1359
    %v1371 = vmul.f32 %v1367, %v475
    %v1372 = vmul.f32 %v1368, %v476
    %v1373 = vmul.f32 %v1369, %v477
    %v1374 = vmul.f32 %v1370, %v478
    %v1375 = vpack.c.bf16 %v1372, %v1371
    %v1376 = vpack.c.bf16 %v1374, %v1373
    %1377 = vrot.lane.b32.xlu0 %v1285, 1
    %v1378 = vpop.permute.xlu0 %1377
    %1379 = vrot.lane.b32.xlu0 %v1292, 1
    %v1380 = vpop.permute.xlu0 %1379
    %1381 = vrot.lane.b32.xlu0 %v1293, 1
    %v1382 = vpop.permute.xlu0 %1381
    %1383 = vrot.lane.b32.xlu0 %v1294, 1
    %v1384 = vpop.permute.xlu0 %1383
    %v1385 = vsel %vm509, %v1380, %v1382
    %v1386 = vsel %vm509, %v1382, %v1384
    %v1387 = vsel %vm509, %v1384, %v1378
    %v1393 = vsel %vm516, %v1378, %v1380
    %v1395 = vunpack.c.l.bf16 %v1393
    %v1396 = vunpack.c.l.bf16 %v1385
    %v1397 = vunpack.c.l.bf16 %v1386
    %v1398 = vunpack.c.l.bf16 %v1387
    %v1399 = vmul.f32 %v1395, %v555
    %v1400 = vmul.f32 %v1396, %v556
    %v1401 = vmul.f32 %v1397, %v557
    %v1402 = vmul.f32 %v1398, %v558
    %v1403 = vpack.c.bf16 %v1400, %v1399
    %v1404 = vpack.c.bf16 %v1402, %v1401
    %1405 = vrot.lane.b32.xlu0 %v1292, 127
    %v1406 = vpop.permute.xlu0 %1405
    %1407 = vrot.lane.b32.xlu0 %v1293, 127
    %v1408 = vpop.permute.xlu0 %1407
    %1409 = vrot.lane.b32.xlu0 %v1294, 127
    %v1410 = vpop.permute.xlu0 %1409
    %1411 = vrot.lane.b32.xlu0 %v1285, 127
    %v1412 = vpop.permute.xlu0 %1411
    %v1413 = vsel %vm584, %v1406, %v1408
    %v1414 = vsel %vm584, %v1408, %v1410
    %v1415 = vsel %vm584, %v1410, %v1412
    %v1421 = vsel %vm596, %v1412, %v1406
    %v1423 = vunpack.c.l.bf16 %v1413
    %v1424 = vunpack.c.l.bf16 %v1414
    %v1425 = vunpack.c.l.bf16 %v1415
    %v1426 = vunpack.c.l.bf16 %v1421
    %v1427 = vmul.f32 %v1423, %v635
    %v1428 = vmul.f32 %v1424, %v636
    %v1429 = vmul.f32 %v1425, %v637
    %v1430 = vmul.f32 %v1426, %v638
    %v1431 = vpack.c.bf16 %v1428, %v1427
    %v1432 = vpack.c.bf16 %v1430, %v1429
    %1433 = vrot.lane.b32.xlu0 %v1292, 113
    %v1434 = vpop.permute.xlu0 %1433
    %1435 = vrot.lane.b32.xlu0 %v1293, 113
    %v1436 = vpop.permute.xlu0 %1435
    %1437 = vrot.lane.b32.xlu0 %v1294, 113
    %v1438 = vpop.permute.xlu0 %1437
    %1439 = vrot.lane.b32.xlu0 %v1285, 113
    %v1440 = vpop.permute.xlu0 %1439
    %v1441 = vsel %vm664, %v1434, %v1436
    %v1442 = vsel %vm664, %v1436, %v1438
    %v1443 = vsel %vm664, %v1438, %v1440
    %v1449 = vsel %vm676, %v1440, %v1434
    %v1451 = vunpack.c.l.bf16 %v1441
    %v1452 = vunpack.c.l.bf16 %v1442
    %v1453 = vunpack.c.l.bf16 %v1443
    %v1454 = vunpack.c.l.bf16 %v1449
    %v1455 = vmul.f32 %v1451, %v711
    %v1456 = vmul.f32 %v1452, %v712
    %v1457 = vmul.f32 %v1453, %v713
    %v1458 = vmul.f32 %v1454, %v714
    %v1459 = vpack.c.bf16 %v1456, %v1455
    %v1460 = vpack.c.bf16 %v1458, %v1457
    %1461 = vrot.lane.b32.xlu0 %v1292, 112
    %v1462 = vpop.permute.xlu0 %1461
    %1463 = vrot.lane.b32.xlu0 %v1293, 112
    %v1464 = vpop.permute.xlu0 %1463
    %1465 = vrot.lane.b32.xlu0 %v1294, 112
    %v1466 = vpop.permute.xlu0 %1465
    %1467 = vrot.lane.b32.xlu0 %v1285, 112
    %v1468 = vpop.permute.xlu0 %1467
    %v1469 = vsel %vm740, %v1462, %v1464
    %v1470 = vsel %vm740, %v1464, %v1466
    %v1471 = vsel %vm740, %v1466, %v1468
    %v1477 = vsel %vm752, %v1468, %v1462
    %v1479 = vunpack.c.l.bf16 %v1469
    %v1480 = vunpack.c.l.bf16 %v1470
    %v1481 = vunpack.c.l.bf16 %v1471
    %v1482 = vunpack.c.l.bf16 %v1477
    %v1483 = vmul.f32 %v1479, %v791
    %v1484 = vmul.f32 %v1480, %v792
    %v1485 = vmul.f32 %v1481, %v793
    %v1486 = vmul.f32 %v1482, %v794
    %v1487 = vpack.c.bf16 %v1484, %v1483
    %v1488 = vpack.c.bf16 %v1486, %v1485
    %1489 = vrot.lane.b32.xlu0 %v1292, 111
    %v1490 = vpop.permute.xlu0 %1489
    %1491 = vrot.lane.b32.xlu0 %v1293, 111
    %v1492 = vpop.permute.xlu0 %1491
    %1493 = vrot.lane.b32.xlu0 %v1294, 111
    %v1494 = vpop.permute.xlu0 %1493
    %1495 = vrot.lane.b32.xlu0 %v1285, 111
    %v1496 = vpop.permute.xlu0 %1495
    %v1497 = vsel %vm820, %v1490, %v1492
    %v1498 = vsel %vm820, %v1492, %v1494
    %v1499 = vsel %vm820, %v1494, %v1496
    %v1505 = vsel %vm832, %v1496, %v1490
    %v1507 = vunpack.c.l.bf16 %v1497
    %v1508 = vunpack.c.l.bf16 %v1498
    %v1509 = vunpack.c.l.bf16 %v1499
    %v1510 = vunpack.c.l.bf16 %v1505
    %v1511 = vmul.f32 %v1507, %v867
    %v1512 = vmul.f32 %v1508, %v868
    %v1513 = vmul.f32 %v1509, %v869
    %v1514 = vmul.f32 %v1510, %v870
    %v1515 = vpack.c.bf16 %v1512, %v1511
    %v1516 = vpack.c.bf16 %v1514, %v1513
    %v1519 = vunpack.c.l.b16 %v1319
    %v1520 = vunpack.c.h.b16 %v1319
    %v1521 = vunpack.c.l.b16 %v1320
    %v1522 = vunpack.c.h.b16 %v1320
    %v1523 = vpack.c.b16 %v1519, %v1519
    %v1524 = vpack.c.b16 %v1520, %v1520
    %v1525 = vpack.c.b16 %v1521, %v1521
    %v1526 = vpack.c.b16 %v1522, %v1522
    %v1529 = vunpack.c.l.b16 %v1347
    %v1530 = vunpack.c.h.b16 %v1347
    %v1531 = vunpack.c.l.b16 %v1348
    %v1532 = vunpack.c.h.b16 %v1348
    %v1533 = vpack.c.b16 %v1529, %v1529
    %v1534 = vpack.c.b16 %v1530, %v1530
    %v1535 = vpack.c.b16 %v1531, %v1531
    %v1536 = vpack.c.b16 %v1532, %v1532
    %v1539 = vunpack.c.l.b16 %v1375
    %v1540 = vunpack.c.h.b16 %v1375
    %v1541 = vunpack.c.l.b16 %v1376
    %v1542 = vunpack.c.h.b16 %v1376
    %v1543 = vpack.c.b16 %v1539, %v1539
    %v1544 = vpack.c.b16 %v1540, %v1540
    %v1545 = vpack.c.b16 %v1541, %v1541
    %v1546 = vpack.c.b16 %v1542, %v1542
    %v1549 = vunpack.c.l.b16 %v1403
    %v1550 = vunpack.c.h.b16 %v1403
    %v1551 = vunpack.c.l.b16 %v1404
    %v1552 = vunpack.c.h.b16 %v1404
    %v1553 = vpack.c.b16 %v1549, %v1549
    %v1554 = vpack.c.b16 %v1550, %v1550
    %v1555 = vpack.c.b16 %v1551, %v1551
    %v1556 = vpack.c.b16 %v1552, %v1552
    %v1559 = vunpack.c.l.b16 %v1431
    %v1560 = vunpack.c.h.b16 %v1431
    %v1561 = vunpack.c.l.b16 %v1432
    %v1562 = vunpack.c.h.b16 %v1432
    %v1563 = vpack.c.b16 %v1559, %v1559
    %v1564 = vpack.c.b16 %v1560, %v1560
    %v1565 = vpack.c.b16 %v1561, %v1561
    %v1566 = vpack.c.b16 %v1562, %v1562
    %v1569 = vunpack.c.l.b16 %v1459
    %v1570 = vunpack.c.h.b16 %v1459
    %v1571 = vunpack.c.l.b16 %v1460
    %v1572 = vunpack.c.h.b16 %v1460
    %v1573 = vpack.c.b16 %v1569, %v1569
    %v1574 = vpack.c.b16 %v1570, %v1570
    %v1575 = vpack.c.b16 %v1571, %v1571
    %v1576 = vpack.c.b16 %v1572, %v1572
    %v1579 = vunpack.c.l.b16 %v1487
    %v1580 = vunpack.c.h.b16 %v1487
    %v1581 = vunpack.c.l.b16 %v1488
    %v1582 = vunpack.c.h.b16 %v1488
    %v1583 = vpack.c.b16 %v1579, %v1579
    %v1584 = vpack.c.b16 %v1580, %v1580
    %v1585 = vpack.c.b16 %v1581, %v1581
    %v1586 = vpack.c.b16 %v1582, %v1582
    %v1589 = vunpack.c.l.b16 %v1515
    %v1590 = vunpack.c.h.b16 %v1515
    %v1591 = vunpack.c.l.b16 %v1516
    %v1592 = vunpack.c.h.b16 %v1516
    %v1593 = vpack.c.b16 %v1589, %v1589
    %v1594 = vpack.c.b16 %v1590, %v1590
    %v1595 = vpack.c.b16 %v1591, %v1591
    %v1596 = vpack.c.b16 %v1592, %v1592
    %v1599 = vsel %vm1190, %v1523, %v1533
    %v1603 = vsel %vm1190, %v1524, %v1534
    %v1607 = vsel %vm1190, %v1525, %v1535
    %v1611 = vsel %vm1190, %v1526, %v1536
    %v1615 = vsel %vm1190, %v1543, %v1553
    %v1619 = vsel %vm1190, %v1544, %v1554
    %v1623 = vsel %vm1190, %v1545, %v1555
    %v1627 = vsel %vm1190, %v1546, %v1556
    %v1631 = vsel %vm1190, %v1292, %v1563
    %v1635 = vsel %vm1190, %v1293, %v1564
    %v1639 = vsel %vm1190, %v1294, %v1565
    %v1643 = vsel %vm1190, %v1285, %v1566
    %v1647 = vsel %vm1190, %v1573, %v1583
    %v1651 = vsel %vm1190, %v1574, %v1584
    %v1655 = vsel %vm1190, %v1575, %v1585
    %v1659 = vsel %vm1190, %v1576, %v1586
    %v1661 = vld [vmem:[#allocation4] sm:$0xf]
    %v1662 = vld [vmem:[%s11] sm:$0xff]
    %1664 = vset.pattern.permute.xlu0 0
    %1665 = vperm.xlu0 %1664, %v1662
    %v1666 = vpop.permute.xlu0 %1665
    %vm1668 = vcmask 588800
    %v1670 = vsel %vm1668, %v1661, 0
    %v1673 = vsel %vm1190, %v1593, 0
    %v1676 = vsel %vm1190, %v1594, 0
    %v1679 = vsel %vm1190, %v1595, 0
    %v1682 = vsel %vm1190, %v1596, 0
    %1684 = vmatpush.bf16.msra.mxu0 0
    %1685 = vmatpush.bf16.msra.mxu0 0
    %1686 = vmatpush.bf16.msra.mxu0 0
    %1687 = vmatpush.bf16.msra.mxu0 %v1673
    %1688 = vmatpush.bf16.msra.mxu0 %v1647
    %1689 = vmatpush.bf16.msra.mxu0 %v1631
    %1690 = vmatpush.bf16.msra.mxu0 %v1615
    %1691 = vmatpush.bf16.msra.mxu0 %v1599
    %1692 = vmatmul.bf16.gmra.mxu0 %v1670
    %v1693 = vpop.f32.mrf.mxu0
    %v1694 = vadd.f32 %v1666, %v1693
    %v1695 = vpop.f32.mrf.mxu0
    %1696 = vdwg.mxu0
    %1697 = vmatpush.bf16.msra.mxu0 0
    %1698 = vmatpush.bf16.msra.mxu0 0
    %1699 = vmatpush.bf16.msra.mxu0 0
    %1700 = vmatpush.bf16.msra.mxu0 %v1676
    %1701 = vmatpush.bf16.msra.mxu0 %v1651
    %1702 = vmatpush.bf16.msra.mxu0 %v1635
    %1703 = vmatpush.bf16.msra.mxu0 %v1619
    %1704 = vmatpush.bf16.msra.mxu0 %v1603
    %1705 = vmatmul.bf16.gmra.mxu0 %v1670
    %v1706 = vpop.f32.mrf.mxu0
    %v1707 = vadd.f32 %v1666, %v1706
    %v1708 = vpop.f32.mrf.mxu0
    %1709 = vdwg.mxu0
    %1710 = vmatpush.bf16.msra.mxu0 0
    %1711 = vmatpush.bf16.msra.mxu0 0
    %1712 = vmatpush.bf16.msra.mxu0 0
    %1713 = vmatpush.bf16.msra.mxu0 %v1679
    %1714 = vmatpush.bf16.msra.mxu0 %v1655
    %1715 = vmatpush.bf16.msra.mxu0 %v1639
    %1716 = vmatpush.bf16.msra.mxu0 %v1623
    %1717 = vmatpush.bf16.msra.mxu0 %v1607
    %1718 = vmatmul.bf16.gmra.mxu0 %v1670
    %v1719 = vpop.f32.mrf.mxu0
    %v1720 = vadd.f32 %v1666, %v1719
    %v1721 = vpop.f32.mrf.mxu0
    %1722 = vdwg.mxu0
    %1723 = vmatpush.bf16.msra.mxu0 0
    %1724 = vmatpush.bf16.msra.mxu0 0
    %1725 = vmatpush.bf16.msra.mxu0 0
    %1726 = vmatpush.bf16.msra.mxu0 %v1682
    %1727 = vmatpush.bf16.msra.mxu0 %v1659
    %1728 = vmatpush.bf16.msra.mxu0 %v1643
    %1729 = vmatpush.bf16.msra.mxu0 %v1627
    %1730 = vmatpush.bf16.msra.mxu0 %v1611
    %1731 = vmatmul.bf16.gmra.mxu0 %v1670
    %v1732 = vpop.f32.mrf.mxu0
    %v1733 = vadd.f32 %v1666, %v1732
    %v1734 = vpop.f32.mrf.mxu0
    %1735 = vdwg.mxu0
    %v1736 = vmax.f32 %v1694, 0.0
    %v1737 = vmax.f32 %v1707, 0.0
    %v1738 = vmax.f32 %v1720, 0.0
    %v1739 = vmax.f32 %v1733, 0.0
    %v1740 = vpack.c.bf16 %v1737, %v1736
    %v1741 = vpack.c.bf16 %v1739, %v1738
    %v1743 = vunpack.c.h.b16 %v1741
    %v1744 = vpack.c.b16 %v1743, %v1743
    %1745 = vrot.lane.b32.xlu0 %v1744, 17
    %v1746 = vpop.permute.xlu0 %1745
    %v1748 = vunpack.c.l.b16 %v1740
    %v1749 = vunpack.c.h.b16 %v1740
    %v1750 = vunpack.c.l.b16 %v1741
    %v1751 = vpack.c.b16 %v1748, %v1748
    %v1752 = vpack.c.b16 %v1749, %v1749
    %v1753 = vpack.c.b16 %v1750, %v1750
    %1754 = vrot.lane.b32.xlu0 %v1751, 17
    %v1755 = vpop.permute.xlu0 %1754
    %1756 = vrot.lane.b32.xlu0 %v1752, 17
    %v1757 = vpop.permute.xlu0 %1756
    %1758 = vrot.lane.b32.xlu0 %v1753, 17
    %v1759 = vpop.permute.xlu0 %1758
    %v1760 = vsel %vm277, %v1755, %v1757
    %v1761 = vsel %vm277, %v1757, %v1759
    %v1762 = vsel %vm277, %v1759, %v1746
    %v1768 = vsel %vm284, %v1746, %v1755
    %v1770 = vunpack.c.l.bf16 %v1768
    %v1771 = vunpack.c.l.bf16 %v1760
    %v1772 = vunpack.c.l.bf16 %v1761
    %v1773 = vunpack.c.l.bf16 %v1762
    %v1774 = vmul.f32 %v1770, %v319
    %v1775 = vmul.f32 %v1771, %v320
    %v1776 = vmul.f32 %v1772, %v321
    %v1777 = vmul.f32 %v1773, %v322
    %v1778 = vpack.c.bf16 %v1775, %v1774
    %v1779 = vpack.c.bf16 %v1777, %v1776
    %1780 = vrot.lane.b32.xlu0 %v1744, 16
    %v1781 = vpop.permute.xlu0 %1780
    %1782 = vrot.lane.b32.xlu0 %v1751, 16
    %v1783 = vpop.permute.xlu0 %1782
    %1784 = vrot.lane.b32.xlu0 %v1752, 16
    %v1785 = vpop.permute.xlu0 %1784
    %1786 = vrot.lane.b32.xlu0 %v1753, 16
    %v1787 = vpop.permute.xlu0 %1786
    %v1788 = vsel %vm353, %v1783, %v1785
    %v1789 = vsel %vm353, %v1785, %v1787
    %v1790 = vsel %vm353, %v1787, %v1781
    %v1796 = vsel %vm360, %v1781, %v1783
    %v1798 = vunpack.c.l.bf16 %v1796
    %v1799 = vunpack.c.l.bf16 %v1788
    %v1800 = vunpack.c.l.bf16 %v1789
    %v1801 = vunpack.c.l.bf16 %v1790
    %v1802 = vmul.f32 %v1798, %v399
    %v1803 = vmul.f32 %v1799, %v400
    %v1804 = vmul.f32 %v1800, %v401
    %v1805 = vmul.f32 %v1801, %v402
    %v1806 = vpack.c.bf16 %v1803, %v1802
    %v1807 = vpack.c.bf16 %v1805, %v1804
    %1808 = vrot.lane.b32.xlu0 %v1744, 15
    %v1809 = vpop.permute.xlu0 %1808
    %1810 = vrot.lane.b32.xlu0 %v1751, 15
    %v1811 = vpop.permute.xlu0 %1810
    %1812 = vrot.lane.b32.xlu0 %v1752, 15
    %v1813 = vpop.permute.xlu0 %1812
    %1814 = vrot.lane.b32.xlu0 %v1753, 15
    %v1815 = vpop.permute.xlu0 %1814
    %v1816 = vsel %vm433, %v1811, %v1813
    %v1817 = vsel %vm433, %v1813, %v1815
    %v1818 = vsel %vm433, %v1815, %v1809
    %v1824 = vsel %vm440, %v1809, %v1811
    %v1826 = vunpack.c.l.bf16 %v1824
    %v1827 = vunpack.c.l.bf16 %v1816
    %v1828 = vunpack.c.l.bf16 %v1817
    %v1829 = vunpack.c.l.bf16 %v1818
    %v1830 = vmul.f32 %v1826, %v475
    %v1831 = vmul.f32 %v1827, %v476
    %v1832 = vmul.f32 %v1828, %v477
    %v1833 = vmul.f32 %v1829, %v478
    %v1834 = vpack.c.bf16 %v1831, %v1830
    %v1835 = vpack.c.bf16 %v1833, %v1832
    %1836 = vrot.lane.b32.xlu0 %v1744, 1
    %v1837 = vpop.permute.xlu0 %1836
    %1838 = vrot.lane.b32.xlu0 %v1751, 1
    %v1839 = vpop.permute.xlu0 %1838
    %1840 = vrot.lane.b32.xlu0 %v1752, 1
    %v1841 = vpop.permute.xlu0 %1840
    %1842 = vrot.lane.b32.xlu0 %v1753, 1
    %v1843 = vpop.permute.xlu0 %1842
    %v1844 = vsel %vm509, %v1839, %v1841
    %v1845 = vsel %vm509, %v1841, %v1843
    %v1846 = vsel %vm509, %v1843, %v1837
    %v1852 = vsel %vm516, %v1837, %v1839
    %v1854 = vunpack.c.l.bf16 %v1852
    %v1855 = vunpack.c.l.bf16 %v1844
    %v1856 = vunpack.c.l.bf16 %v1845
    %v1857 = vunpack.c.l.bf16 %v1846
    %v1858 = vmul.f32 %v1854, %v555
    %v1859 = vmul.f32 %v1855, %v556
    %v1860 = vmul.f32 %v1856, %v557
    %v1861 = vmul.f32 %v1857, %v558
    %v1862 = vpack.c.bf16 %v1859, %v1858
    %v1863 = vpack.c.bf16 %v1861, %v1860
    %1864 = vrot.lane.b32.xlu0 %v1751, 127
    %v1865 = vpop.permute.xlu0 %1864
    %1866 = vrot.lane.b32.xlu0 %v1752, 127
    %v1867 = vpop.permute.xlu0 %1866
    %1868 = vrot.lane.b32.xlu0 %v1753, 127
    %v1869 = vpop.permute.xlu0 %1868
    %1870 = vrot.lane.b32.xlu0 %v1744, 127
    %v1871 = vpop.permute.xlu0 %1870
    %v1872 = vsel %vm584, %v1865, %v1867
    %v1873 = vsel %vm584, %v1867, %v1869
    %v1874 = vsel %vm584, %v1869, %v1871
    %v1880 = vsel %vm596, %v1871, %v1865
    %v1882 = vunpack.c.l.bf16 %v1872
    %v1883 = vunpack.c.l.bf16 %v1873
    %v1884 = vunpack.c.l.bf16 %v1874
    %v1885 = vunpack.c.l.bf16 %v1880
    %v1886 = vmul.f32 %v1882, %v635
    %v1887 = vmul.f32 %v1883, %v636
    %v1888 = vmul.f32 %v1884, %v637
    %v1889 = vmul.f32 %v1885, %v638
    %v1890 = vpack.c.bf16 %v1887, %v1886
    %v1891 = vpack.c.bf16 %v1889, %v1888
    %1892 = vrot.lane.b32.xlu0 %v1751, 113
    %v1893 = vpop.permute.xlu0 %1892
    %1894 = vrot.lane.b32.xlu0 %v1752, 113
    %v1895 = vpop.permute.xlu0 %1894
    %1896 = vrot.lane.b32.xlu0 %v1753, 113
    %v1897 = vpop.permute.xlu0 %1896
    %1898 = vrot.lane.b32.xlu0 %v1744, 113
    %v1899 = vpop.permute.xlu0 %1898
    %v1900 = vsel %vm664, %v1893, %v1895
    %v1901 = vsel %vm664, %v1895, %v1897
    %v1902 = vsel %vm664, %v1897, %v1899
    %v1908 = vsel %vm676, %v1899, %v1893
    %v1910 = vunpack.c.l.bf16 %v1900
    %v1911 = vunpack.c.l.bf16 %v1901
    %v1912 = vunpack.c.l.bf16 %v1902
    %v1913 = vunpack.c.l.bf16 %v1908
    %v1914 = vmul.f32 %v1910, %v711
    %v1915 = vmul.f32 %v1911, %v712
    %v1916 = vmul.f32 %v1912, %v713
    %v1917 = vmul.f32 %v1913, %v714
    %v1918 = vpack.c.bf16 %v1915, %v1914
    %v1919 = vpack.c.bf16 %v1917, %v1916
    %1920 = vrot.lane.b32.xlu0 %v1751, 112
    %v1921 = vpop.permute.xlu0 %1920
    %1922 = vrot.lane.b32.xlu0 %v1752, 112
    %v1923 = vpop.permute.xlu0 %1922
    %1924 = vrot.lane.b32.xlu0 %v1753, 112
    %v1925 = vpop.permute.xlu0 %1924
    %1926 = vrot.lane.b32.xlu0 %v1744, 112
    %v1927 = vpop.permute.xlu0 %1926
    %v1928 = vsel %vm740, %v1921, %v1923
    %v1929 = vsel %vm740, %v1923, %v1925
    %v1930 = vsel %vm740, %v1925, %v1927
    %v1936 = vsel %vm752, %v1927, %v1921
    %v1938 = vunpack.c.l.bf16 %v1928
    %v1939 = vunpack.c.l.bf16 %v1929
    %v1940 = vunpack.c.l.bf16 %v1930
    %v1941 = vunpack.c.l.bf16 %v1936
    %v1942 = vmul.f32 %v1938, %v791
    %v1943 = vmul.f32 %v1939, %v792
    %v1944 = vmul.f32 %v1940, %v793
    %v1945 = vmul.f32 %v1941, %v794
    %v1946 = vpack.c.bf16 %v1943, %v1942
    %v1947 = vpack.c.bf16 %v1945, %v1944
    %1948 = vrot.lane.b32.xlu0 %v1751, 111
    %v1949 = vpop.permute.xlu0 %1948
    %1950 = vrot.lane.b32.xlu0 %v1752, 111
    %v1951 = vpop.permute.xlu0 %1950
    %1952 = vrot.lane.b32.xlu0 %v1753, 111
    %v1953 = vpop.permute.xlu0 %1952
    %1954 = vrot.lane.b32.xlu0 %v1744, 111
    %v1955 = vpop.permute.xlu0 %1954
    %v1956 = vsel %vm820, %v1949, %v1951
    %v1957 = vsel %vm820, %v1951, %v1953
    %v1958 = vsel %vm820, %v1953, %v1955
    %v1964 = vsel %vm832, %v1955, %v1949
    %v1966 = vunpack.c.l.bf16 %v1956
    %v1967 = vunpack.c.l.bf16 %v1957
    %v1968 = vunpack.c.l.bf16 %v1958
    %v1969 = vunpack.c.l.bf16 %v1964
    %v1970 = vmul.f32 %v1966, %v867
    %v1971 = vmul.f32 %v1967, %v868
    %v1972 = vmul.f32 %v1968, %v869
    %v1973 = vmul.f32 %v1969, %v870
    %v1974 = vpack.c.bf16 %v1971, %v1970
    %v1975 = vpack.c.bf16 %v1973, %v1972
    %v1978 = vunpack.c.l.b16 %v1778
    %v1979 = vunpack.c.h.b16 %v1778
    %v1980 = vunpack.c.l.b16 %v1779
    %v1981 = vunpack.c.h.b16 %v1779
    %v1982 = vpack.c.b16 %v1978, %v1978
    %v1983 = vpack.c.b16 %v1979, %v1979
    %v1984 = vpack.c.b16 %v1980, %v1980
    %v1985 = vpack.c.b16 %v1981, %v1981
    %v1988 = vunpack.c.l.b16 %v1806
    %v1989 = vunpack.c.h.b16 %v1806
    %v1990 = vunpack.c.l.b16 %v1807
    %v1991 = vunpack.c.h.b16 %v1807
    %v1992 = vpack.c.b16 %v1988, %v1988
    %v1993 = vpack.c.b16 %v1989, %v1989
    %v1994 = vpack.c.b16 %v1990, %v1990
    %v1995 = vpack.c.b16 %v1991, %v1991
    %v1998 = vunpack.c.l.b16 %v1834
    %v1999 = vunpack.c.h.b16 %v1834
    %v2000 = vunpack.c.l.b16 %v1835
    %v2001 = vunpack.c.h.b16 %v1835
    %v2002 = vpack.c.b16 %v1998, %v1998
    %v2003 = vpack.c.b16 %v1999, %v1999
    %v2004 = vpack.c.b16 %v2000, %v2000
    %v2005 = vpack.c.b16 %v2001, %v2001
    %v2008 = vunpack.c.l.b16 %v1862
    %v2009 = vunpack.c.h.b16 %v1862
    %v2010 = vunpack.c.l.b16 %v1863
    %v2011 = vunpack.c.h.b16 %v1863
    %v2012 = vpack.c.b16 %v2008, %v2008
    %v2013 = vpack.c.b16 %v2009, %v2009
    %v2014 = vpack.c.b16 %v2010, %v2010
    %v2015 = vpack.c.b16 %v2011, %v2011
    %v2018 = vunpack.c.l.b16 %v1890
    %v2019 = vunpack.c.h.b16 %v1890
    %v2020 = vunpack.c.l.b16 %v1891
    %v2021 = vunpack.c.h.b16 %v1891
    %v2022 = vpack.c.b16 %v2018, %v2018
    %v2023 = vpack.c.b16 %v2019, %v2019
    %v2024 = vpack.c.b16 %v2020, %v2020
    %v2025 = vpack.c.b16 %v2021, %v2021
    %v2028 = vunpack.c.l.b16 %v1918
    %v2029 = vunpack.c.h.b16 %v1918
    %v2030 = vunpack.c.l.b16 %v1919
    %v2031 = vunpack.c.h.b16 %v1919
    %v2032 = vpack.c.b16 %v2028, %v2028
    %v2033 = vpack.c.b16 %v2029, %v2029
    %v2034 = vpack.c.b16 %v2030, %v2030
    %v2035 = vpack.c.b16 %v2031, %v2031
    %v2038 = vunpack.c.l.b16 %v1946
    %v2039 = vunpack.c.h.b16 %v1946
    %v2040 = vunpack.c.l.b16 %v1947
    %v2041 = vunpack.c.h.b16 %v1947
    %v2042 = vpack.c.b16 %v2038, %v2038
    %v2043 = vpack.c.b16 %v2039, %v2039
    %v2044 = vpack.c.b16 %v2040, %v2040
    %v2045 = vpack.c.b16 %v2041, %v2041
    %v2048 = vunpack.c.l.b16 %v1974
    %v2049 = vunpack.c.h.b16 %v1974
    %v2050 = vunpack.c.l.b16 %v1975
    %v2051 = vunpack.c.h.b16 %v1975
    %v2052 = vpack.c.b16 %v2048, %v2048
    %v2053 = vpack.c.b16 %v2049, %v2049
    %v2054 = vpack.c.b16 %v2050, %v2050
    %v2055 = vpack.c.b16 %v2051, %v2051
    %v2058 = vsel %vm1190, %v1982, %v1992
    %v2062 = vsel %vm1190, %v1983, %v1993
    %v2066 = vsel %vm1190, %v1984, %v1994
    %v2070 = vsel %vm1190, %v1985, %v1995
    %v2074 = vsel %vm1190, %v2002, %v2012
    %v2078 = vsel %vm1190, %v2003, %v2013
    %v2082 = vsel %vm1190, %v2004, %v2014
    %v2086 = vsel %vm1190, %v2005, %v2015
    %v2090 = vsel %vm1190, %v1751, %v2022
    %v2094 = vsel %vm1190, %v1752, %v2023
    %v2098 = vsel %vm1190, %v1753, %v2024
    %v2102 = vsel %vm1190, %v1744, %v2025
    %v2106 = vsel %vm1190, %v2032, %v2042
    %v2110 = vsel %vm1190, %v2033, %v2043
    %v2114 = vsel %vm1190, %v2034, %v2044
    %v2118 = vsel %vm1190, %v2035, %v2045
    %v2120 = vld [vmem:[#allocation6] sm:$0xf]
    %v2121 = vld [vmem:[%s15] sm:$0xff]
    %2123 = vset.pattern.permute.xlu0 0
    %2124 = vperm.xlu0 %2123, %v2121
    %v2125 = vpop.permute.xlu0 %2124
    %v2128 = vsel %vm1668, %v2120, 0
    %v2131 = vsel %vm1190, %v2052, 0
    %v2134 = vsel %vm1190, %v2053, 0
    %v2137 = vsel %vm1190, %v2054, 0
    %v2140 = vsel %vm1190, %v2055, 0
    %2142 = vmatpush.bf16.msra.mxu0 0
    %2143 = vmatpush.bf16.msra.mxu0 0
    %2144 = vmatpush.bf16.msra.mxu0 0
    %2145 = vmatpush.bf16.msra.mxu0 %v2131
    %2146 = vmatpush.bf16.msra.mxu0 %v2106
    %2147 = vmatpush.bf16.msra.mxu0 %v2090
    %2148 = vmatpush.bf16.msra.mxu0 %v2074
    %2149 = vmatpush.bf16.msra.mxu0 %v2058
    %2150 = vmatmul.bf16.gmra.mxu0 %v2128
    %v2151 = vpop.f32.mrf.mxu0
    %v2152 = vadd.f32 %v2125, %v2151
    %v2153 = vpop.f32.mrf.mxu0
    %2154 = vdwg.mxu0
    %2155 = vmatpush.bf16.msra.mxu0 0
    %2156 = vmatpush.bf16.msra.mxu0 0
    %2157 = vmatpush.bf16.msra.mxu0 0
    %2158 = vmatpush.bf16.msra.mxu0 %v2134
    %2159 = vmatpush.bf16.msra.mxu0 %v2110
    %2160 = vmatpush.bf16.msra.mxu0 %v2094
    %2161 = vmatpush.bf16.msra.mxu0 %v2078
    %2162 = vmatpush.bf16.msra.mxu0 %v2062
    %2163 = vmatmul.bf16.gmra.mxu0 %v2128
    %v2164 = vpop.f32.mrf.mxu0
    %v2165 = vadd.f32 %v2125, %v2164
    %v2166 = vpop.f32.mrf.mxu0
    %2167 = vdwg.mxu0
    %2168 = vmatpush.bf16.msra.mxu0 0
    %2169 = vmatpush.bf16.msra.mxu0 0
    %2170 = vmatpush.bf16.msra.mxu0 0
    %2171 = vmatpush.bf16.msra.mxu0 %v2137
    %2172 = vmatpush.bf16.msra.mxu0 %v2114
    %2173 = vmatpush.bf16.msra.mxu0 %v2098
    %2174 = vmatpush.bf16.msra.mxu0 %v2082
    %2175 = vmatpush.bf16.msra.mxu0 %v2066
    %2176 = vmatmul.bf16.gmra.mxu0 %v2128
    %v2177 = vpop.f32.mrf.mxu0
    %v2178 = vadd.f32 %v2125, %v2177
    %v2179 = vpop.f32.mrf.mxu0
    %2180 = vdwg.mxu0
    %2181 = vmatpush.bf16.msra.mxu0 0
    %2182 = vmatpush.bf16.msra.mxu0 0
    %2183 = vmatpush.bf16.msra.mxu0 0
    %2184 = vmatpush.bf16.msra.mxu0 %v2140
    %2185 = vmatpush.bf16.msra.mxu0 %v2118
    %2186 = vmatpush.bf16.msra.mxu0 %v2102
    %2187 = vmatpush.bf16.msra.mxu0 %v2086
    %2188 = vmatpush.bf16.msra.mxu0 %v2070
    %2189 = vmatmul.bf16.gmra.mxu0 %v2128
    %v2190 = vpop.f32.mrf.mxu0
    %v2191 = vadd.f32 %v2125, %v2190
    %v2192 = vpop.f32.mrf.mxu0
    %2193 = vdwg.mxu0
    %v2194 = vadd.f32 %v2152, %v1277
    %v2195 = vadd.f32 %v2165, %v1278
    %v2196 = vadd.f32 %v2178, %v1279
    %v2197 = vadd.f32 %v2191, %v1280
    %v2198 = vmax.f32 %v2194, 0.0
    %v2199 = vmax.f32 %v2195, 0.0
    %v2200 = vmax.f32 %v2196, 0.0
    %v2201 = vmax.f32 %v2197, 0.0
    %v2202 = vpack.c.bf16 %v2199, %v2198
    %v2203 = vpack.c.bf16 %v2201, %v2200
    %v2204 = vld [vmem:[%s21] sm:$0xf]
    %v2205 = vld [vmem:[%s21 + $0x4] sm:$0xf]
    %v2206 = vld [vmem:[%s21 + $0x8] sm:$0xf]
    %v2207 = vld [vmem:[%s21 + $0xc] sm:$0xf]
    %v2208 = vld [vmem:[%s21 + $0x10] sm:$0xf]
    %v2209 = vld [vmem:[%s21 + $0x14] sm:$0xf]
    %v2210 = vld [vmem:[%s21 + $0x18] sm:$0xf]
    %v2211 = vld [vmem:[%s21 + $0x1c] sm:$0xf]
    %v2212 = vld [vmem:[%s21 + $0x20] sm:$0xf]
    %v2213 = vld [vmem:[%s21 + $0x24] sm:$0xf]
    %v2214 = vld [vmem:[%s21 + $0x28] sm:$0xf]
    %v2215 = vld [vmem:[%s21 + $0x2c] sm:$0xf]
    %v2216 = vld [vmem:[%s21 + $0x30] sm:$0xf]
    %v2217 = vld [vmem:[%s21 + $0x34] sm:$0xf]
    %v2218 = vld [vmem:[%s21 + $0x38] sm:$0xf]
    %v2219 = vld [vmem:[%s21 + $0x3c] sm:$0xf]
    %v2220 = vld [vmem:[%s21 + $0x40] sm:$0xf]
    %v2221 = vld [vmem:[%s21 + $0x44] sm:$0xf]
    %v2222 = vld [vmem:[%s21 + $0x48] sm:$0xf]
    %v2223 = vld [vmem:[%s21 + $0x4c] sm:$0xf]
    %v2224 = vld [vmem:[%s21 + $0x50] sm:$0xf]
    %v2225 = vld [vmem:[%s21 + $0x54] sm:$0xf]
    %v2226 = vld [vmem:[%s21 + $0x58] sm:$0xf]
    %v2227 = vld [vmem:[%s21 + $0x5c] sm:$0xf]
    %v2228 = vld [vmem:[%s21 + $0x60] sm:$0xf]
    %v2229 = vld [vmem:[%s21 + $0x64] sm:$0xf]
    %v2230 = vld [vmem:[%s21 + $0x68] sm:$0xf]
    %v2231 = vld [vmem:[%s21 + $0x6c] sm:$0xf]
    %v2232 = vld [vmem:[%s21 + $0x70] sm:$0xf]
    %v2233 = vld [vmem:[%s21 + $0x74] sm:$0xf]
    %v2234 = vld [vmem:[%s21 + $0x78] sm:$0xf]
    %v2235 = vld [vmem:[%s21 + $0x7c] sm:$0xf]
    %v2236 = vld [vmem:[%s21 + $0x80] sm:$0xf]
    %v2237 = vld [vmem:[%s21 + $0x84] sm:$0xf]
    %v2238 = vld [vmem:[%s21 + $0x88] sm:$0xf]
    %v2239 = vld [vmem:[%s21 + $0x8c] sm:$0xf]
    %v2240 = vld [vmem:[%s21 + $0x90] sm:$0xf]
    %v2241 = vld [vmem:[%s21 + $0x94] sm:$0xf]
    %v2242 = vld [vmem:[%s21 + $0x98] sm:$0xf]
    %v2243 = vld [vmem:[%s21 + $0x9c] sm:$0xf]
    %v2244 = vld [vmem:[%s21 + $0xa0] sm:$0xf]
    %v2245 = vld [vmem:[%s21 + $0xa4] sm:$0xf]
    %v2246 = vld [vmem:[%s21 + $0xa8] sm:$0xf]
    %v2247 = vld [vmem:[%s21 + $0xac] sm:$0xf]
    %v2248 = vld [vmem:[%s21 + $0xb0] sm:$0xf]
    %v2249 = vld [vmem:[%s21 + $0xb4] sm:$0xf]
    %v2250 = vld [vmem:[%s21 + $0xb8] sm:$0xf]
    %v2251 = vld [vmem:[%s21 + $0xbc] sm:$0xf]
    %v2252 = vld [vmem:[%s21 + $0xc0] sm:$0xf]
    %v2253 = vld [vmem:[%s21 + $0xc4] sm:$0xf]
    %v2254 = vld [vmem:[%s21 + $0xc8] sm:$0xf]
    %v2255 = vld [vmem:[%s21 + $0xcc] sm:$0xf]
    %v2256 = vld [vmem:[%s21 + $0xd0] sm:$0xf]
    %v2257 = vld [vmem:[%s21 + $0xd4] sm:$0xf]
    %v2258 = vld [vmem:[%s21 + $0xd8] sm:$0xf]
    %v2259 = vld [vmem:[%s21 + $0xdc] sm:$0xf]
    %v2260 = vld [vmem:[%s21 + $0xe0] sm:$0xf]
    %v2261 = vld [vmem:[%s21 + $0xe4] sm:$0xf]
    %v2262 = vld [vmem:[%s21 + $0xe8] sm:$0xf]
    %v2263 = vld [vmem:[%s21 + $0xec] sm:$0xf]
    %v2264 = vld [vmem:[%s21 + $0xf0] sm:$0xf]
    %v2265 = vld [vmem:[%s21 + $0xf4] sm:$0xf]
    %v2266 = vld [vmem:[%s21 + $0xf8] sm:$0xf]
    %v2267 = vld [vmem:[%s21 + $0xfc] sm:$0xf]
    %v2270 = vunpack.c.l.b16 %v2202
    %v2271 = vunpack.c.h.b16 %v2202
    %v2272 = vunpack.c.l.b16 %v2203
    %v2273 = vunpack.c.h.b16 %v2203
    %v2274 = vpack.c.b16 %v2270, %v2270
    %v2275 = vpack.c.b16 %v2271, %v2271
    %v2276 = vpack.c.b16 %v2272, %v2272
    %v2277 = vpack.c.b16 %v2273, %v2273
    %v2346 = vunpack.c.l.b16 %v2204
    %v2347 = vunpack.c.l.b16 %v2205
    %v2348 = vunpack.c.l.b16 %v2206
    %v2349 = vunpack.c.l.b16 %v2207
    %v2350 = vunpack.c.l.b16 %v2208
    %v2351 = vunpack.c.l.b16 %v2209
    %v2352 = vunpack.c.l.b16 %v2210
    %v2353 = vunpack.c.l.b16 %v2211
    %v2354 = vunpack.c.l.b16 %v2212
    %v2355 = vunpack.c.l.b16 %v2213
    %v2356 = vunpack.c.l.b16 %v2214
    %v2357 = vunpack.c.l.b16 %v2215
    %v2358 = vunpack.c.l.b16 %v2216
    %v2359 = vunpack.c.l.b16 %v2217
    %v2360 = vunpack.c.l.b16 %v2218
    %v2361 = vunpack.c.l.b16 %v2219
    %v2362 = vunpack.c.l.b16 %v2220
    %v2363 = vunpack.c.l.b16 %v2221
    %v2364 = vunpack.c.l.b16 %v2222
    %v2365 = vunpack.c.l.b16 %v2223
    %v2366 = vunpack.c.l.b16 %v2224
    %v2367 = vunpack.c.l.b16 %v2225
    %v2368 = vunpack.c.l.b16 %v2226
    %v2369 = vunpack.c.l.b16 %v2227
    %v2370 = vunpack.c.l.b16 %v2228
    %v2371 = vunpack.c.l.b16 %v2229
    %v2372 = vunpack.c.l.b16 %v2230
    %v2373 = vunpack.c.l.b16 %v2231
    %v2374 = vunpack.c.l.b16 %v2232
    %v2375 = vunpack.c.l.b16 %v2233
    %v2376 = vunpack.c.l.b16 %v2234
    %v2377 = vunpack.c.l.b16 %v2235
    %v2378 = vunpack.c.l.b16 %v2236
    %v2379 = vunpack.c.l.b16 %v2237
    %v2380 = vunpack.c.l.b16 %v2238
    %v2381 = vunpack.c.l.b16 %v2239
    %v2382 = vunpack.c.l.b16 %v2240
    %v2383 = vunpack.c.l.b16 %v2241
    %v2384 = vunpack.c.l.b16 %v2242
    %v2385 = vunpack.c.l.b16 %v2243
    %v2386 = vunpack.c.l.b16 %v2244
    %v2387 = vunpack.c.l.b16 %v2245
    %v2388 = vunpack.c.l.b16 %v2246
    %v2389 = vunpack.c.l.b16 %v2247
    %v2390 = vunpack.c.l.b16 %v2248
    %v2391 = vunpack.c.l.b16 %v2249
    %v2392 = vunpack.c.l.b16 %v2250
    %v2393 = vunpack.c.l.b16 %v2251
    %v2394 = vunpack.c.l.b16 %v2252
    %v2395 = vunpack.c.l.b16 %v2253
    %v2396 = vunpack.c.l.b16 %v2254
    %v2397 = vunpack.c.l.b16 %v2255
    %v2398 = vunpack.c.l.b16 %v2256
    %v2399 = vunpack.c.l.b16 %v2257
    %v2400 = vunpack.c.l.b16 %v2258
    %v2401 = vunpack.c.l.b16 %v2259
    %v2402 = vunpack.c.l.b16 %v2260
    %v2403 = vunpack.c.l.b16 %v2261
    %v2404 = vunpack.c.l.b16 %v2262
    %v2405 = vunpack.c.l.b16 %v2263
    %v2406 = vunpack.c.l.b16 %v2264
    %v2407 = vunpack.c.l.b16 %v2265
    %v2408 = vunpack.c.l.b16 %v2266
    %v2409 = vunpack.c.l.b16 %v2267
    %v2410 = vpack.c.b16 %v2347, %v2346
    %v2411 = vpack.c.b16 %v2349, %v2348
    %v2412 = vpack.c.b16 %v2351, %v2350
    %v2413 = vpack.c.b16 %v2353, %v2352
    %v2414 = vpack.c.b16 %v2355, %v2354
    %v2415 = vpack.c.b16 %v2357, %v2356
    %v2416 = vpack.c.b16 %v2359, %v2358
    %v2417 = vpack.c.b16 %v2361, %v2360
    %v2418 = vpack.c.b16 %v2363, %v2362
    %v2419 = vpack.c.b16 %v2365, %v2364
    %v2420 = vpack.c.b16 %v2367, %v2366
    %v2421 = vpack.c.b16 %v2369, %v2368
    %v2422 = vpack.c.b16 %v2371, %v2370
    %v2423 = vpack.c.b16 %v2373, %v2372
    %v2424 = vpack.c.b16 %v2375, %v2374
    %v2425 = vpack.c.b16 %v2377, %v2376
    %v2426 = vpack.c.b16 %v2379, %v2378
    %v2427 = vpack.c.b16 %v2381, %v2380
    %v2428 = vpack.c.b16 %v2383, %v2382
    %v2429 = vpack.c.b16 %v2385, %v2384
    %v2430 = vpack.c.b16 %v2387, %v2386
    %v2431 = vpack.c.b16 %v2389, %v2388
    %v2432 = vpack.c.b16 %v2391, %v2390
    %v2433 = vpack.c.b16 %v2393, %v2392
    %v2434 = vpack.c.b16 %v2395, %v2394
    %v2435 = vpack.c.b16 %v2397, %v2396
    %v2436 = vpack.c.b16 %v2399, %v2398
    %v2437 = vpack.c.b16 %v2401, %v2400
    %v2438 = vpack.c.b16 %v2403, %v2402
    %v2439 = vpack.c.b16 %v2405, %v2404
    %v2440 = vpack.c.b16 %v2407, %v2406
    %v2441 = vpack.c.b16 %v2409, %v2408
    %2474 = vmatpush.bf16.msra.mxu0 %v2417
    %2475 = vmatpush.bf16.msra.mxu0 %v2416
    %2476 = vmatpush.bf16.msra.mxu0 %v2415
    %2477 = vmatpush.bf16.msra.mxu0 %v2414
    %2478 = vmatpush.bf16.msra.mxu0 %v2413
    %2479 = vmatpush.bf16.msra.mxu0 %v2412
    %2480 = vmatpush.bf16.msra.mxu0 %v2411
    %2481 = vmatpush.bf16.msra.mxu0 %v2410
    %2482 = vmatmul.bf16.gmra.mxu0 %v2274
    %v2483 = vpop.f32.mrf.mxu0
    %v2484 = vadd.f32 0.0, %v2483
    %v2485 = vpop.f32.mrf.mxu0
    %2486 = vdwg.mxu0
    %2487 = vmatpush.bf16.msra.mxu0 %v2425
    %2488 = vmatpush.bf16.msra.mxu0 %v2424
    %2489 = vmatpush.bf16.msra.mxu0 %v2423
    %2490 = vmatpush.bf16.msra.mxu0 %v2422
    %2491 = vmatpush.bf16.msra.mxu0 %v2421
    %2492 = vmatpush.bf16.msra.mxu0 %v2420
    %2493 = vmatpush.bf16.msra.mxu0 %v2419
    %2494 = vmatpush.bf16.msra.mxu0 %v2418
    %2495 = vmatmul.bf16.gmra.mxu0 %v2275
    %v2496 = vpop.f32.mrf.mxu0
    %v2497 = vadd.f32 %v2484, %v2496
    %v2498 = vpop.f32.mrf.mxu0
    %2499 = vdwg.mxu0
    %2500 = vmatpush.bf16.msra.mxu0 %v2433
    %2501 = vmatpush.bf16.msra.mxu0 %v2432
    %2502 = vmatpush.bf16.msra.mxu0 %v2431
    %2503 = vmatpush.bf16.msra.mxu0 %v2430
    %2504 = vmatpush.bf16.msra.mxu0 %v2429
    %2505 = vmatpush.bf16.msra.mxu0 %v2428
    %2506 = vmatpush.bf16.msra.mxu0 %v2427
    %2507 = vmatpush.bf16.msra.mxu0 %v2426
    %2508 = vmatmul.bf16.gmra.mxu0 %v2276
    %v2509 = vpop.f32.mrf.mxu0
    %v2510 = vadd.f32 %v2497, %v2509
    %v2511 = vpop.f32.mrf.mxu0
    %2512 = vdwg.mxu0
    %2513 = vmatpush.bf16.msra.mxu0 %v2441
    %2514 = vmatpush.bf16.msra.mxu0 %v2440
    %2515 = vmatpush.bf16.msra.mxu0 %v2439
    %2516 = vmatpush.bf16.msra.mxu0 %v2438
    %2517 = vmatpush.bf16.msra.mxu0 %v2437
    %2518 = vmatpush.bf16.msra.mxu0 %v2436
    %2519 = vmatpush.bf16.msra.mxu0 %v2435
    %2520 = vmatpush.bf16.msra.mxu0 %v2434
    %2521 = vmatmul.bf16.gmra.mxu0 %v2277
    %v2522 = vpop.f32.mrf.mxu0
    %v2523 = vadd.f32 %v2510, %v2522
    %v2524 = vpop.f32.mrf.mxu0
    %2525 = vdwg.mxu0
    %v2526 = vpack.c.bf16 %v2523, %v2523
    %v2527 = vld [vmem:[#allocation10] sm:$0xf]
    %v2528 = vld [vmem:[%s31] sm:$0xff]
    %2530 = vset.pattern.permute.xlu0 0
    %2531 = vperm.xlu0 %2530, %v2528
    %v2532 = vpop.permute.xlu0 %2531
    %vm2534 = vcmask 64512
    %v2536 = vsel %vm2534, %v2527, 0
    %v2539 = vsel %vm1190, %v2526, 0
    %2541 = vmatpush.bf16.msra.mxu0 0
    %2542 = vmatpush.bf16.msra.mxu0 0
    %2543 = vmatpush.bf16.msra.mxu0 0
    %2544 = vmatpush.bf16.msra.mxu0 0
    %2545 = vmatpush.bf16.msra.mxu0 0
    %2546 = vmatpush.bf16.msra.mxu0 0
    %2547 = vmatpush.bf16.msra.mxu0 0
    %2548 = vmatpush.bf16.msra.mxu0 %v2539
    %2549 = vmatmul.bf16.gmra.mxu0 %v2536
    %v2550 = vpop.f32.mrf.mxu0
    %v2551 = vadd.f32 %v2532, %v2550
    %v2552 = vpop.f32.mrf.mxu0
    %2553 = vdwg.mxu0
    %2554 = vrot.lane.b32.xlu0 %v2277, 17
    %v2555 = vpop.permute.xlu0 %2554
    %2556 = vrot.lane.b32.xlu0 %v2274, 17
    %v2557 = vpop.permute.xlu0 %2556
    %2558 = vrot.lane.b32.xlu0 %v2275, 17
    %v2559 = vpop.permute.xlu0 %2558
    %2560 = vrot.lane.b32.xlu0 %v2276, 17
    %v2561 = vpop.permute.xlu0 %2560
    %v2562 = vsel %vm277, %v2557, %v2559
    %v2563 = vsel %vm277, %v2559, %v2561
    %v2564 = vsel %vm277, %v2561, %v2555
    %v2570 = vsel %vm284, %v2555, %v2557
    %v2572 = vunpack.c.l.bf16 %v2570
    %v2573 = vunpack.c.l.bf16 %v2562
    %v2574 = vunpack.c.l.bf16 %v2563
    %v2575 = vunpack.c.l.bf16 %v2564
    %v2576 = vmul.f32 %v2572, %v319
    %v2577 = vmul.f32 %v2573, %v320
    %v2578 = vmul.f32 %v2574, %v321
    %v2579 = vmul.f32 %v2575, %v322
    %v2580 = vpack.c.bf16 %v2577, %v2576
    %v2581 = vpack.c.bf16 %v2579, %v2578
    %2582 = vrot.lane.b32.xlu0 %v2277, 16
    %v2583 = vpop.permute.xlu0 %2582
    %2584 = vrot.lane.b32.xlu0 %v2274, 16
    %v2585 = vpop.permute.xlu0 %2584
    %2586 = vrot.lane.b32.xlu0 %v2275, 16
    %v2587 = vpop.permute.xlu0 %2586
    %2588 = vrot.lane.b32.xlu0 %v2276, 16
    %v2589 = vpop.permute.xlu0 %2588
    %v2590 = vsel %vm353, %v2585, %v2587
    %v2591 = vsel %vm353, %v2587, %v2589
    %v2592 = vsel %vm353, %v2589, %v2583
    %v2598 = vsel %vm360, %v2583, %v2585
    %v2600 = vunpack.c.l.bf16 %v2598
    %v2601 = vunpack.c.l.bf16 %v2590
    %v2602 = vunpack.c.l.bf16 %v2591
    %v2603 = vunpack.c.l.bf16 %v2592
    %v2604 = vmul.f32 %v2600, %v399
    %v2605 = vmul.f32 %v2601, %v400
    %v2606 = vmul.f32 %v2602, %v401
    %v2607 = vmul.f32 %v2603, %v402
    %v2608 = vpack.c.bf16 %v2605, %v2604
    %v2609 = vpack.c.bf16 %v2607, %v2606
    %2610 = vrot.lane.b32.xlu0 %v2277, 15
    %v2611 = vpop.permute.xlu0 %2610
    %2612 = vrot.lane.b32.xlu0 %v2274, 15
    %v2613 = vpop.permute.xlu0 %2612
    %2614 = vrot.lane.b32.xlu0 %v2275, 15
    %v2615 = vpop.permute.xlu0 %2614
    %2616 = vrot.lane.b32.xlu0 %v2276, 15
    %v2617 = vpop.permute.xlu0 %2616
    %v2618 = vsel %vm433, %v2613, %v2615
    %v2619 = vsel %vm433, %v2615, %v2617
    %v2620 = vsel %vm433, %v2617, %v2611
    %v2626 = vsel %vm440, %v2611, %v2613
    %v2628 = vunpack.c.l.bf16 %v2626
    %v2629 = vunpack.c.l.bf16 %v2618
    %v2630 = vunpack.c.l.bf16 %v2619
    %v2631 = vunpack.c.l.bf16 %v2620
    %v2632 = vmul.f32 %v2628, %v475
    %v2633 = vmul.f32 %v2629, %v476
    %v2634 = vmul.f32 %v2630, %v477
    %v2635 = vmul.f32 %v2631, %v478
    %v2636 = vpack.c.bf16 %v2633, %v2632
    %v2637 = vpack.c.bf16 %v2635, %v2634
    %2638 = vrot.lane.b32.xlu0 %v2277, 1
    %v2639 = vpop.permute.xlu0 %2638
    %2640 = vrot.lane.b32.xlu0 %v2274, 1
    %v2641 = vpop.permute.xlu0 %2640
    %2642 = vrot.lane.b32.xlu0 %v2275, 1
    %v2643 = vpop.permute.xlu0 %2642
    %2644 = vrot.lane.b32.xlu0 %v2276, 1
    %v2645 = vpop.permute.xlu0 %2644
    %v2646 = vsel %vm509, %v2641, %v2643
    %v2647 = vsel %vm509, %v2643, %v2645
    %v2648 = vsel %vm509, %v2645, %v2639
    %v2654 = vsel %vm516, %v2639, %v2641
    %v2656 = vunpack.c.l.bf16 %v2654
    %v2657 = vunpack.c.l.bf16 %v2646
    %v2658 = vunpack.c.l.bf16 %v2647
    %v2659 = vunpack.c.l.bf16 %v2648
    %v2660 = vmul.f32 %v2656, %v555
    %v2661 = vmul.f32 %v2657, %v556
    %v2662 = vmul.f32 %v2658, %v557
    %v2663 = vmul.f32 %v2659, %v558
    %v2664 = vpack.c.bf16 %v2661, %v2660
    %v2665 = vpack.c.bf16 %v2663, %v2662
    %2666 = vrot.lane.b32.xlu0 %v2274, 127
    %v2667 = vpop.permute.xlu0 %2666
    %2668 = vrot.lane.b32.xlu0 %v2275, 127
    %v2669 = vpop.permute.xlu0 %2668
    %2670 = vrot.lane.b32.xlu0 %v2276, 127
    %v2671 = vpop.permute.xlu0 %2670
    %2672 = vrot.lane.b32.xlu0 %v2277, 127
    %v2673 = vpop.permute.xlu0 %2672
    %v2674 = vsel %vm584, %v2667, %v2669
    %v2675 = vsel %vm584, %v2669, %v2671
    %v2676 = vsel %vm584, %v2671, %v2673
    %v2682 = vsel %vm596, %v2673, %v2667
    %v2684 = vunpack.c.l.bf16 %v2674
    %v2685 = vunpack.c.l.bf16 %v2675
    %v2686 = vunpack.c.l.bf16 %v2676
    %v2687 = vunpack.c.l.bf16 %v2682
    %v2688 = vmul.f32 %v2684, %v635
    %v2689 = vmul.f32 %v2685, %v636
    %v2690 = vmul.f32 %v2686, %v637
    %v2691 = vmul.f32 %v2687, %v638
    %v2692 = vpack.c.bf16 %v2689, %v2688
    %v2693 = vpack.c.bf16 %v2691, %v2690
    %2694 = vrot.lane.b32.xlu0 %v2274, 113
    %v2695 = vpop.permute.xlu0 %2694
    %2696 = vrot.lane.b32.xlu0 %v2275, 113
    %v2697 = vpop.permute.xlu0 %2696
    %2698 = vrot.lane.b32.xlu0 %v2276, 113
    %v2699 = vpop.permute.xlu0 %2698
    %2700 = vrot.lane.b32.xlu0 %v2277, 113
    %v2701 = vpop.permute.xlu0 %2700
    %v2702 = vsel %vm664, %v2695, %v2697
    %v2703 = vsel %vm664, %v2697, %v2699
    %v2704 = vsel %vm664, %v2699, %v2701
    %v2710 = vsel %vm676, %v2701, %v2695
    %v2712 = vunpack.c.l.bf16 %v2702
    %v2713 = vunpack.c.l.bf16 %v2703
    %v2714 = vunpack.c.l.bf16 %v2704
    %v2715 = vunpack.c.l.bf16 %v2710
    %v2716 = vmul.f32 %v2712, %v711
    %v2717 = vmul.f32 %v2713, %v712
    %v2718 = vmul.f32 %v2714, %v713
    %v2719 = vmul.f32 %v2715, %v714
    %v2720 = vpack.c.bf16 %v2717, %v2716
    %v2721 = vpack.c.bf16 %v2719, %v2718
    %2722 = vrot.lane.b32.xlu0 %v2274, 112
    %v2723 = vpop.permute.xlu0 %2722
    %2724 = vrot.lane.b32.xlu0 %v2275, 112
    %v2725 = vpop.permute.xlu0 %2724
    %2726 = vrot.lane.b32.xlu0 %v2276, 112
    %v2727 = vpop.permute.xlu0 %2726
    %2728 = vrot.lane.b32.xlu0 %v2277, 112
    %v2729 = vpop.permute.xlu0 %2728
    %v2730 = vsel %vm740, %v2723, %v2725
    %v2731 = vsel %vm740, %v2725, %v2727
    %v2732 = vsel %vm740, %v2727, %v2729
    %v2738 = vsel %vm752, %v2729, %v2723
    %v2740 = vunpack.c.l.bf16 %v2730
    %v2741 = vunpack.c.l.bf16 %v2731
    %v2742 = vunpack.c.l.bf16 %v2732
    %v2743 = vunpack.c.l.bf16 %v2738
    %v2744 = vmul.f32 %v2740, %v791
    %v2745 = vmul.f32 %v2741, %v792
    %v2746 = vmul.f32 %v2742, %v793
    %v2747 = vmul.f32 %v2743, %v794
    %v2748 = vpack.c.bf16 %v2745, %v2744
    %v2749 = vpack.c.bf16 %v2747, %v2746
    %2750 = vrot.lane.b32.xlu0 %v2274, 111
    %v2751 = vpop.permute.xlu0 %2750
    %2752 = vrot.lane.b32.xlu0 %v2275, 111
    %v2753 = vpop.permute.xlu0 %2752
    %2754 = vrot.lane.b32.xlu0 %v2276, 111
    %v2755 = vpop.permute.xlu0 %2754
    %2756 = vrot.lane.b32.xlu0 %v2277, 111
    %v2757 = vpop.permute.xlu0 %2756
    %v2758 = vsel %vm820, %v2751, %v2753
    %v2759 = vsel %vm820, %v2753, %v2755
    %v2760 = vsel %vm820, %v2755, %v2757
    %v2766 = vsel %vm832, %v2757, %v2751
    %v2768 = vunpack.c.l.bf16 %v2758
    %v2769 = vunpack.c.l.bf16 %v2759
    %v2770 = vunpack.c.l.bf16 %v2760
    %v2771 = vunpack.c.l.bf16 %v2766
    %v2772 = vmul.f32 %v2768, %v867
    %v2773 = vmul.f32 %v2769, %v868
    %v2774 = vmul.f32 %v2770, %v869
    %v2775 = vmul.f32 %v2771, %v870
    %v2776 = vpack.c.bf16 %v2773, %v2772
    %v2777 = vpack.c.bf16 %v2775, %v2774
    %v2780 = vunpack.c.l.b16 %v2580
    %v2781 = vunpack.c.h.b16 %v2580
    %v2782 = vunpack.c.l.b16 %v2581
    %v2783 = vunpack.c.h.b16 %v2581
    %v2784 = vpack.c.b16 %v2780, %v2780
    %v2785 = vpack.c.b16 %v2781, %v2781
    %v2786 = vpack.c.b16 %v2782, %v2782
    %v2787 = vpack.c.b16 %v2783, %v2783
    %v2790 = vunpack.c.l.b16 %v2608
    %v2791 = vunpack.c.h.b16 %v2608
    %v2792 = vunpack.c.l.b16 %v2609
    %v2793 = vunpack.c.h.b16 %v2609
    %v2794 = vpack.c.b16 %v2790, %v2790
    %v2795 = vpack.c.b16 %v2791, %v2791
    %v2796 = vpack.c.b16 %v2792, %v2792
    %v2797 = vpack.c.b16 %v2793, %v2793
    %v2800 = vunpack.c.l.b16 %v2636
    %v2801 = vunpack.c.h.b16 %v2636
    %v2802 = vunpack.c.l.b16 %v2637
    %v2803 = vunpack.c.h.b16 %v2637
    %v2804 = vpack.c.b16 %v2800, %v2800
    %v2805 = vpack.c.b16 %v2801, %v2801
    %v2806 = vpack.c.b16 %v2802, %v2802
    %v2807 = vpack.c.b16 %v2803, %v2803
    %v2810 = vunpack.c.l.b16 %v2664
    %v2811 = vunpack.c.h.b16 %v2664
    %v2812 = vunpack.c.l.b16 %v2665
    %v2813 = vunpack.c.h.b16 %v2665
    %v2814 = vpack.c.b16 %v2810, %v2810
    %v2815 = vpack.c.b16 %v2811, %v2811
    %v2816 = vpack.c.b16 %v2812, %v2812
    %v2817 = vpack.c.b16 %v2813, %v2813
    %v2820 = vunpack.c.l.b16 %v2692
    %v2821 = vunpack.c.h.b16 %v2692
    %v2822 = vunpack.c.l.b16 %v2693
    %v2823 = vunpack.c.h.b16 %v2693
    %v2824 = vpack.c.b16 %v2820, %v2820
    %v2825 = vpack.c.b16 %v2821, %v2821
    %v2826 = vpack.c.b16 %v2822, %v2822
    %v2827 = vpack.c.b16 %v2823, %v2823
    %v2830 = vunpack.c.l.b16 %v2720
    %v2831 = vunpack.c.h.b16 %v2720
    %v2832 = vunpack.c.l.b16 %v2721
    %v2833 = vunpack.c.h.b16 %v2721
    %v2834 = vpack.c.b16 %v2830, %v2830
    %v2835 = vpack.c.b16 %v2831, %v2831
    %v2836 = vpack.c.b16 %v2832, %v2832
    %v2837 = vpack.c.b16 %v2833, %v2833
    %v2840 = vunpack.c.l.b16 %v2748
    %v2841 = vunpack.c.h.b16 %v2748
    %v2842 = vunpack.c.l.b16 %v2749
    %v2843 = vunpack.c.h.b16 %v2749
    %v2844 = vpack.c.b16 %v2840, %v2840
    %v2845 = vpack.c.b16 %v2841, %v2841
    %v2846 = vpack.c.b16 %v2842, %v2842
    %v2847 = vpack.c.b16 %v2843, %v2843
    %v2850 = vunpack.c.l.b16 %v2776
    %v2851 = vunpack.c.h.b16 %v2776
    %v2852 = vunpack.c.l.b16 %v2777
    %v2853 = vunpack.c.h.b16 %v2777
    %v2854 = vpack.c.b16 %v2850, %v2850
    %v2855 = vpack.c.b16 %v2851, %v2851
    %v2856 = vpack.c.b16 %v2852, %v2852
    %v2857 = vpack.c.b16 %v2853, %v2853
    %v2864 = vsel %vm1190, %v2784, %v2794
    %v2868 = vsel %vm1190, %v2785, %v2795
    %v2872 = vsel %vm1190, %v2786, %v2796
    %v2876 = vsel %vm1190, %v2787, %v2797
    %v2880 = vsel %vm1190, %v2804, %v2814
    %v2884 = vsel %vm1190, %v2805, %v2815
    %v2888 = vsel %vm1190, %v2806, %v2816
    %v2892 = vsel %vm1190, %v2807, %v2817
    %v2896 = vsel %vm1190, %v2274, %v2824
    %v2900 = vsel %vm1190, %v2275, %v2825
    %v2904 = vsel %vm1190, %v2276, %v2826
    %v2908 = vsel %vm1190, %v2277, %v2827
    %v2912 = vsel %vm1190, %v2834, %v2844
    %v2916 = vsel %vm1190, %v2835, %v2845
    %v2920 = vsel %vm1190, %v2836, %v2846
    %v2924 = vsel %vm1190, %v2837, %v2847
    %2926 = vmatpush.bf16.msra.mxu0 %v2417
    %2927 = vmatpush.bf16.msra.mxu0 %v2416
    %2928 = vmatpush.bf16.msra.mxu0 %v2415
    %2929 = vmatpush.bf16.msra.mxu0 %v2414
    %2930 = vmatpush.bf16.msra.mxu0 %v2413
    %2931 = vmatpush.bf16.msra.mxu0 %v2412
    %2932 = vmatpush.bf16.msra.mxu0 %v2411
    %2933 = vmatpush.bf16.msra.mxu0 %v2410
    %2934 = vmatmul.bf16.gmra.mxu0 %v2864
    %v2935 = vpop.f32.mrf.mxu0
    %v2936 = vadd.f32 0.0, %v2935
    %v2937 = vpop.f32.mrf.mxu0
    %v2938 = vadd.f32 0.0, %v2937
    %2939 = vmatmul.bf16.gmra.mxu0 %v2880
    %v2940 = vpop.f32.mrf.mxu0
    %v2941 = vadd.f32 0.0, %v2940
    %v2942 = vpop.f32.mrf.mxu0
    %v2943 = vadd.f32 0.0, %v2942
    %2944 = vmatmul.bf16.gmra.mxu0 %v2896
    %v2945 = vpop.f32.mrf.mxu0
    %v2946 = vadd.f32 0.0, %v2945
    %v2947 = vpop.f32.mrf.mxu0
    %v2948 = vadd.f32 0.0, %v2947
    %2949 = vmatmul.bf16.gmra.mxu0 %v2912
    %v2950 = vpop.f32.mrf.mxu0
    %v2951 = vadd.f32 0.0, %v2950
    %v2952 = vpop.f32.mrf.mxu0
    %v2953 = vadd.f32 0.0, %v2952
    %2954 = vmatmul.bf16.gmra.mxu0 %v2854
    %v2955 = vpop.f32.mrf.mxu0
    %v2956 = vadd.f32 0.0, %v2955
    %v2957 = vpop.f32.mrf.mxu0
    %2958 = vdwg.mxu0
    %2959 = vmatpush.bf16.msra.mxu0 %v2425
    %2960 = vmatpush.bf16.msra.mxu0 %v2424
    %2961 = vmatpush.bf16.msra.mxu0 %v2423
    %2962 = vmatpush.bf16.msra.mxu0 %v2422
    %2963 = vmatpush.bf16.msra.mxu0 %v2421
    %2964 = vmatpush.bf16.msra.mxu0 %v2420
    %2965 = vmatpush.bf16.msra.mxu0 %v2419
    %2966 = vmatpush.bf16.msra.mxu0 %v2418
    %2967 = vmatmul.bf16.gmra.mxu0 %v2868
    %v2968 = vpop.f32.mrf.mxu0
    %v2969 = vadd.f32 %v2936, %v2968
    %v2970 = vpop.f32.mrf.mxu0
    %v2971 = vadd.f32 %v2938, %v2970
    %2972 = vmatmul.bf16.gmra.mxu0 %v2884
    %v2973 = vpop.f32.mrf.mxu0
    %v2974 = vadd.f32 %v2941, %v2973
    %v2975 = vpop.f32.mrf.mxu0
    %v2976 = vadd.f32 %v2943, %v2975
    %2977 = vmatmul.bf16.gmra.mxu0 %v2900
    %v2978 = vpop.f32.mrf.mxu0
    %v2979 = vadd.f32 %v2946, %v2978
    %v2980 = vpop.f32.mrf.mxu0
    %v2981 = vadd.f32 %v2948, %v2980
    %2982 = vmatmul.bf16.gmra.mxu0 %v2916
    %v2983 = vpop.f32.mrf.mxu0
    %v2984 = vadd.f32 %v2951, %v2983
    %v2985 = vpop.f32.mrf.mxu0
    %v2986 = vadd.f32 %v2953, %v2985
    %2987 = vmatmul.bf16.gmra.mxu0 %v2855
    %v2988 = vpop.f32.mrf.mxu0
    %v2989 = vadd.f32 %v2956, %v2988
    %v2990 = vpop.f32.mrf.mxu0
    %2991 = vdwg.mxu0
    %2992 = vmatpush.bf16.msra.mxu0 %v2433
    %2993 = vmatpush.bf16.msra.mxu0 %v2432
    %2994 = vmatpush.bf16.msra.mxu0 %v2431
    %2995 = vmatpush.bf16.msra.mxu0 %v2430
    %2996 = vmatpush.bf16.msra.mxu0 %v2429
    %2997 = vmatpush.bf16.msra.mxu0 %v2428
    %2998 = vmatpush.bf16.msra.mxu0 %v2427
    %2999 = vmatpush.bf16.msra.mxu0 %v2426
    %3000 = vmatmul.bf16.gmra.mxu0 %v2872
    %v3001 = vpop.f32.mrf.mxu0
    %v3002 = vadd.f32 %v2969, %v3001
    %v3003 = vpop.f32.mrf.mxu0
    %v3004 = vadd.f32 %v2971, %v3003
    %3005 = vmatmul.bf16.gmra.mxu0 %v2888
    %v3006 = vpop.f32.mrf.mxu0
    %v3007 = vadd.f32 %v2974, %v3006
    %v3008 = vpop.f32.mrf.mxu0
    %v3009 = vadd.f32 %v2976, %v3008
    %3010 = vmatmul.bf16.gmra.mxu0 %v2904
    %v3011 = vpop.f32.mrf.mxu0
    %v3012 = vadd.f32 %v2979, %v3011
    %v3013 = vpop.f32.mrf.mxu0
    %v3014 = vadd.f32 %v2981, %v3013
    %3015 = vmatmul.bf16.gmra.mxu0 %v2920
    %v3016 = vpop.f32.mrf.mxu0
    %v3017 = vadd.f32 %v2984, %v3016
    %v3018 = vpop.f32.mrf.mxu0
    %v3019 = vadd.f32 %v2986, %v3018
    %3020 = vmatmul.bf16.gmra.mxu0 %v2856
    %v3021 = vpop.f32.mrf.mxu0
    %v3022 = vadd.f32 %v2989, %v3021
    %v3023 = vpop.f32.mrf.mxu0
    %3024 = vdwg.mxu0
    %3025 = vmatpush.bf16.msra.mxu0 %v2441
    %3026 = vmatpush.bf16.msra.mxu0 %v2440
    %3027 = vmatpush.bf16.msra.mxu0 %v2439
    %3028 = vmatpush.bf16.msra.mxu0 %v2438
    %3029 = vmatpush.bf16.msra.mxu0 %v2437
    %3030 = vmatpush.bf16.msra.mxu0 %v2436
    %3031 = vmatpush.bf16.msra.mxu0 %v2435
    %3032 = vmatpush.bf16.msra.mxu0 %v2434
    %3033 = vmatmul.bf16.gmra.mxu0 %v2876
    %v3034 = vpop.f32.mrf.mxu0
    %v3035 = vadd.f32 %v3002, %v3034
    %v3036 = vpop.f32.mrf.mxu0
    %v3037 = vadd.f32 %v3004, %v3036
    %3038 = vmatmul.bf16.gmra.mxu0 %v2892
    %v3039 = vpop.f32.mrf.mxu0
    %v3040 = vadd.f32 %v3007, %v3039
    %v3041 = vpop.f32.mrf.mxu0
    %v3042 = vadd.f32 %v3009, %v3041
    %3043 = vmatmul.bf16.gmra.mxu0 %v2908
    %v3044 = vpop.f32.mrf.mxu0
    %v3045 = vadd.f32 %v3012, %v3044
    %v3046 = vpop.f32.mrf.mxu0
    %v3047 = vadd.f32 %v3014, %v3046
    %3048 = vmatmul.bf16.gmra.mxu0 %v2924
    %v3049 = vpop.f32.mrf.mxu0
    %v3050 = vadd.f32 %v3017, %v3049
    %v3051 = vpop.f32.mrf.mxu0
    %v3052 = vadd.f32 %v3019, %v3051
    %3053 = vmatmul.bf16.gmra.mxu0 %v2857
    %v3054 = vpop.f32.mrf.mxu0
    %v3055 = vadd.f32 %v3022, %v3054
    %v3056 = vpop.f32.mrf.mxu0
    %3057 = vdwg.mxu0
    %v3058 = vpack.c.bf16 %v3037, %v3035
    %v3059 = vpack.c.bf16 %v3042, %v3040
    %v3060 = vpack.c.bf16 %v3047, %v3045
    %v3061 = vpack.c.bf16 %v3052, %v3050
    %v3062 = vpack.c.bf16 %v3055, %v3055
    %v3063 = vld [vmem:[#allocation7] sm:$0xf]
    %v3064 = vld [vmem:[%s19] sm:$0xff]
    %3066 = vset.pattern.permute.xlu0 0
    %3067 = vperm.xlu0 %3066, %v3064
    %v3068 = vpop.permute.xlu0 %3067
    %v3071 = vsel %vm1668, %v3063, 0
    %v3074 = vsel %vm1190, %v3062, 0
    %3076 = vmatpush.bf16.msra.mxu0 0
    %3077 = vmatpush.bf16.msra.mxu0 0
    %3078 = vmatpush.bf16.msra.mxu0 0
    %3079 = vmatpush.bf16.msra.mxu0 %v3074
    %3080 = vmatpush.bf16.msra.mxu0 %v3061
    %3081 = vmatpush.bf16.msra.mxu0 %v3060
    %3082 = vmatpush.bf16.msra.mxu0 %v3059
    %3083 = vmatpush.bf16.msra.mxu0 %v3058
    %3084 = vmatmul.bf16.gmra.mxu0 %v3071
    %v3085 = vpop.f32.mrf.mxu0
    %v3086 = vadd.f32 %v3068, %v3085
    %v3087 = vpop.f32.mrf.mxu0
    %3088 = vdwg.mxu0
    %v3089 = vmax.f32 %v3086, 0.0
    %v3090 = vpack.c.bf16 %v3089, %v3089
    %v3091 = vld [vmem:[%s27] sm:$0x1]
    %v3093 = vunpack.c.l.b16 %v3090
    %v3094 = vpack.c.b16 %v3093, %v3093
    %3095 = vrot.lane.b32.xlu0 %v3094, 9
    %v3096 = vpop.permute.xlu0 %3095
    %v3100 = vpack.i.b16 %v3091, %v3091
    %v3102 = vperm.slane %v3100, 0
    %v3103 = vunpack.c.l.bf16 %v3096
    %v3104 = vunpack.c.l.bf16 %v3102
    %v3105 = vmul.f32 %v3103, %v3104
    %v3106 = vpack.c.bf16 %v3105, %v3105
    %3107 = vrot.lane.b32.xlu0 %v3094, 8
    %v3108 = vpop.permute.xlu0 %3107
    %v3111 = vshrl.u32 %v3091, 16
    %v3112 = vpack.i.b16 %v3111, %v3111
    %v3114 = vperm.slane %v3112, 0
    %v3115 = vunpack.c.l.bf16 %v3108
    %v3116 = vunpack.c.l.bf16 %v3114
    %v3117 = vmul.f32 %v3115, %v3116
    %v3118 = vpack.c.bf16 %v3117, %v3117
    %v3119 = vld [vmem:[%s27] sm:$0x2]
    %3120 = vrot.lane.b32.xlu0 %v3094, 7
    %v3121 = vpop.permute.xlu0 %3120
    %v3125 = vpack.i.b16 %v3119, %v3119
    %v3127 = vperm.slane %v3125, 1
    %v3128 = vunpack.c.l.bf16 %v3121
    %v3129 = vunpack.c.l.bf16 %v3127
    %v3130 = vmul.f32 %v3128, %v3129
    %v3131 = vpack.c.bf16 %v3130, %v3130
    %3132 = vrot.lane.b32.xlu0 %v3094, 1
    %v3133 = vpop.permute.xlu0 %3132
    %v3136 = vshrl.u32 %v3119, 16
    %v3137 = vpack.i.b16 %v3136, %v3136
    %v3139 = vperm.slane %v3137, 1
    %v3140 = vunpack.c.l.bf16 %v3133
    %v3141 = vunpack.c.l.bf16 %v3139
    %v3142 = vmul.f32 %v3140, %v3141
    %v3143 = vpack.c.bf16 %v3142, %v3142
    %v3144 = vld [vmem:[%s27] sm:$0x4]
    %3145 = vrot.lane.b32.xlu0 %v3094, 127
    %v3146 = vpop.permute.xlu0 %3145
    %v3150 = vshrl.u32 %v3144, 16
    %v3151 = vpack.i.b16 %v3150, %v3150
    %v3153 = vperm.slane %v3151, 2
    %v3154 = vunpack.c.l.bf16 %v3146
    %v3155 = vunpack.c.l.bf16 %v3153
    %v3156 = vmul.f32 %v3154, %v3155
    %v3157 = vpack.c.bf16 %v3156, %v3156
    %v3158 = vld [vmem:[%s27] sm:$0x8]
    %3159 = vrot.lane.b32.xlu0 %v3094, 121
    %v3160 = vpop.permute.xlu0 %3159
    %v3164 = vpack.i.b16 %v3158, %v3158
    %v3166 = vperm.slane %v3164, 3
    %v3167 = vunpack.c.l.bf16 %v3160
    %v3168 = vunpack.c.l.bf16 %v3166
    %v3169 = vmul.f32 %v3167, %v3168
    %v3170 = vpack.c.bf16 %v3169, %v3169
    %3171 = vrot.lane.b32.xlu0 %v3094, 120
    %v3172 = vpop.permute.xlu0 %3171
    %v3175 = vshrl.u32 %v3158, 16
    %v3176 = vpack.i.b16 %v3175, %v3175
    %v3178 = vperm.slane %v3176, 3
    %v3179 = vunpack.c.l.bf16 %v3172
    %v3180 = vunpack.c.l.bf16 %v3178
    %v3181 = vmul.f32 %v3179, %v3180
    %v3182 = vpack.c.bf16 %v3181, %v3181
    %v3183 = vld [vmem:[%s27 + $0x4] sm:$0x1]
    %3184 = vrot.lane.b32.xlu0 %v3094, 119
    %v3185 = vpop.permute.xlu0 %3184
    %v3189 = vpack.i.b16 %v3183, %v3183
    %v3191 = vperm.slane %v3189, 0
    %v3192 = vunpack.c.l.bf16 %v3185
    %v3193 = vunpack.c.l.bf16 %v3191
    %v3194 = vmul.f32 %v3192, %v3193
    %v3195 = vpack.c.bf16 %v3194, %v3194
    %v3197 = vunpack.c.l.b16 %v3118
    %v3198 = vpack.c.b16 %v3197, %v3197
    %v3200 = vunpack.c.l.b16 %v3143
    %v3201 = vpack.c.b16 %v3200, %v3200
    %v3203 = vunpack.c.l.b16 %v3157
    %v3204 = vpack.c.b16 %v3203, %v3203
    %v3206 = vunpack.c.l.b16 %v3182
    %v3207 = vpack.c.b16 %v3206, %v3206
    %v3210 = vsel %vm1190, %v3106, %v3198
    %v3214 = vsel %vm1190, %v3131, %v3201
    %v3218 = vsel %vm1190, %v3090, %v3204
    %v3222 = vsel %vm1190, %v3170, %v3207
    %v3224 = vld [vmem:[#allocation9] sm:$0xf]
    %v3225 = vld [vmem:[%s25] sm:$0xff]
    %3227 = vset.pattern.permute.xlu0 0
    %3228 = vperm.xlu0 %3227, %v3225
    %v3229 = vpop.permute.xlu0 %3228
    %v3232 = vsel %vm1668, %v3224, 0
    %v3235 = vsel %vm1190, %v3195, 0
    %3237 = vmatpush.bf16.msra.mxu0 0
    %3238 = vmatpush.bf16.msra.mxu0 0
    %3239 = vmatpush.bf16.msra.mxu0 0
    %3240 = vmatpush.bf16.msra.mxu0 %v3235
    %3241 = vmatpush.bf16.msra.mxu0 %v3222
    %3242 = vmatpush.bf16.msra.mxu0 %v3218
    %3243 = vmatpush.bf16.msra.mxu0 %v3214
    %3244 = vmatpush.bf16.msra.mxu0 %v3210
    %3245 = vmatmul.bf16.gmra.mxu0 %v3232
    %v3246 = vpop.f32.mrf.mxu0
    %v3247 = vadd.f32 %v3229, %v3246
    %v3248 = vpop.f32.mrf.mxu0
    %3249 = vdwg.mxu0
    %v3250 = vadd.f32 %v3247, %v2551
    %v3251 = vmax.f32 %v3250, 0.0
    %v3252 = vpack.c.bf16 %v3251, %v3251
    %v3253 = vld [vmem:[%s37] sm:$0xf]
    %v3254 = vld [vmem:[%s37 + $0x4] sm:$0xf]
    %v3255 = vld [vmem:[%s37 + $0x8] sm:$0xf]
    %v3256 = vld [vmem:[%s37 + $0xc] sm:$0xf]
    %v3257 = vld [vmem:[%s37 + $0x10] sm:$0xf]
    %v3258 = vld [vmem:[%s37 + $0x14] sm:$0xf]
    %v3259 = vld [vmem:[%s37 + $0x18] sm:$0xf]
    %v3260 = vld [vmem:[%s37 + $0x1c] sm:$0xf]
    %v3261 = vld [vmem:[%s37 + $0x20] sm:$0xf]
    %v3262 = vld [vmem:[%s37 + $0x24] sm:$0xf]
    %v3263 = vld [vmem:[%s37 + $0x28] sm:$0xf]
    %v3264 = vld [vmem:[%s37 + $0x2c] sm:$0xf]
    %v3265 = vld [vmem:[%s37 + $0x30] sm:$0xf]
    %v3266 = vld [vmem:[%s37 + $0x34] sm:$0xf]
    %v3267 = vld [vmem:[%s37 + $0x38] sm:$0xf]
    %v3268 = vld [vmem:[%s37 + $0x3c] sm:$0xf]
    %v3285 = vunpack.c.l.b16 %v3253
    %v3286 = vunpack.c.l.b16 %v3254
    %v3287 = vunpack.c.l.b16 %v3255
    %v3288 = vunpack.c.l.b16 %v3256
    %v3289 = vunpack.c.l.b16 %v3257
    %v3290 = vunpack.c.l.b16 %v3258
    %v3291 = vunpack.c.l.b16 %v3259
    %v3292 = vunpack.c.l.b16 %v3260
    %v3293 = vunpack.c.l.b16 %v3261
    %v3294 = vunpack.c.l.b16 %v3262
    %v3295 = vunpack.c.l.b16 %v3263
    %v3296 = vunpack.c.l.b16 %v3264
    %v3297 = vunpack.c.l.b16 %v3265
    %v3298 = vunpack.c.l.b16 %v3266
    %v3299 = vunpack.c.l.b16 %v3267
    %v3300 = vunpack.c.l.b16 %v3268
    %v3301 = vpack.c.b16 %v3286, %v3285
    %v3302 = vpack.c.b16 %v3288, %v3287
    %v3303 = vpack.c.b16 %v3290, %v3289
    %v3304 = vpack.c.b16 %v3292, %v3291
    %v3305 = vpack.c.b16 %v3294, %v3293
    %v3306 = vpack.c.b16 %v3296, %v3295
    %v3307 = vpack.c.b16 %v3298, %v3297
    %v3308 = vpack.c.b16 %v3300, %v3299
    %3317 = vmatpush.bf16.msra.mxu0 %v3308
    %3318 = vmatpush.bf16.msra.mxu0 %v3307
    %3319 = vmatpush.bf16.msra.mxu0 %v3306
    %3320 = vmatpush.bf16.msra.mxu0 %v3305
    %3321 = vmatpush.bf16.msra.mxu0 %v3304
    %3322 = vmatpush.bf16.msra.mxu0 %v3303
    %3323 = vmatpush.bf16.msra.mxu0 %v3302
    %3324 = vmatpush.bf16.msra.mxu0 %v3301
    %3325 = vmatmul.bf16.gmra.mxu0 %v3252
    %v3326 = vpop.f32.mrf.mxu0
    %v3327 = vadd.f32 0.0, %v3326
    %v3328 = vpop.f32.mrf.mxu0
    %3329 = vdwg.mxu0
    %v3330 = vpack.c.bf16 %v3327, %v3327
    %v3331 = vld [vmem:[%s45] sm:$0xf]
    %v3332 = vld [vmem:[%s45 + $0x4] sm:$0xf]
    %v3333 = vld [vmem:[%s47] sm:$0xff]
    %v3334 = vld [vmem:[%s47 + $0x8] sm:$0xff]
    %3336 = vset.pattern.permute.xlu0 0
    %3337 = vperm.xlu0 %3336, %v3333
    %v3338 = vpop.permute.xlu0 %3337
    %3341 = vset.pattern.permute.xlu0 0
    %3342 = vperm.xlu0 %3341, %v3334
    %v3343 = vpop.permute.xlu0 %3342
    %v3347 = vunpack.c.l.b16 %v3331
    %v3348 = vunpack.c.l.b16 %v3332
    %v3349 = vpack.c.b16 %v3348, %v3347
    %v3351 = vsel %vm2534, %v3349, 0
    %v3354 = vsel %vm1190, %v3330, 0
    %3356 = vmatpush.bf16.msra.mxu0 0
    %3357 = vmatpush.bf16.msra.mxu0 0
    %3358 = vmatpush.bf16.msra.mxu0 0
    %3359 = vmatpush.bf16.msra.mxu0 0
    %3360 = vmatpush.bf16.msra.mxu0 0
    %3361 = vmatpush.bf16.msra.mxu0 0
    %3362 = vmatpush.bf16.msra.mxu0 0
    %3363 = vmatpush.bf16.msra.mxu0 %v3354
    %3364 = vmatmul.bf16.gmra.mxu0 %v3351
    %v3365 = vpop.f32.mrf.mxu0
    %v3366 = vadd.f32 %v3338, %v3365
    %v3367 = vpop.f32.mrf.mxu0
    %v3368 = vadd.f32 %v3343, %v3367
    %3369 = vdwg.mxu0
    %v3371 = vunpack.c.l.b16 %v3252
    %v3372 = vpack.c.b16 %v3371, %v3371
    %3373 = vrot.lane.b32.xlu0 %v3372, 9
    %v3374 = vpop.permute.xlu0 %3373
    %v3377 = vunpack.c.l.bf16 %v3374
    %v3378 = vmul.f32 %v3377, %v3104
    %v3379 = vpack.c.bf16 %v3378, %v3378
    %3380 = vrot.lane.b32.xlu0 %v3372, 8
    %v3381 = vpop.permute.xlu0 %3380
    %v3384 = vunpack.c.l.bf16 %v3381
    %v3385 = vmul.f32 %v3384, %v3116
    %v3386 = vpack.c.bf16 %v3385, %v3385
    %3387 = vrot.lane.b32.xlu0 %v3372, 7
    %v3388 = vpop.permute.xlu0 %3387
    %v3391 = vunpack.c.l.bf16 %v3388
    %v3392 = vmul.f32 %v3391, %v3129
    %v3393 = vpack.c.bf16 %v3392, %v3392
    %3394 = vrot.lane.b32.xlu0 %v3372, 1
    %v3395 = vpop.permute.xlu0 %3394
    %v3398 = vunpack.c.l.bf16 %v3395
    %v3399 = vmul.f32 %v3398, %v3141
    %v3400 = vpack.c.bf16 %v3399, %v3399
    %3401 = vrot.lane.b32.xlu0 %v3372, 127
    %v3402 = vpop.permute.xlu0 %3401
    %v3405 = vunpack.c.l.bf16 %v3402
    %v3406 = vmul.f32 %v3405, %v3155
    %v3407 = vpack.c.bf16 %v3406, %v3406
    %3408 = vrot.lane.b32.xlu0 %v3372, 121
    %v3409 = vpop.permute.xlu0 %3408
    %v3412 = vunpack.c.l.bf16 %v3409
    %v3413 = vmul.f32 %v3412, %v3168
    %v3414 = vpack.c.bf16 %v3413, %v3413
    %3415 = vrot.lane.b32.xlu0 %v3372, 120
    %v3416 = vpop.permute.xlu0 %3415
    %v3419 = vunpack.c.l.bf16 %v3416
    %v3420 = vmul.f32 %v3419, %v3180
    %v3421 = vpack.c.bf16 %v3420, %v3420
    %3422 = vrot.lane.b32.xlu0 %v3372, 119
    %v3423 = vpop.permute.xlu0 %3422
    %v3426 = vunpack.c.l.bf16 %v3423
    %v3427 = vmul.f32 %v3426, %v3193
    %v3428 = vpack.c.bf16 %v3427, %v3427
    %v3430 = vunpack.c.l.b16 %v3386
    %v3431 = vpack.c.b16 %v3430, %v3430
    %v3433 = vunpack.c.l.b16 %v3400
    %v3434 = vpack.c.b16 %v3433, %v3433
    %v3436 = vunpack.c.l.b16 %v3407
    %v3437 = vpack.c.b16 %v3436, %v3436
    %v3439 = vunpack.c.l.b16 %v3421
    %v3440 = vpack.c.b16 %v3439, %v3439
    %v3443 = vsel %vm1190, %v3379, %v3431
    %v3447 = vsel %vm1190, %v3393, %v3434
    %v3451 = vsel %vm1190, %v3252, %v3437
    %v3455 = vsel %vm1190, %v3414, %v3440
    %3457 = vmatpush.bf16.msra.mxu0 %v3308
    %3458 = vmatpush.bf16.msra.mxu0 %v3307
    %3459 = vmatpush.bf16.msra.mxu0 %v3306
    %3460 = vmatpush.bf16.msra.mxu0 %v3305
    %3461 = vmatpush.bf16.msra.mxu0 %v3304
    %3462 = vmatpush.bf16.msra.mxu0 %v3303
    %3463 = vmatpush.bf16.msra.mxu0 %v3302
    %3464 = vmatpush.bf16.msra.mxu0 %v3301
    %3465 = vmatmul.bf16.gmra.mxu0 %v3443
    %v3466 = vpop.f32.mrf.mxu0
    %v3467 = vadd.f32 0.0, %v3466
    %v3468 = vpop.f32.mrf.mxu0
    %v3469 = vadd.f32 0.0, %v3468
    %3470 = vmatmul.bf16.gmra.mxu0 %v3447
    %v3471 = vpop.f32.mrf.mxu0
    %v3472 = vadd.f32 0.0, %v3471
    %v3473 = vpop.f32.mrf.mxu0
    %v3474 = vadd.f32 0.0, %v3473
    %3475 = vmatmul.bf16.gmra.mxu0 %v3451
    %v3476 = vpop.f32.mrf.mxu0
    %v3477 = vadd.f32 0.0, %v3476
    %v3478 = vpop.f32.mrf.mxu0
    %v3479 = vadd.f32 0.0, %v3478
    %3480 = vmatmul.bf16.gmra.mxu0 %v3455
    %v3481 = vpop.f32.mrf.mxu0
    %v3482 = vadd.f32 0.0, %v3481
    %v3483 = vpop.f32.mrf.mxu0
    %v3484 = vadd.f32 0.0, %v3483
    %3485 = vmatmul.bf16.gmra.mxu0 %v3428
    %v3486 = vpop.f32.mrf.mxu0
    %v3487 = vadd.f32 0.0, %v3486
    %v3488 = vpop.f32.mrf.mxu0
    %3489 = vdwg.mxu0
    %v3490 = vpack.c.bf16 %v3469, %v3467
    %v3491 = vpack.c.bf16 %v3474, %v3472
    %v3492 = vpack.c.bf16 %v3479, %v3477
    %v3493 = vpack.c.bf16 %v3484, %v3482
    %v3494 = vpack.c.bf16 %v3487, %v3487
    %v3495 = vld [vmem:[%s33] sm:$0xf]
    %v3496 = vld [vmem:[%s33 + $0x4] sm:$0xf]
    %v3497 = vld [vmem:[%s35] sm:$0xff]
    %v3498 = vld [vmem:[%s35 + $0x8] sm:$0xff]
    %3500 = vset.pattern.permute.xlu0 0
    %3501 = vperm.xlu0 %3500, %v3497
    %v3502 = vpop.permute.xlu0 %3501
    %3505 = vset.pattern.permute.xlu0 0
    %3506 = vperm.xlu0 %3505, %v3498
    %v3507 = vpop.permute.xlu0 %3506
    %v3511 = vunpack.c.l.b16 %v3495
    %v3512 = vunpack.c.l.b16 %v3496
    %v3513 = vpack.c.b16 %v3512, %v3511
    %v3515 = vsel %vm1668, %v3513, 0
    %v3518 = vsel %vm1190, %v3494, 0
    %3520 = vmatpush.bf16.msra.mxu0 0
    %3521 = vmatpush.bf16.msra.mxu0 0
    %3522 = vmatpush.bf16.msra.mxu0 0
    %3523 = vmatpush.bf16.msra.mxu0 %v3518
    %3524 = vmatpush.bf16.msra.mxu0 %v3493
    %3525 = vmatpush.bf16.msra.mxu0 %v3492
    %3526 = vmatpush.bf16.msra.mxu0 %v3491
    %3527 = vmatpush.bf16.msra.mxu0 %v3490
    %3528 = vmatmul.bf16.gmra.mxu0 %v3515
    %v3529 = vpop.f32.mrf.mxu0
    %v3530 = vadd.f32 %v3502, %v3529
    %v3531 = vpop.f32.mrf.mxu0
    %v3532 = vadd.f32 %v3507, %v3531
    %3533 = vdwg.mxu0
    %v3534 = vmax.f32 %v3530, 0.0
    %v3535 = vmax.f32 %v3532, 0.0
    %v3536 = vpack.c.bf16 %v3535, %v3534
    %v3537 = vld [vmem:[%s43] sm:$0xf]
    %v3538 = vld [vmem:[%s43 + $0x4] sm:$0xf]
    %v3539 = vld [vmem:[%s43 + $0x8] sm:$0xf]
    %v3540 = vld [vmem:[%s43 + $0xc] sm:$0xf]
    %v3545 = vunpack.c.l.b16 %v3537
    %v3546 = vunpack.c.l.b16 %v3538
    %v3547 = vunpack.c.l.b16 %v3539
    %v3548 = vunpack.c.l.b16 %v3540
    %v3549 = vpack.c.b16 %v3546, %v3545
    %v3550 = vpack.c.b16 %v3548, %v3547
    %vm3553 = vcmask 261120
    %v3555 = vsel %vm3553, %v3536, 0
    %3557 = vmatpush.bf16.msra.mxu0 0
    %3558 = vmatpush.bf16.msra.mxu0 0
    %3559 = vmatpush.bf16.msra.mxu0 0
    %3560 = vmatpush.bf16.msra.mxu0 0
    %3561 = vmatpush.bf16.msra.mxu0 0
    %3562 = vmatpush.bf16.msra.mxu0 0
    %3563 = vmatpush.bf16.msra.mxu0 %v3550
    %3564 = vmatpush.bf16.msra.mxu0 %v3549
    %3565 = vmatmul.bf16.gmra.mxu0 %v3555
    %v3566 = vpop.f32.mrf.mxu0
    %v3567 = vadd.f32 0.0, %v3566
    %v3568 = vpop.f32.mrf.mxu0
    %v3569 = vadd.f32 0.0, %v3568
    %3570 = vdwg.mxu0
    %v3571 = vpack.c.bf16 %v3567, %v3567
    %v3572 = vpack.c.bf16 %v3569, %v3569
    %s3573 = scalar_lea.vmem %s43, 16
    %v3574 = vld [vmem:[%s3573] sm:$0xf]
    %v3575 = vld [vmem:[%s3573 + $0x4] sm:$0xf]
    %v3576 = vld [vmem:[%s3573 + $0x8] sm:$0xf]
    %v3577 = vld [vmem:[%s3573 + $0xc] sm:$0xf]
    %v3582 = vunpack.c.l.b16 %v3574
    %v3583 = vunpack.c.l.b16 %v3575
    %v3584 = vunpack.c.l.b16 %v3576
    %v3585 = vunpack.c.l.b16 %v3577
    %v3586 = vpack.c.b16 %v3583, %v3582
    %v3587 = vpack.c.b16 %v3585, %v3584
    %3590 = vmatpush.bf16.msra.mxu0 0
    %3591 = vmatpush.bf16.msra.mxu0 0
    %3592 = vmatpush.bf16.msra.mxu0 0
    %3593 = vmatpush.bf16.msra.mxu0 0
    %3594 = vmatpush.bf16.msra.mxu0 0
    %3595 = vmatpush.bf16.msra.mxu0 0
    %3596 = vmatpush.bf16.msra.mxu0 %v3587
    %3597 = vmatpush.bf16.msra.mxu0 %v3586
    %3598 = vmatmul.bf16.gmra.mxu0 %v3555
    %v3599 = vpop.f32.mrf.mxu0
    %v3600 = vadd.f32 0.0, %v3599
    %v3601 = vpop.f32.mrf.mxu0
    %v3602 = vadd.f32 0.0, %v3601
    %3603 = vdwg.mxu0
    %v3604 = vpack.c.bf16 %v3600, %v3600
    %v3605 = vpack.c.bf16 %v3602, %v3602
    %s3606 = scalar_lea.vmem %s43, 32
    %v3607 = vld [vmem:[%s3606] sm:$0xf]
    %v3608 = vld [vmem:[%s3606 + $0x4] sm:$0xf]
    %v3609 = vld [vmem:[%s3606 + $0x8] sm:$0xf]
    %v3610 = vld [vmem:[%s3606 + $0xc] sm:$0xf]
    %v3615 = vunpack.c.l.b16 %v3607
    %v3616 = vunpack.c.l.b16 %v3608
    %v3617 = vunpack.c.l.b16 %v3609
    %v3618 = vunpack.c.l.b16 %v3610
    %v3619 = vpack.c.b16 %v3616, %v3615
    %v3620 = vpack.c.b16 %v3618, %v3617
    %3623 = vmatpush.bf16.msra.mxu0 0
    %3624 = vmatpush.bf16.msra.mxu0 0
    %3625 = vmatpush.bf16.msra.mxu0 0
    %3626 = vmatpush.bf16.msra.mxu0 0
    %3627 = vmatpush.bf16.msra.mxu0 0
    %3628 = vmatpush.bf16.msra.mxu0 0
    %3629 = vmatpush.bf16.msra.mxu0 %v3620
    %3630 = vmatpush.bf16.msra.mxu0 %v3619
    %3631 = vmatmul.bf16.gmra.mxu0 %v3555
    %v3632 = vpop.f32.mrf.mxu0
    %v3633 = vadd.f32 0.0, %v3632
    %v3634 = vpop.f32.mrf.mxu0
    %v3635 = vadd.f32 0.0, %v3634
    %3636 = vdwg.mxu0
    %v3637 = vpack.c.bf16 %v3633, %v3633
    %v3638 = vpack.c.bf16 %v3635, %v3635
    %s3639 = scalar_lea.vmem %s43, 48
    %v3640 = vld [vmem:[%s3639] sm:$0xf]
    %v3641 = vld [vmem:[%s3639 + $0x4] sm:$0xf]
    %v3642 = vld [vmem:[%s3639 + $0x8] sm:$0xf]
    %v3643 = vld [vmem:[%s3639 + $0xc] sm:$0xf]
    %v3648 = vunpack.c.l.b16 %v3640
    %v3649 = vunpack.c.l.b16 %v3641
    %v3650 = vunpack.c.l.b16 %v3642
    %v3651 = vunpack.c.l.b16 %v3643
    %v3652 = vpack.c.b16 %v3649, %v3648
    %v3653 = vpack.c.b16 %v3651, %v3650
    %3656 = vmatpush.bf16.msra.mxu0 0
    %3657 = vmatpush.bf16.msra.mxu0 0
    %3658 = vmatpush.bf16.msra.mxu0 0
    %3659 = vmatpush.bf16.msra.mxu0 0
    %3660 = vmatpush.bf16.msra.mxu0 0
    %3661 = vmatpush.bf16.msra.mxu0 0
    %3662 = vmatpush.bf16.msra.mxu0 %v3653
    %3663 = vmatpush.bf16.msra.mxu0 %v3652
    %3664 = vmatmul.bf16.gmra.mxu0 %v3555
    %v3665 = vpop.f32.mrf.mxu0
    %v3666 = vadd.f32 0.0, %v3665
    %v3667 = vpop.f32.mrf.mxu0
    %v3668 = vadd.f32 0.0, %v3667
    %3669 = vdwg.mxu0
    %v3670 = vpack.c.bf16 %v3666, %v3666
    %v3671 = vpack.c.bf16 %v3668, %v3668
    %s3672 = scalar_lea.vmem %s43, 64
    %v3673 = vld [vmem:[%s3672] sm:$0xf]
    %v3674 = vld [vmem:[%s3672 + $0x4] sm:$0xf]
    %v3675 = vld [vmem:[%s3672 + $0x8] sm:$0xf]
    %v3676 = vld [vmem:[%s3672 + $0xc] sm:$0xf]
    %v3681 = vunpack.c.l.b16 %v3673
    %v3682 = vunpack.c.l.b16 %v3674
    %v3683 = vunpack.c.l.b16 %v3675
    %v3684 = vunpack.c.l.b16 %v3676
    %v3685 = vpack.c.b16 %v3682, %v3681
    %v3686 = vpack.c.b16 %v3684, %v3683
    %3689 = vmatpush.bf16.msra.mxu0 0
    %3690 = vmatpush.bf16.msra.mxu0 0
    %3691 = vmatpush.bf16.msra.mxu0 0
    %3692 = vmatpush.bf16.msra.mxu0 0
    %3693 = vmatpush.bf16.msra.mxu0 0
    %3694 = vmatpush.bf16.msra.mxu0 0
    %3695 = vmatpush.bf16.msra.mxu0 %v3686
    %3696 = vmatpush.bf16.msra.mxu0 %v3685
    %3697 = vmatmul.bf16.gmra.mxu0 %v3555
    %v3698 = vpop.f32.mrf.mxu0
    %v3699 = vadd.f32 0.0, %v3698
    %v3700 = vpop.f32.mrf.mxu0
    %v3701 = vadd.f32 0.0, %v3700
    %3702 = vdwg.mxu0
    %v3703 = vpack.c.bf16 %v3699, %v3699
    %v3704 = vpack.c.bf16 %v3701, %v3701
    %s3705 = scalar_lea.vmem %s43, 80
    %v3706 = vld [vmem:[%s3705] sm:$0xf]
    %v3707 = vld [vmem:[%s3705 + $0x4] sm:$0xf]
    %v3708 = vld [vmem:[%s3705 + $0x8] sm:$0xf]
    %v3709 = vld [vmem:[%s3705 + $0xc] sm:$0xf]
    %v3714 = vunpack.c.l.b16 %v3706
    %v3715 = vunpack.c.l.b16 %v3707
    %v3716 = vunpack.c.l.b16 %v3708
    %v3717 = vunpack.c.l.b16 %v3709
    %v3718 = vpack.c.b16 %v3715, %v3714
    %v3719 = vpack.c.b16 %v3717, %v3716
    %3722 = vmatpush.bf16.msra.mxu0 0
    %3723 = vmatpush.bf16.msra.mxu0 0
    %3724 = vmatpush.bf16.msra.mxu0 0
    %3725 = vmatpush.bf16.msra.mxu0 0
    %3726 = vmatpush.bf16.msra.mxu0 0
    %3727 = vmatpush.bf16.msra.mxu0 0
    %3728 = vmatpush.bf16.msra.mxu0 %v3719
    %3729 = vmatpush.bf16.msra.mxu0 %v3718
    %3730 = vmatmul.bf16.gmra.mxu0 %v3555
    %v3731 = vpop.f32.mrf.mxu0
    %v3732 = vadd.f32 0.0, %v3731
    %v3733 = vpop.f32.mrf.mxu0
    %v3734 = vadd.f32 0.0, %v3733
    %3735 = vdwg.mxu0
    %v3736 = vpack.c.bf16 %v3732, %v3732
    %v3737 = vpack.c.bf16 %v3734, %v3734
    %s3738 = scalar_lea.vmem %s43, 96
    %v3739 = vld [vmem:[%s3738] sm:$0xf]
    %v3740 = vld [vmem:[%s3738 + $0x4] sm:$0xf]
    %v3741 = vld [vmem:[%s3738 + $0x8] sm:$0xf]
    %v3742 = vld [vmem:[%s3738 + $0xc] sm:$0xf]
    %v3747 = vunpack.c.l.b16 %v3739
    %v3748 = vunpack.c.l.b16 %v3740
    %v3749 = vunpack.c.l.b16 %v3741
    %v3750 = vunpack.c.l.b16 %v3742
    %v3751 = vpack.c.b16 %v3748, %v3747
    %v3752 = vpack.c.b16 %v3750, %v3749
    %3755 = vmatpush.bf16.msra.mxu0 0
    %3756 = vmatpush.bf16.msra.mxu0 0
    %3757 = vmatpush.bf16.msra.mxu0 0
    %3758 = vmatpush.bf16.msra.mxu0 0
    %3759 = vmatpush.bf16.msra.mxu0 0
    %3760 = vmatpush.bf16.msra.mxu0 0
    %3761 = vmatpush.bf16.msra.mxu0 %v3752
    %3762 = vmatpush.bf16.msra.mxu0 %v3751
    %3763 = vmatmul.bf16.gmra.mxu0 %v3555
    %v3764 = vpop.f32.mrf.mxu0
    %v3765 = vadd.f32 0.0, %v3764
    %v3766 = vpop.f32.mrf.mxu0
    %v3767 = vadd.f32 0.0, %v3766
    %3768 = vdwg.mxu0
    %v3769 = vpack.c.bf16 %v3765, %v3765
    %v3770 = vpack.c.bf16 %v3767, %v3767
    %s3771 = scalar_lea.vmem %s43, 112
    %v3772 = vld [vmem:[%s3771] sm:$0xf]
    %v3773 = vld [vmem:[%s3771 + $0x4] sm:$0xf]
    %v3774 = vld [vmem:[%s3771 + $0x8] sm:$0xf]
    %v3775 = vld [vmem:[%s3771 + $0xc] sm:$0xf]
    %v3780 = vunpack.c.l.b16 %v3772
    %v3781 = vunpack.c.l.b16 %v3773
    %v3782 = vunpack.c.l.b16 %v3774
    %v3783 = vunpack.c.l.b16 %v3775
    %v3784 = vpack.c.b16 %v3781, %v3780
    %v3785 = vpack.c.b16 %v3783, %v3782
    %3788 = vmatpush.bf16.msra.mxu0 0
    %3789 = vmatpush.bf16.msra.mxu0 0
    %3790 = vmatpush.bf16.msra.mxu0 0
    %3791 = vmatpush.bf16.msra.mxu0 0
    %3792 = vmatpush.bf16.msra.mxu0 0
    %3793 = vmatpush.bf16.msra.mxu0 0
    %3794 = vmatpush.bf16.msra.mxu0 %v3785
    %3795 = vmatpush.bf16.msra.mxu0 %v3784
    %3796 = vmatmul.bf16.gmra.mxu0 %v3555
    %v3797 = vpop.f32.mrf.mxu0
    %v3798 = vadd.f32 0.0, %v3797
    %v3799 = vpop.f32.mrf.mxu0
    %v3800 = vadd.f32 0.0, %v3799
    %3801 = vdwg.mxu0
    %v3802 = vpack.c.bf16 %v3798, %v3798
    %v3803 = vpack.c.bf16 %v3800, %v3800
    %s3804 = scalar_lea.vmem %s43, 128
    %v3805 = vld [vmem:[%s3804] sm:$0xf]
    %v3806 = vld [vmem:[%s3804 + $0x4] sm:$0xf]
    %v3807 = vld [vmem:[%s3804 + $0x8] sm:$0xf]
    %v3808 = vld [vmem:[%s3804 + $0xc] sm:$0xf]
    %v3813 = vunpack.c.l.b16 %v3805
    %v3814 = vunpack.c.l.b16 %v3806
    %v3815 = vunpack.c.l.b16 %v3807
    %v3816 = vunpack.c.l.b16 %v3808
    %v3817 = vpack.c.b16 %v3814, %v3813
    %v3818 = vpack.c.b16 %v3816, %v3815
    %3821 = vmatpush.bf16.msra.mxu0 0
    %3822 = vmatpush.bf16.msra.mxu0 0
    %3823 = vmatpush.bf16.msra.mxu0 0
    %3824 = vmatpush.bf16.msra.mxu0 0
    %3825 = vmatpush.bf16.msra.mxu0 0
    %3826 = vmatpush.bf16.msra.mxu0 0
    %3827 = vmatpush.bf16.msra.mxu0 %v3818
    %3828 = vmatpush.bf16.msra.mxu0 %v3817
    %3829 = vmatmul.bf16.gmra.mxu0 %v3555
    %v3830 = vpop.f32.mrf.mxu0
    %v3831 = vadd.f32 0.0, %v3830
    %v3832 = vpop.f32.mrf.mxu0
    %v3833 = vadd.f32 0.0, %v3832
    %3834 = vdwg.mxu0
    %v3835 = vpack.c.bf16 %v3831, %v3831
    %v3836 = vpack.c.bf16 %v3833, %v3833
    %v3839 = vunpack.c.l.b16 %v3571
    %v3840 = vunpack.c.l.b16 %v3572
    %v3841 = vpack.c.b16 %v3840, %v3839
    %v3845 = vunpack.c.l.b16 %v3604
    %v3846 = vunpack.c.l.b16 %v3605
    %v3847 = vpack.c.b16 %v3846, %v3845
    %v3851 = vunpack.c.l.b16 %v3637
    %v3852 = vunpack.c.l.b16 %v3638
    %v3853 = vpack.c.b16 %v3852, %v3851
    %v3857 = vunpack.c.l.b16 %v3670
    %v3858 = vunpack.c.l.b16 %v3671
    %v3859 = vpack.c.b16 %v3858, %v3857
    %v3863 = vunpack.c.l.b16 %v3703
    %v3864 = vunpack.c.l.b16 %v3704
    %v3865 = vpack.c.b16 %v3864, %v3863
    %v3869 = vunpack.c.l.b16 %v3736
    %v3870 = vunpack.c.l.b16 %v3737
    %v3871 = vpack.c.b16 %v3870, %v3869
    %v3875 = vunpack.c.l.b16 %v3769
    %v3876 = vunpack.c.l.b16 %v3770
    %v3877 = vpack.c.b16 %v3876, %v3875
    %v3881 = vunpack.c.l.b16 %v3802
    %v3882 = vunpack.c.l.b16 %v3803
    %v3883 = vpack.c.b16 %v3882, %v3881
    %v3887 = vunpack.c.l.b16 %v3835
    %v3888 = vunpack.c.l.b16 %v3836
    %v3889 = vpack.c.b16 %v3888, %v3887
    %v3891 = vld [vmem:[%s39] sm:$0xff]
    %v3892 = vld [vmem:[%s39 + $0x8] sm:$0xff]
    %v3893 = vld [vmem:[%s41] sm:$0xff]
    %v3894 = vld [vmem:[%s41 + $0x8] sm:$0xff]
    %3896 = vset.pattern.permute.xlu0 0
    %3897 = vperm.xlu0 %3896, %v3893
    %v3898 = vpop.permute.xlu0 %3897
    %3901 = vset.pattern.permute.xlu0 0
    %3902 = vperm.xlu0 %3901, %v3894
    %v3903 = vpop.permute.xlu0 %3902
    %v3907 = vunpack.c.l.b16 %v3891
    %v3908 = vunpack.c.h.b16 %v3891
    %v3909 = vunpack.c.l.b16 %v3892
    %v3910 = vunpack.c.h.b16 %v3892
    %v3911 = vpack.c.b16 %v3909, %v3907
    %v3912 = vpack.c.b16 %v3910, %v3908
    %v3915 = vsel %vm360, %v3912, 0
    %3917 = vmatpush.bf16.msra.mxu0 %v3883
    %3918 = vmatpush.bf16.msra.mxu0 %v3877
    %3919 = vmatpush.bf16.msra.mxu0 %v3871
    %3920 = vmatpush.bf16.msra.mxu0 %v3865
    %3921 = vmatpush.bf16.msra.mxu0 %v3859
    %3922 = vmatpush.bf16.msra.mxu0 %v3853
    %3923 = vmatpush.bf16.msra.mxu0 %v3847
    %3924 = vmatpush.bf16.msra.mxu0 %v3841
    %3925 = vmatmul.bf16.gmra.mxu0 %v3911
    %v3926 = vpop.f32.mrf.mxu0
    %v3927 = vadd.f32 %v3898, %v3926
    %v3928 = vpop.f32.mrf.mxu0
    %v3929 = vadd.f32 %v3903, %v3928
    %3930 = vdwg.mxu0
    %3931 = vmatpush.bf16.msra.mxu0 0
    %3932 = vmatpush.bf16.msra.mxu0 0
    %3933 = vmatpush.bf16.msra.mxu0 0
    %3934 = vmatpush.bf16.msra.mxu0 0
    %3935 = vmatpush.bf16.msra.mxu0 0
    %3936 = vmatpush.bf16.msra.mxu0 0
    %3937 = vmatpush.bf16.msra.mxu0 0
    %3938 = vmatpush.bf16.msra.mxu0 %v3889
    %3939 = vmatmul.bf16.gmra.mxu0 %v3915
    %v3940 = vpop.f32.mrf.mxu0
    %v3941 = vadd.f32 %v3927, %v3940
    %v3942 = vpop.f32.mrf.mxu0
    %v3943 = vadd.f32 %v3929, %v3942
    %3944 = vdwg.mxu0
    %v3945 = vadd.f32 %v3941, %v3366
    %v3946 = vadd.f32 %v3943, %v3368
    %v3947 = vmax.f32 %v3945, 0.0
    %v3948 = vmax.f32 %v3946, 0.0
    %v3949 = vpack.c.bf16 %v3948, %v3947
    %v3950 = vld [vmem:[%s65] sm:$0xf]
    %v3951 = vld [vmem:[%s65 + $0x4] sm:$0xf]
    %v3952 = vld [vmem:[%s65 + $0x8] sm:$0xf]
    %v3953 = vld [vmem:[%s65 + $0xc] sm:$0xf]
    %v3958 = vunpack.c.l.b16 %v3950
    %v3959 = vunpack.c.l.b16 %v3951
    %v3960 = vunpack.c.l.b16 %v3952
    %v3961 = vunpack.c.l.b16 %v3953
    %v3962 = vpack.c.b16 %v3959, %v3958
    %v3963 = vpack.c.b16 %v3961, %v3960
    %v3967 = vsel %vm3553, %v3949, 0
    %3969 = vmatpush.bf16.msra.mxu0 0
    %3970 = vmatpush.bf16.msra.mxu0 0
    %3971 = vmatpush.bf16.msra.mxu0 0
    %3972 = vmatpush.bf16.msra.mxu0 0
    %3973 = vmatpush.bf16.msra.mxu0 0
    %3974 = vmatpush.bf16.msra.mxu0 0
    %3975 = vmatpush.bf16.msra.mxu0 %v3963
    %3976 = vmatpush.bf16.msra.mxu0 %v3962
    %3977 = vmatmul.bf16.gmra.mxu0 %v3967
    %v3978 = vpop.f32.mrf.mxu0
    %v3979 = vadd.f32 0.0, %v3978
    %v3980 = vpop.f32.mrf.mxu0
    %v3981 = vadd.f32 0.0, %v3980
    %3982 = vdwg.mxu0
    %v3983 = vpack.c.bf16 %v3981, %v3979
    %v3984 = vld [vmem:[%s61] sm:$0xf]
    %v3985 = vld [vmem:[%s61 + $0x4] sm:$0xf]
    %v3986 = vld [vmem:[%s63] sm:$0xff]
    %v3987 = vld [vmem:[%s63 + $0x8] sm:$0xff]
    %3989 = vset.pattern.permute.xlu0 0
    %3990 = vperm.xlu0 %3989, %v3986
    %v3991 = vpop.permute.xlu0 %3990
    %3994 = vset.pattern.permute.xlu0 0
    %3995 = vperm.xlu0 %3994, %v3987
    %v3996 = vpop.permute.xlu0 %3995
    %v4000 = vunpack.c.l.b16 %v3984
    %v4001 = vunpack.c.l.b16 %v3985
    %v4002 = vpack.c.b16 %v4001, %v4000
    %v4004 = vsel %vm360, %v4002, 0
    %4006 = vmatpush.bf16.msra.mxu0 0
    %4007 = vmatpush.bf16.msra.mxu0 0
    %4008 = vmatpush.bf16.msra.mxu0 0
    %4009 = vmatpush.bf16.msra.mxu0 0
    %4010 = vmatpush.bf16.msra.mxu0 0
    %4011 = vmatpush.bf16.msra.mxu0 0
    %4012 = vmatpush.bf16.msra.mxu0 0
    %4013 = vmatpush.bf16.msra.mxu0 %v3983
    %4014 = vmatmul.bf16.gmra.mxu0 %v4004
    %v4015 = vpop.f32.mrf.mxu0
    %v4016 = vadd.f32 %v3991, %v4015
    %v4017 = vpop.f32.mrf.mxu0
    %v4018 = vadd.f32 %v3996, %v4017
    %4019 = vdwg.mxu0
    %v4020 = vld [vmem:[%s53] sm:$0xf]
    %v4021 = vld [vmem:[%s53 + $0x4] sm:$0xf]
    %v4022 = vld [vmem:[%s53 + $0x8] sm:$0xf]
    %v4023 = vld [vmem:[%s53 + $0xc] sm:$0xf]
    %v4028 = vunpack.c.l.b16 %v4020
    %v4029 = vunpack.c.l.b16 %v4021
    %v4030 = vunpack.c.l.b16 %v4022
    %v4031 = vunpack.c.l.b16 %v4023
    %v4032 = vpack.c.b16 %v4029, %v4028
    %v4033 = vpack.c.b16 %v4031, %v4030
    %4036 = vmatpush.bf16.msra.mxu0 0
    %4037 = vmatpush.bf16.msra.mxu0 0
    %4038 = vmatpush.bf16.msra.mxu0 0
    %4039 = vmatpush.bf16.msra.mxu0 0
    %4040 = vmatpush.bf16.msra.mxu0 0
    %4041 = vmatpush.bf16.msra.mxu0 0
    %4042 = vmatpush.bf16.msra.mxu0 %v4033
    %4043 = vmatpush.bf16.msra.mxu0 %v4032
    %4044 = vmatmul.bf16.gmra.mxu0 %v3967
    %v4045 = vpop.f32.mrf.mxu0
    %v4046 = vadd.f32 0.0, %v4045
    %v4047 = vpop.f32.mrf.mxu0
    %v4048 = vadd.f32 0.0, %v4047
    %4049 = vdwg.mxu0
    %v4050 = vpack.c.bf16 %v4046, %v4046
    %v4051 = vpack.c.bf16 %v4048, %v4048
    %s4052 = scalar_lea.vmem %s53, 16
    %v4053 = vld [vmem:[%s4052] sm:$0xf]
    %v4054 = vld [vmem:[%s4052 + $0x4] sm:$0xf]
    %v4055 = vld [vmem:[%s4052 + $0x8] sm:$0xf]
    %v4056 = vld [vmem:[%s4052 + $0xc] sm:$0xf]
    %v4061 = vunpack.c.l.b16 %v4053
    %v4062 = vunpack.c.l.b16 %v4054
    %v4063 = vunpack.c.l.b16 %v4055
    %v4064 = vunpack.c.l.b16 %v4056
    %v4065 = vpack.c.b16 %v4062, %v4061
    %v4066 = vpack.c.b16 %v4064, %v4063
    %4069 = vmatpush.bf16.msra.mxu0 0
    %4070 = vmatpush.bf16.msra.mxu0 0
    %4071 = vmatpush.bf16.msra.mxu0 0
    %4072 = vmatpush.bf16.msra.mxu0 0
    %4073 = vmatpush.bf16.msra.mxu0 0
    %4074 = vmatpush.bf16.msra.mxu0 0
    %4075 = vmatpush.bf16.msra.mxu0 %v4066
    %4076 = vmatpush.bf16.msra.mxu0 %v4065
    %4077 = vmatmul.bf16.gmra.mxu0 %v3967
    %v4078 = vpop.f32.mrf.mxu0
    %v4079 = vadd.f32 0.0, %v4078
    %v4080 = vpop.f32.mrf.mxu0
    %v4081 = vadd.f32 0.0, %v4080
    %4082 = vdwg.mxu0
    %v4083 = vpack.c.bf16 %v4079, %v4079
    %v4084 = vpack.c.bf16 %v4081, %v4081
    %s4085 = scalar_lea.vmem %s53, 32
    %v4086 = vld [vmem:[%s4085] sm:$0xf]
    %v4087 = vld [vmem:[%s4085 + $0x4] sm:$0xf]
    %v4088 = vld [vmem:[%s4085 + $0x8] sm:$0xf]
    %v4089 = vld [vmem:[%s4085 + $0xc] sm:$0xf]
    %v4094 = vunpack.c.l.b16 %v4086
    %v4095 = vunpack.c.l.b16 %v4087
    %v4096 = vunpack.c.l.b16 %v4088
    %v4097 = vunpack.c.l.b16 %v4089
    %v4098 = vpack.c.b16 %v4095, %v4094
    %v4099 = vpack.c.b16 %v4097, %v4096
    %4102 = vmatpush.bf16.msra.mxu0 0
    %4103 = vmatpush.bf16.msra.mxu0 0
    %4104 = vmatpush.bf16.msra.mxu0 0
    %4105 = vmatpush.bf16.msra.mxu0 0
    %4106 = vmatpush.bf16.msra.mxu0 0
    %4107 = vmatpush.bf16.msra.mxu0 0
    %4108 = vmatpush.bf16.msra.mxu0 %v4099
    %4109 = vmatpush.bf16.msra.mxu0 %v4098
    %4110 = vmatmul.bf16.gmra.mxu0 %v3967
    %v4111 = vpop.f32.mrf.mxu0
    %v4112 = vadd.f32 0.0, %v4111
    %v4113 = vpop.f32.mrf.mxu0
    %v4114 = vadd.f32 0.0, %v4113
    %4115 = vdwg.mxu0
    %v4116 = vpack.c.bf16 %v4112, %v4112
    %v4117 = vpack.c.bf16 %v4114, %v4114
    %s4118 = scalar_lea.vmem %s53, 48
    %v4119 = vld [vmem:[%s4118] sm:$0xf]
    %v4120 = vld [vmem:[%s4118 + $0x4] sm:$0xf]
    %v4121 = vld [vmem:[%s4118 + $0x8] sm:$0xf]
    %v4122 = vld [vmem:[%s4118 + $0xc] sm:$0xf]
    %v4127 = vunpack.c.l.b16 %v4119
    %v4128 = vunpack.c.l.b16 %v4120
    %v4129 = vunpack.c.l.b16 %v4121
    %v4130 = vunpack.c.l.b16 %v4122
    %v4131 = vpack.c.b16 %v4128, %v4127
    %v4132 = vpack.c.b16 %v4130, %v4129
    %4135 = vmatpush.bf16.msra.mxu0 0
    %4136 = vmatpush.bf16.msra.mxu0 0
    %4137 = vmatpush.bf16.msra.mxu0 0
    %4138 = vmatpush.bf16.msra.mxu0 0
    %4139 = vmatpush.bf16.msra.mxu0 0
    %4140 = vmatpush.bf16.msra.mxu0 0
    %4141 = vmatpush.bf16.msra.mxu0 %v4132
    %4142 = vmatpush.bf16.msra.mxu0 %v4131
    %4143 = vmatmul.bf16.gmra.mxu0 %v3967
    %v4144 = vpop.f32.mrf.mxu0
    %v4145 = vadd.f32 0.0, %v4144
    %v4146 = vpop.f32.mrf.mxu0
    %v4147 = vadd.f32 0.0, %v4146
    %4148 = vdwg.mxu0
    %v4149 = vpack.c.bf16 %v4145, %v4145
    %v4150 = vpack.c.bf16 %v4147, %v4147
    %s4151 = scalar_lea.vmem %s53, 64
    %v4152 = vld [vmem:[%s4151] sm:$0xf]
    %v4153 = vld [vmem:[%s4151 + $0x4] sm:$0xf]
    %v4154 = vld [vmem:[%s4151 + $0x8] sm:$0xf]
    %v4155 = vld [vmem:[%s4151 + $0xc] sm:$0xf]
    %v4160 = vunpack.c.l.b16 %v4152
    %v4161 = vunpack.c.l.b16 %v4153
    %v4162 = vunpack.c.l.b16 %v4154
    %v4163 = vunpack.c.l.b16 %v4155
    %v4164 = vpack.c.b16 %v4161, %v4160
    %v4165 = vpack.c.b16 %v4163, %v4162
    %4168 = vmatpush.bf16.msra.mxu0 0
    %4169 = vmatpush.bf16.msra.mxu0 0
    %4170 = vmatpush.bf16.msra.mxu0 0
    %4171 = vmatpush.bf16.msra.mxu0 0
    %4172 = vmatpush.bf16.msra.mxu0 0
    %4173 = vmatpush.bf16.msra.mxu0 0
    %4174 = vmatpush.bf16.msra.mxu0 %v4165
    %4175 = vmatpush.bf16.msra.mxu0 %v4164
    %4176 = vmatmul.bf16.gmra.mxu0 %v3967
    %v4177 = vpop.f32.mrf.mxu0
    %v4178 = vadd.f32 0.0, %v4177
    %v4179 = vpop.f32.mrf.mxu0
    %v4180 = vadd.f32 0.0, %v4179
    %4181 = vdwg.mxu0
    %v4182 = vpack.c.bf16 %v4178, %v4178
    %v4183 = vpack.c.bf16 %v4180, %v4180
    %s4184 = scalar_lea.vmem %s53, 80
    %v4185 = vld [vmem:[%s4184] sm:$0xf]
    %v4186 = vld [vmem:[%s4184 + $0x4] sm:$0xf]
    %v4187 = vld [vmem:[%s4184 + $0x8] sm:$0xf]
    %v4188 = vld [vmem:[%s4184 + $0xc] sm:$0xf]
    %v4193 = vunpack.c.l.b16 %v4185
    %v4194 = vunpack.c.l.b16 %v4186
    %v4195 = vunpack.c.l.b16 %v4187
    %v4196 = vunpack.c.l.b16 %v4188
    %v4197 = vpack.c.b16 %v4194, %v4193
    %v4198 = vpack.c.b16 %v4196, %v4195
    %4201 = vmatpush.bf16.msra.mxu0 0
    %4202 = vmatpush.bf16.msra.mxu0 0
    %4203 = vmatpush.bf16.msra.mxu0 0
    %4204 = vmatpush.bf16.msra.mxu0 0
    %4205 = vmatpush.bf16.msra.mxu0 0
    %4206 = vmatpush.bf16.msra.mxu0 0
    %4207 = vmatpush.bf16.msra.mxu0 %v4198
    %4208 = vmatpush.bf16.msra.mxu0 %v4197
    %4209 = vmatmul.bf16.gmra.mxu0 %v3967
    %v4210 = vpop.f32.mrf.mxu0
    %v4211 = vadd.f32 0.0, %v4210
    %v4212 = vpop.f32.mrf.mxu0
    %v4213 = vadd.f32 0.0, %v4212
    %4214 = vdwg.mxu0
    %v4215 = vpack.c.bf16 %v4211, %v4211
    %v4216 = vpack.c.bf16 %v4213, %v4213
    %s4217 = scalar_lea.vmem %s53, 96
    %v4218 = vld [vmem:[%s4217] sm:$0xf]
    %v4219 = vld [vmem:[%s4217 + $0x4] sm:$0xf]
    %v4220 = vld [vmem:[%s4217 + $0x8] sm:$0xf]
    %v4221 = vld [vmem:[%s4217 + $0xc] sm:$0xf]
    %v4226 = vunpack.c.l.b16 %v4218
    %v4227 = vunpack.c.l.b16 %v4219
    %v4228 = vunpack.c.l.b16 %v4220
    %v4229 = vunpack.c.l.b16 %v4221
    %v4230 = vpack.c.b16 %v4227, %v4226
    %v4231 = vpack.c.b16 %v4229, %v4228
    %4234 = vmatpush.bf16.msra.mxu0 0
    %4235 = vmatpush.bf16.msra.mxu0 0
    %4236 = vmatpush.bf16.msra.mxu0 0
    %4237 = vmatpush.bf16.msra.mxu0 0
    %4238 = vmatpush.bf16.msra.mxu0 0
    %4239 = vmatpush.bf16.msra.mxu0 0
    %4240 = vmatpush.bf16.msra.mxu0 %v4231
    %4241 = vmatpush.bf16.msra.mxu0 %v4230
    %4242 = vmatmul.bf16.gmra.mxu0 %v3967
    %v4243 = vpop.f32.mrf.mxu0
    %v4244 = vadd.f32 0.0, %v4243
    %v4245 = vpop.f32.mrf.mxu0
    %v4246 = vadd.f32 0.0, %v4245
    %4247 = vdwg.mxu0
    %v4248 = vpack.c.bf16 %v4244, %v4244
    %v4249 = vpack.c.bf16 %v4246, %v4246
    %s4250 = scalar_lea.vmem %s53, 112
    %v4251 = vld [vmem:[%s4250] sm:$0xf]
    %v4252 = vld [vmem:[%s4250 + $0x4] sm:$0xf]
    %v4253 = vld [vmem:[%s4250 + $0x8] sm:$0xf]
    %v4254 = vld [vmem:[%s4250 + $0xc] sm:$0xf]
    %v4259 = vunpack.c.l.b16 %v4251
    %v4260 = vunpack.c.l.b16 %v4252
    %v4261 = vunpack.c.l.b16 %v4253
    %v4262 = vunpack.c.l.b16 %v4254
    %v4263 = vpack.c.b16 %v4260, %v4259
    %v4264 = vpack.c.b16 %v4262, %v4261
    %4267 = vmatpush.bf16.msra.mxu0 0
    %4268 = vmatpush.bf16.msra.mxu0 0
    %4269 = vmatpush.bf16.msra.mxu0 0
    %4270 = vmatpush.bf16.msra.mxu0 0
    %4271 = vmatpush.bf16.msra.mxu0 0
    %4272 = vmatpush.bf16.msra.mxu0 0
    %4273 = vmatpush.bf16.msra.mxu0 %v4264
    %4274 = vmatpush.bf16.msra.mxu0 %v4263
    %4275 = vmatmul.bf16.gmra.mxu0 %v3967
    %v4276 = vpop.f32.mrf.mxu0
    %v4277 = vadd.f32 0.0, %v4276
    %v4278 = vpop.f32.mrf.mxu0
    %v4279 = vadd.f32 0.0, %v4278
    %4280 = vdwg.mxu0
    %v4281 = vpack.c.bf16 %v4277, %v4277
    %v4282 = vpack.c.bf16 %v4279, %v4279
    %s4283 = scalar_lea.vmem %s53, 128
    %v4284 = vld [vmem:[%s4283] sm:$0xf]
    %v4285 = vld [vmem:[%s4283 + $0x4] sm:$0xf]
    %v4286 = vld [vmem:[%s4283 + $0x8] sm:$0xf]
    %v4287 = vld [vmem:[%s4283 + $0xc] sm:$0xf]
    %v4292 = vunpack.c.l.b16 %v4284
    %v4293 = vunpack.c.l.b16 %v4285
    %v4294 = vunpack.c.l.b16 %v4286
    %v4295 = vunpack.c.l.b16 %v4287
    %v4296 = vpack.c.b16 %v4293, %v4292
    %v4297 = vpack.c.b16 %v4295, %v4294
    %4300 = vmatpush.bf16.msra.mxu0 0
    %4301 = vmatpush.bf16.msra.mxu0 0
    %4302 = vmatpush.bf16.msra.mxu0 0
    %4303 = vmatpush.bf16.msra.mxu0 0
    %4304 = vmatpush.bf16.msra.mxu0 0
    %4305 = vmatpush.bf16.msra.mxu0 0
    %4306 = vmatpush.bf16.msra.mxu0 %v4297
    %4307 = vmatpush.bf16.msra.mxu0 %v4296
    %4308 = vmatmul.bf16.gmra.mxu0 %v3967
    %v4309 = vpop.f32.mrf.mxu0
    %v4310 = vadd.f32 0.0, %v4309
    %v4311 = vpop.f32.mrf.mxu0
    %v4312 = vadd.f32 0.0, %v4311
    %4313 = vdwg.mxu0
    %v4314 = vpack.c.bf16 %v4310, %v4310
    %v4315 = vpack.c.bf16 %v4312, %v4312
    %v4318 = vunpack.c.l.b16 %v4050
    %v4319 = vunpack.c.l.b16 %v4051
    %v4320 = vpack.c.b16 %v4319, %v4318
    %v4324 = vunpack.c.l.b16 %v4083
    %v4325 = vunpack.c.l.b16 %v4084
    %v4326 = vpack.c.b16 %v4325, %v4324
    %v4330 = vunpack.c.l.b16 %v4116
    %v4331 = vunpack.c.l.b16 %v4117
    %v4332 = vpack.c.b16 %v4331, %v4330
    %v4336 = vunpack.c.l.b16 %v4149
    %v4337 = vunpack.c.l.b16 %v4150
    %v4338 = vpack.c.b16 %v4337, %v4336
    %v4342 = vunpack.c.l.b16 %v4182
    %v4343 = vunpack.c.l.b16 %v4183
    %v4344 = vpack.c.b16 %v4343, %v4342
    %v4348 = vunpack.c.l.b16 %v4215
    %v4349 = vunpack.c.l.b16 %v4216
    %v4350 = vpack.c.b16 %v4349, %v4348
    %v4354 = vunpack.c.l.b16 %v4248
    %v4355 = vunpack.c.l.b16 %v4249
    %v4356 = vpack.c.b16 %v4355, %v4354
    %v4360 = vunpack.c.l.b16 %v4281
    %v4361 = vunpack.c.l.b16 %v4282
    %v4362 = vpack.c.b16 %v4361, %v4360
    %v4366 = vunpack.c.l.b16 %v4314
    %v4367 = vunpack.c.l.b16 %v4315
    %v4368 = vpack.c.b16 %v4367, %v4366
    %v4370 = vld [vmem:[%s49] sm:$0xff]
    %v4371 = vld [vmem:[%s49 + $0x8] sm:$0xff]
    %v4372 = vld [vmem:[%s51] sm:$0xff]
    %v4373 = vld [vmem:[%s51 + $0x8] sm:$0xff]
    %4375 = vset.pattern.permute.xlu0 0
    %4376 = vperm.xlu0 %4375, %v4372
    %v4377 = vpop.permute.xlu0 %4376
    %4380 = vset.pattern.permute.xlu0 0
    %4381 = vperm.xlu0 %4380, %v4373
    %v4382 = vpop.permute.xlu0 %4381
    %v4386 = vunpack.c.l.b16 %v4370
    %v4387 = vunpack.c.h.b16 %v4370
    %v4388 = vunpack.c.l.b16 %v4371
    %v4389 = vunpack.c.h.b16 %v4371
    %v4390 = vpack.c.b16 %v4388, %v4386
    %v4391 = vpack.c.b16 %v4389, %v4387
    %v4394 = vsel %vm360, %v4391, 0
    %4396 = vmatpush.bf16.msra.mxu0 %v4362
    %4397 = vmatpush.bf16.msra.mxu0 %v4356
    %4398 = vmatpush.bf16.msra.mxu0 %v4350
    %4399 = vmatpush.bf16.msra.mxu0 %v4344
    %4400 = vmatpush.bf16.msra.mxu0 %v4338
    %4401 = vmatpush.bf16.msra.mxu0 %v4332
    %4402 = vmatpush.bf16.msra.mxu0 %v4326
    %4403 = vmatpush.bf16.msra.mxu0 %v4320
    %4404 = vmatmul.bf16.gmra.mxu0 %v4390
    %v4405 = vpop.f32.mrf.mxu0
    %v4406 = vadd.f32 %v4377, %v4405
    %v4407 = vpop.f32.mrf.mxu0
    %v4408 = vadd.f32 %v4382, %v4407
    %4409 = vdwg.mxu0
    %4410 = vmatpush.bf16.msra.mxu0 0
    %4411 = vmatpush.bf16.msra.mxu0 0
    %4412 = vmatpush.bf16.msra.mxu0 0
    %4413 = vmatpush.bf16.msra.mxu0 0
    %4414 = vmatpush.bf16.msra.mxu0 0
    %4415 = vmatpush.bf16.msra.mxu0 0
    %4416 = vmatpush.bf16.msra.mxu0 0
    %4417 = vmatpush.bf16.msra.mxu0 %v4368
    %4418 = vmatmul.bf16.gmra.mxu0 %v4394
    %v4419 = vpop.f32.mrf.mxu0
    %v4420 = vadd.f32 %v4406, %v4419
    %v4421 = vpop.f32.mrf.mxu0
    %v4422 = vadd.f32 %v4408, %v4421
    %4423 = vdwg.mxu0
    %v4424 = vmax.f32 %v4420, 0.0
    %v4425 = vmax.f32 %v4422, 0.0
    %v4426 = vpack.c.bf16 %v4425, %v4424
    %v4427 = vld [vmem:[%s59] sm:$0xf]
    %v4429 = vsel %vm2534, %v4426, 0
    %v4432 = vsel %vm1190, %v4427, 0
    %4434 = vmatpush.bf16.msra.mxu0 0
    %4435 = vmatpush.bf16.msra.mxu0 0
    %4436 = vmatpush.bf16.msra.mxu0 0
    %4437 = vmatpush.bf16.msra.mxu0 0
    %4438 = vmatpush.bf16.msra.mxu0 0
    %4439 = vmatpush.bf16.msra.mxu0 0
    %4440 = vmatpush.bf16.msra.mxu0 0
    %4441 = vmatpush.bf16.msra.mxu0 %v4432
    %4442 = vmatmul.bf16.gmra.mxu0 %v4429
    %v4443 = vpop.f32.mrf.mxu0
    %v4444 = vadd.f32 0.0, %v4443
    %v4445 = vpop.f32.mrf.mxu0
    %v4446 = vadd.f32 0.0, %v4445
    %4447 = vdwg.mxu0
    %v4448 = vpack.c.bf16 %v4444, %v4444
    %v4449 = vpack.c.bf16 %v4446, %v4446
    %s4450 = scalar_lea.vmem %s59, 4
    %v4451 = vld [vmem:[%s4450] sm:$0xf]
    %v4453 = vsel %vm1190, %v4451, 0
    %4455 = vmatpush.bf16.msra.mxu0 0
    %4456 = vmatpush.bf16.msra.mxu0 0
    %4457 = vmatpush.bf16.msra.mxu0 0
    %4458 = vmatpush.bf16.msra.mxu0 0
    %4459 = vmatpush.bf16.msra.mxu0 0
    %4460 = vmatpush.bf16.msra.mxu0 0
    %4461 = vmatpush.bf16.msra.mxu0 0
    %4462 = vmatpush.bf16.msra.mxu0 %v4453
    %4463 = vmatmul.bf16.gmra.mxu0 %v4429
    %v4464 = vpop.f32.mrf.mxu0
    %v4465 = vadd.f32 0.0, %v4464
    %v4466 = vpop.f32.mrf.mxu0
    %v4467 = vadd.f32 0.0, %v4466
    %4468 = vdwg.mxu0
    %v4469 = vpack.c.bf16 %v4465, %v4465
    %v4470 = vpack.c.bf16 %v4467, %v4467
    %s4471 = scalar_lea.vmem %s59, 8
    %v4472 = vld [vmem:[%s4471] sm:$0xf]
    %v4474 = vsel %vm1190, %v4472, 0
    %4476 = vmatpush.bf16.msra.mxu0 0
    %4477 = vmatpush.bf16.msra.mxu0 0
    %4478 = vmatpush.bf16.msra.mxu0 0
    %4479 = vmatpush.bf16.msra.mxu0 0
    %4480 = vmatpush.bf16.msra.mxu0 0
    %4481 = vmatpush.bf16.msra.mxu0 0
    %4482 = vmatpush.bf16.msra.mxu0 0
    %4483 = vmatpush.bf16.msra.mxu0 %v4474
    %4484 = vmatmul.bf16.gmra.mxu0 %v4429
    %v4485 = vpop.f32.mrf.mxu0
    %v4486 = vadd.f32 0.0, %v4485
    %v4487 = vpop.f32.mrf.mxu0
    %v4488 = vadd.f32 0.0, %v4487
    %4489 = vdwg.mxu0
    %v4490 = vpack.c.bf16 %v4486, %v4486
    %v4491 = vpack.c.bf16 %v4488, %v4488
    %s4492 = scalar_lea.vmem %s59, 12
    %v4493 = vld [vmem:[%s4492] sm:$0xf]
    %v4495 = vsel %vm1190, %v4493, 0
    %4497 = vmatpush.bf16.msra.mxu0 0
    %4498 = vmatpush.bf16.msra.mxu0 0
    %4499 = vmatpush.bf16.msra.mxu0 0
    %4500 = vmatpush.bf16.msra.mxu0 0
    %4501 = vmatpush.bf16.msra.mxu0 0
    %4502 = vmatpush.bf16.msra.mxu0 0
    %4503 = vmatpush.bf16.msra.mxu0 0
    %4504 = vmatpush.bf16.msra.mxu0 %v4495
    %4505 = vmatmul.bf16.gmra.mxu0 %v4429
    %v4506 = vpop.f32.mrf.mxu0
    %v4507 = vadd.f32 0.0, %v4506
    %v4508 = vpop.f32.mrf.mxu0
    %v4509 = vadd.f32 0.0, %v4508
    %4510 = vdwg.mxu0
    %v4511 = vpack.c.bf16 %v4507, %v4507
    %v4512 = vpack.c.bf16 %v4509, %v4509
    %s4513 = scalar_lea.vmem %s59, 16
    %v4514 = vld [vmem:[%s4513] sm:$0xf]
    %v4516 = vsel %vm1190, %v4514, 0
    %4518 = vmatpush.bf16.msra.mxu0 0
    %4519 = vmatpush.bf16.msra.mxu0 0
    %4520 = vmatpush.bf16.msra.mxu0 0
    %4521 = vmatpush.bf16.msra.mxu0 0
    %4522 = vmatpush.bf16.msra.mxu0 0
    %4523 = vmatpush.bf16.msra.mxu0 0
    %4524 = vmatpush.bf16.msra.mxu0 0
    %4525 = vmatpush.bf16.msra.mxu0 %v4516
    %4526 = vmatmul.bf16.gmra.mxu0 %v4429
    %v4527 = vpop.f32.mrf.mxu0
    %v4528 = vadd.f32 0.0, %v4527
    %v4529 = vpop.f32.mrf.mxu0
    %v4530 = vadd.f32 0.0, %v4529
    %4531 = vdwg.mxu0
    %v4532 = vpack.c.bf16 %v4528, %v4528
    %v4533 = vpack.c.bf16 %v4530, %v4530
    %s4534 = scalar_lea.vmem %s59, 20
    %v4535 = vld [vmem:[%s4534] sm:$0xf]
    %v4537 = vsel %vm1190, %v4535, 0
    %4539 = vmatpush.bf16.msra.mxu0 0
    %4540 = vmatpush.bf16.msra.mxu0 0
    %4541 = vmatpush.bf16.msra.mxu0 0
    %4542 = vmatpush.bf16.msra.mxu0 0
    %4543 = vmatpush.bf16.msra.mxu0 0
    %4544 = vmatpush.bf16.msra.mxu0 0
    %4545 = vmatpush.bf16.msra.mxu0 0
    %4546 = vmatpush.bf16.msra.mxu0 %v4537
    %4547 = vmatmul.bf16.gmra.mxu0 %v4429
    %v4548 = vpop.f32.mrf.mxu0
    %v4549 = vadd.f32 0.0, %v4548
    %v4550 = vpop.f32.mrf.mxu0
    %v4551 = vadd.f32 0.0, %v4550
    %4552 = vdwg.mxu0
    %v4553 = vpack.c.bf16 %v4549, %v4549
    %v4554 = vpack.c.bf16 %v4551, %v4551
    %s4555 = scalar_lea.vmem %s59, 24
    %v4556 = vld [vmem:[%s4555] sm:$0xf]
    %v4558 = vsel %vm1190, %v4556, 0
    %4560 = vmatpush.bf16.msra.mxu0 0
    %4561 = vmatpush.bf16.msra.mxu0 0
    %4562 = vmatpush.bf16.msra.mxu0 0
    %4563 = vmatpush.bf16.msra.mxu0 0
    %4564 = vmatpush.bf16.msra.mxu0 0
    %4565 = vmatpush.bf16.msra.mxu0 0
    %4566 = vmatpush.bf16.msra.mxu0 0
    %4567 = vmatpush.bf16.msra.mxu0 %v4558
    %4568 = vmatmul.bf16.gmra.mxu0 %v4429
    %v4569 = vpop.f32.mrf.mxu0
    %v4570 = vadd.f32 0.0, %v4569
    %v4571 = vpop.f32.mrf.mxu0
    %v4572 = vadd.f32 0.0, %v4571
    %4573 = vdwg.mxu0
    %v4574 = vpack.c.bf16 %v4570, %v4570
    %v4575 = vpack.c.bf16 %v4572, %v4572
    %s4576 = scalar_lea.vmem %s59, 28
    %v4577 = vld [vmem:[%s4576] sm:$0xf]
    %v4579 = vsel %vm1190, %v4577, 0
    %4581 = vmatpush.bf16.msra.mxu0 0
    %4582 = vmatpush.bf16.msra.mxu0 0
    %4583 = vmatpush.bf16.msra.mxu0 0
    %4584 = vmatpush.bf16.msra.mxu0 0
    %4585 = vmatpush.bf16.msra.mxu0 0
    %4586 = vmatpush.bf16.msra.mxu0 0
    %4587 = vmatpush.bf16.msra.mxu0 0
    %4588 = vmatpush.bf16.msra.mxu0 %v4579
    %4589 = vmatmul.bf16.gmra.mxu0 %v4429
    %v4590 = vpop.f32.mrf.mxu0
    %v4591 = vadd.f32 0.0, %v4590
    %v4592 = vpop.f32.mrf.mxu0
    %v4593 = vadd.f32 0.0, %v4592
    %4594 = vdwg.mxu0
    %v4595 = vpack.c.bf16 %v4591, %v4591
    %v4596 = vpack.c.bf16 %v4593, %v4593
    %s4597 = scalar_lea.vmem %s59, 32
    %v4598 = vld [vmem:[%s4597] sm:$0xf]
    %v4600 = vsel %vm1190, %v4598, 0
    %4602 = vmatpush.bf16.msra.mxu0 0
    %4603 = vmatpush.bf16.msra.mxu0 0
    %4604 = vmatpush.bf16.msra.mxu0 0
    %4605 = vmatpush.bf16.msra.mxu0 0
    %4606 = vmatpush.bf16.msra.mxu0 0
    %4607 = vmatpush.bf16.msra.mxu0 0
    %4608 = vmatpush.bf16.msra.mxu0 0
    %4609 = vmatpush.bf16.msra.mxu0 %v4600
    %4610 = vmatmul.bf16.gmra.mxu0 %v4429
    %v4611 = vpop.f32.mrf.mxu0
    %v4612 = vadd.f32 0.0, %v4611
    %v4613 = vpop.f32.mrf.mxu0
    %v4614 = vadd.f32 0.0, %v4613
    %4615 = vdwg.mxu0
    %v4616 = vpack.c.bf16 %v4612, %v4612
    %v4617 = vpack.c.bf16 %v4614, %v4614
    %v4620 = vunpack.c.l.b16 %v4448
    %v4621 = vunpack.c.l.b16 %v4449
    %v4622 = vpack.c.b16 %v4621, %v4620
    %v4626 = vunpack.c.l.b16 %v4469
    %v4627 = vunpack.c.l.b16 %v4470
    %v4628 = vpack.c.b16 %v4627, %v4626
    %v4632 = vunpack.c.l.b16 %v4490
    %v4633 = vunpack.c.l.b16 %v4491
    %v4634 = vpack.c.b16 %v4633, %v4632
    %v4638 = vunpack.c.l.b16 %v4511
    %v4639 = vunpack.c.l.b16 %v4512
    %v4640 = vpack.c.b16 %v4639, %v4638
    %v4644 = vunpack.c.l.b16 %v4532
    %v4645 = vunpack.c.l.b16 %v4533
    %v4646 = vpack.c.b16 %v4645, %v4644
    %v4650 = vunpack.c.l.b16 %v4553
    %v4651 = vunpack.c.l.b16 %v4554
    %v4652 = vpack.c.b16 %v4651, %v4650
    %v4656 = vunpack.c.l.b16 %v4574
    %v4657 = vunpack.c.l.b16 %v4575
    %v4658 = vpack.c.b16 %v4657, %v4656
    %v4662 = vunpack.c.l.b16 %v4595
    %v4663 = vunpack.c.l.b16 %v4596
    %v4664 = vpack.c.b16 %v4663, %v4662
    %v4668 = vunpack.c.l.b16 %v4616
    %v4669 = vunpack.c.l.b16 %v4617
    %v4670 = vpack.c.b16 %v4669, %v4668
    %v4672 = vld [vmem:[%s55] sm:$0xff]
    %v4673 = vld [vmem:[%s55 + $0x8] sm:$0xff]
    %v4674 = vld [vmem:[%s57] sm:$0xff]
    %v4675 = vld [vmem:[%s57 + $0x8] sm:$0xff]
    %4677 = vset.pattern.permute.xlu0 0
    %4678 = vperm.xlu0 %4677, %v4674
    %v4679 = vpop.permute.xlu0 %4678
    %4682 = vset.pattern.permute.xlu0 0
    %4683 = vperm.xlu0 %4682, %v4675
    %v4684 = vpop.permute.xlu0 %4683
    %v4688 = vunpack.c.l.b16 %v4672
    %v4689 = vunpack.c.h.b16 %v4672
    %v4690 = vunpack.c.l.b16 %v4673
    %v4691 = vunpack.c.h.b16 %v4673
    %v4692 = vpack.c.b16 %v4690, %v4688
    %v4693 = vpack.c.b16 %v4691, %v4689
    %v4696 = vsel %vm360, %v4693, 0
    %4698 = vmatpush.bf16.msra.mxu0 %v4664
    %4699 = vmatpush.bf16.msra.mxu0 %v4658
    %4700 = vmatpush.bf16.msra.mxu0 %v4652
    %4701 = vmatpush.bf16.msra.mxu0 %v4646
    %4702 = vmatpush.bf16.msra.mxu0 %v4640
    %4703 = vmatpush.bf16.msra.mxu0 %v4634
    %4704 = vmatpush.bf16.msra.mxu0 %v4628
    %4705 = vmatpush.bf16.msra.mxu0 %v4622
    %4706 = vmatmul.bf16.gmra.mxu0 %v4692
    %v4707 = vpop.f32.mrf.mxu0
    %v4708 = vadd.f32 %v4679, %v4707
    %v4709 = vpop.f32.mrf.mxu0
    %v4710 = vadd.f32 %v4684, %v4709
    %4711 = vdwg.mxu0
    %4712 = vmatpush.bf16.msra.mxu0 0
    %4713 = vmatpush.bf16.msra.mxu0 0
    %4714 = vmatpush.bf16.msra.mxu0 0
    %4715 = vmatpush.bf16.msra.mxu0 0
    %4716 = vmatpush.bf16.msra.mxu0 0
    %4717 = vmatpush.bf16.msra.mxu0 0
    %4718 = vmatpush.bf16.msra.mxu0 0
    %4719 = vmatpush.bf16.msra.mxu0 %v4670
    %4720 = vmatmul.bf16.gmra.mxu0 %v4696
    %v4721 = vpop.f32.mrf.mxu0
    %v4722 = vadd.f32 %v4708, %v4721
    %v4723 = vpop.f32.mrf.mxu0
    %v4724 = vadd.f32 %v4710, %v4723
    %4725 = vdwg.mxu0
    %v4726 = vadd.f32 %v4722, %v4016
    %v4727 = vadd.f32 %v4724, %v4018
    %v4728 = vmax.f32 %v4726, 0.0
    %v4729 = vmax.f32 %v4727, 0.0
    %v4730 = vpack.c.bf16 %v4729, %v4728
    %v4731 = vld [vmem:[#allocation12] sm:$0xf]
    %v4733 = vsel %vm2534, %v4730, 0
    %v4736 = vsel %vm1190, %v4731, 0
    %4738 = vmatpush.bf16.msra.mxu0 0
    %4739 = vmatpush.bf16.msra.mxu0 0
    %4740 = vmatpush.bf16.msra.mxu0 0
    %4741 = vmatpush.bf16.msra.mxu0 0
    %4742 = vmatpush.bf16.msra.mxu0 0
    %4743 = vmatpush.bf16.msra.mxu0 0
    %4744 = vmatpush.bf16.msra.mxu0 0
    %4745 = vmatpush.bf16.msra.mxu0 %v4736
    %4746 = vmatmul.bf16.gmra.mxu0 %v4733
    %v4747 = vpop.f32.mrf.mxu0
    %v4748 = vadd.f32 0.0, %v4747
    %v4749 = vpop.f32.mrf.mxu0
    %v4750 = vadd.f32 0.0, %v4749
    %4751 = vdwg.mxu0
    %4752 = vst [vmem:[%s73] sm:$0xff] %v4748
    %4753 = vst [vmem:[%s73 + $0x8] sm:$0xff] %v4750
    %v4754 = vld [vmem:[%s69] sm:$0xf]
    %v4755 = vld [vmem:[%s69 + $0x4] sm:$0xf]
    %v4756 = vld [vmem:[%s69 + $0x8] sm:$0xf]
    %v4757 = vld [vmem:[%s69 + $0xc] sm:$0xf]
    %v4762 = vunpack.c.l.b16 %v4754
    %v4763 = vunpack.c.l.b16 %v4755
    %v4764 = vunpack.c.l.b16 %v4756
    %v4765 = vunpack.c.l.b16 %v4757
    %v4766 = vpack.c.b16 %v4763, %v4762
    %v4767 = vpack.c.b16 %v4765, %v4764
    %4770 = vmatpush.bf16.msra.mxu0 0
    %4771 = vmatpush.bf16.msra.mxu0 0
    %4772 = vmatpush.bf16.msra.mxu0 0
    %4773 = vmatpush.bf16.msra.mxu0 0
    %4774 = vmatpush.bf16.msra.mxu0 0
    %4775 = vmatpush.bf16.msra.mxu0 0
    %4776 = vmatpush.bf16.msra.mxu0 %v4767
    %4777 = vmatpush.bf16.msra.mxu0 %v4766
    %4778 = vmatmul.bf16.gmra.mxu0 %v3967
    %v4779 = vpop.f32.mrf.mxu0
    %v4780 = vadd.f32 0.0, %v4779
    %v4781 = vpop.f32.mrf.mxu0
    %v4782 = vadd.f32 0.0, %v4781
    %4783 = vdwg.mxu0
    %4784 = vst [vmem:[%s75] sm:$0xff] %v4780
    %4785 = vst [vmem:[%s75 + $0x8] sm:$0xff] %v4782
    %v4786 = vld [vmem:[%s67] sm:$0xf]
    %v4787 = vld [vmem:[%s67 + $0x4] sm:$0xf]
    %v4788 = vld [vmem:[%s67 + $0x8] sm:$0xf]
    %v4789 = vld [vmem:[%s67 + $0xc] sm:$0xf]
    %v4790 = vld [vmem:[%s67 + $0x10] sm:$0xf]
    %v4791 = vld [vmem:[%s67 + $0x14] sm:$0xf]
    %v4792 = vld [vmem:[%s67 + $0x18] sm:$0xf]
    %v4793 = vld [vmem:[%s67 + $0x1c] sm:$0xf]
    %v4794 = vld [vmem:[%s67 + $0x20] sm:$0xf]
    %v4795 = vld [vmem:[%s67 + $0x24] sm:$0xf]
    %v4796 = vld [vmem:[%s67 + $0x28] sm:$0xf]
    %v4797 = vld [vmem:[%s67 + $0x2c] sm:$0xf]
    %v4798 = vld [vmem:[%s67 + $0x30] sm:$0xf]
    %v4799 = vld [vmem:[%s67 + $0x34] sm:$0xf]
    %v4800 = vld [vmem:[%s67 + $0x38] sm:$0xf]
    %v4801 = vld [vmem:[%s67 + $0x3c] sm:$0xf]
    %v4818 = vunpack.c.l.b16 %v4786
    %v4819 = vunpack.c.l.b16 %v4787
    %v4820 = vunpack.c.l.b16 %v4788
    %v4821 = vunpack.c.l.b16 %v4789
    %v4822 = vunpack.c.l.b16 %v4790
    %v4823 = vunpack.c.l.b16 %v4791
    %v4824 = vunpack.c.l.b16 %v4792
    %v4825 = vunpack.c.l.b16 %v4793
    %v4826 = vunpack.c.l.b16 %v4794
    %v4827 = vunpack.c.l.b16 %v4795
    %v4828 = vunpack.c.l.b16 %v4796
    %v4829 = vunpack.c.l.b16 %v4797
    %v4830 = vunpack.c.l.b16 %v4798
    %v4831 = vunpack.c.l.b16 %v4799
    %v4832 = vunpack.c.l.b16 %v4800
    %v4833 = vunpack.c.l.b16 %v4801
    %v4834 = vpack.c.b16 %v4819, %v4818
    %v4835 = vpack.c.b16 %v4821, %v4820
    %v4836 = vpack.c.b16 %v4823, %v4822
    %v4837 = vpack.c.b16 %v4825, %v4824
    %v4838 = vpack.c.b16 %v4827, %v4826
    %v4839 = vpack.c.b16 %v4829, %v4828
    %v4840 = vpack.c.b16 %v4831, %v4830
    %v4841 = vpack.c.b16 %v4833, %v4832
    %4850 = vmatpush.bf16.msra.mxu0 %v4841
    %4851 = vmatpush.bf16.msra.mxu0 %v4840
    %4852 = vmatpush.bf16.msra.mxu0 %v4839
    %4853 = vmatpush.bf16.msra.mxu0 %v4838
    %4854 = vmatpush.bf16.msra.mxu0 %v4837
    %4855 = vmatpush.bf16.msra.mxu0 %v4836
    %4856 = vmatpush.bf16.msra.mxu0 %v4835
    %4857 = vmatpush.bf16.msra.mxu0 %v4834
    %4858 = vmatmul.bf16.gmra.mxu0 %v3252
    %v4859 = vpop.f32.mrf.mxu0
    %v4860 = vadd.f32 0.0, %v4859
    %v4861 = vpop.f32.mrf.mxu0
    %4862 = vdwg.mxu0
    %4863 = vst [vmem:[%s77] sm:$0xff] %v4860
    // Predicated region
    $region174: #{_lambda_.1} parent=1 // pred_check
      _
    $region175: #{_lambda_.1} parent=1 // pred_check_branch
      %4865 = sbr.rel (0) target = $region177
    $region176: #{_lambda_.1} parent=1 // pred_region
      _
    $region177: #{_lambda_.1} parent=1 // pred_fallthru
      _
    // Predicated region
    $region178: #{_lambda_.1} parent=1 // pred_check
      _
    $region179: #{_lambda_.1} parent=1 // pred_check_branch
      %4867 = sbr.rel (0) target = $region181
    $region180: #{_lambda_.1} parent=1 // pred_region
      _
    $region181: #{_lambda_.1} parent=1 // pred_fallthru
      _
    // Predicated region
    $region182: #{_lambda_.1} parent=1 // pred_check
      _
    $region183: #{_lambda_.1} parent=1 // pred_check_branch
      %4869 = sbr.rel (0) target = $region185
    $region184: #{_lambda_.1} parent=1 // pred_region
      _
    $region185: #{_lambda_.1} parent=1 // pred_fallthru
      _
    // Predicated region
    $region186: #{_lambda_.1} parent=1 // pred_check
      _
    $region187: #{_lambda_.1} parent=1 // pred_check_branch
      %4871 = sbr.rel (0) target = $region189
    $region188: #{_lambda_.1} parent=1 // pred_region
      _
    $region189: #{_lambda_.1} parent=1 // pred_fallthru
      _
    // Predicated region
    $region190: #{_lambda_.1} parent=1 // pred_check
      _
    $region191: #{_lambda_.1} parent=1 // pred_check_branch
      %4873 = sbr.rel (0) target = $region193
    $region192: #{_lambda_.1} parent=1 // pred_region
      _
    $region193: #{_lambda_.1} parent=1 // pred_fallthru
      _
    // Predicated region
    $region194: #{_lambda_.1} parent=1 // pred_check
      _
    $region195: #{_lambda_.1} parent=1 // pred_check_branch
      %4875 = sbr.rel (0) target = $region197
    $region196: #{_lambda_.1} parent=1 // pred_region
      _
    $region197: #{_lambda_.1} parent=1 // pred_fallthru
      _
    %4876 = vsyncpa [#allocation3], 1
    %4877 = vsyncpa [#allocation5], 1
    %4878 = vsyncpa [#allocation8], 1
    %4879 = vsyncpa [#allocation11], 1

</llo_original>
